<compile_context>
chip_gen: v7x
topology: tpu7x:2x2x1
jax: 0.10.0
libtpu: 0.0.40
codegen_flags: <defaults>
</compile_context>

<pallas_src>
import functools

import jax
import jax.numpy as jnp
import numpy as np
from jax import lax
from jax.experimental import pallas as pl
from jax.experimental.pallas import tpu as pltpu


def _round_up(x, m):
    return (x + m - 1) // m * m


def _lstm_recurrence_kernel(gx_ref, w_hh_ref, len_ref, out_ref,
                            h_scr, c_scr, *, hidden_pad, t_chunk, unroll,
                            mxu_dtype):
    """One grid step = (batch block, time chunk): runs t_chunk serial steps.

    gx_ref : (Tc, Bb, 4*Hp)  precomputed  x@W_ih^T + bias   (time-major chunk)
    w_hh_ref: (Hp, 4*Hp)     recurrent weights (pre-transposed, gate-padded)
    len_ref : (Bb, 1) int32  per-row sequence lengths (0 for batch padding)
    out_ref : (Bb, Tc, Hp)   hidden states, batch-major (zero past lengths)
    h_scr/c_scr: (Bb, Hp) f32 persistent LSTM state across time chunks
    """
    tc_idx = pl.program_id(1)

    @pl.when(tc_idx == 0)
    def _():
        h_scr[...] = jnp.zeros_like(h_scr)
        c_scr[...] = jnp.zeros_like(c_scr)

    Hp = hidden_pad
    # lengths kept as one tiny VMEM tile; SMEM scalar-prefetch would also work
    # but the per-chunk cost of this load is negligible.
    lens = len_ref[...]                        # (Bb, 1) int32
    t0 = tc_idx * t_chunk

    def step(s, carry):
        h_prev, c_prev = carry                 # (Bb, Hp) float32
        gx = gx_ref[s].astype(jnp.float32)     # (Bb, 4Hp)
        # W_hh is read inside the loop (not pre-materialized into vregs) and
        # stays in mxu_dtype (bf16 on TPU): halves vld/VMEM pressure, avoids
        # spills under the unrolled chunk.
        gates = gx + jnp.dot(h_prev.astype(mxu_dtype), w_hh_ref[...],
                             preferred_element_type=jnp.float32)
        # Lane-aligned gate slabs (Hp is a multiple of 128). PyTorch order
        # (i, f, g, o).  Gating math and h/c state stay f32 (accuracy;
        # v5e VPU/EUP have no bf16).
        i_g = jax.nn.sigmoid(gates[:, 0 * Hp:1 * Hp])
        f_g = jax.nn.sigmoid(gates[:, 1 * Hp:2 * Hp])
        g_g = jnp.tanh(gates[:, 2 * Hp:3 * Hp])
        o_g = jax.nn.sigmoid(gates[:, 3 * Hp:4 * Hp])
        c_new = f_g * c_prev + i_g * g_g
        h_new = o_g * jnp.tanh(c_new)
        # pack/unpack semantics: zero the hidden output for t >= lengths[b].
        mask = (t0 + s) < lens                 # (Bb, 1) bool
        # Batch-major store (lane-dense Hp row per batch row): removes the
        # separate HBM transpose pass the old wrapper needed.
        out_ref[:, s, :] = jnp.where(mask, h_new, 0.0).astype(out_ref.dtype)
        return (h_new, c_new)

    h_last, c_last = lax.fori_loop(0, t_chunk, step,
                                   (h_scr[...], c_scr[...]), unroll=unroll)
    h_scr[...] = h_last
    c_scr[...] = c_last


def visual_lstm_encoder(x, lengths, w_ih, w_hh, b_ih, b_hh, *,
                        t_chunk=64, n_batch_blocks=1, mxu_dtype=None):
    """x: (B, T, F) float32; lengths: (B,) int (sorted descending, as
    pack_padded_sequence expects). Weights in PyTorch LSTM layout:
    w_ih (4H, F), w_hh (4H, H), b_ih/b_hh (4H,).
    Returns (B, max(lengths), H) float32."""
    B, T, F = x.shape
    H = w_hh.shape[1]
    assert w_ih.shape == (4 * H, F) and w_hh.shape == (4 * H, H)

    # bf16 MXU/HBM streams are profitable on every TPU generation (v5e's MXU
    # takes bf16; only its VPU/EUP lack bf16, which this path never uses).
    # Gating math and h/c state always stay f32.  Off-TPU (CPU interpret-mode
    # sandboxes) fall back to f32: CPU dot thunks reject bf16 x bf16 -> f32.
    if mxu_dtype is None:
        mxu_dtype = (jnp.bfloat16 if jax.default_backend() == "tpu"
                     else jnp.float32)
    mxu_dtype = np.dtype(mxu_dtype)

    Hp = _round_up(H, 128)                     # lane-dense hidden width
    n_b = max(1, int(n_batch_blocks))          # real batch split (v7x megacore)
    B_pad = _round_up(B, 8 * n_b)              # sublane quantum per batch block
    Bb = B_pad // n_b

    # --- Generation-aware VMEM budget & time-chunk sizing.
    try:
        vmem_phys = int(pltpu.get_tpu_info().vmem_capacity_bytes)
    except Exception:                          # off-TPU / older runtimes
        vmem_phys = 64 << 20                   # v7x per-core size: safe floor
    vmem_limit = min(vmem_phys * 3 // 4, 112 << 20)  # ~48MiB v7x, ~96MiB v5e/v6e
    gx_bytes = mxu_dtype.itemsize

    def _vmem_need(tc):
        gx_blk = tc * Bb * 4 * Hp * gx_bytes
        out_blk = Bb * tc * Hp * 4
        w_blk = Hp * 4 * Hp * gx_bytes
        scr = 2 * Bb * Hp * 4
        return 2 * (gx_blk + out_blk + w_blk) + scr   # double-buffered blocks

    Tc = _round_up(max(8, min(int(t_chunk), T)), 8)
    while Tc > 8 and _vmem_need(Tc) > vmem_limit - (8 << 20):
        Tc = _round_up(Tc // 2, 8)
    T_pad = _round_up(T, Tc)

    # --- Gate-padded, pre-transposed weights: each gate slab padded to width
    #     Hp so in-kernel gate slicing is lane-aligned.
    def pad_gate_cols(w):                      # (R, 4H) -> (R, 4Hp)
        R = w.shape[0]
        w4 = jnp.pad(w.reshape(R, 4, H), ((0, 0), (0, 0), (0, Hp - H)))
        return w4.reshape(R, 4 * Hp)

    w_ih_t = pad_gate_cols(jnp.asarray(w_ih, jnp.float32).T)          # (F, 4Hp)
    w_hh_t = pad_gate_cols(jnp.asarray(w_hh, jnp.float32).T)          # (H, 4Hp)
    w_hh_t = jnp.pad(w_hh_t, ((0, Hp - H), (0, 0)))                   # (Hp, 4Hp)
    bias = pad_gate_cols((jnp.asarray(b_ih, jnp.float32)
                          + jnp.asarray(b_hh, jnp.float32)).reshape(1, 4 * H))

    # --- Hoisted, T-parallel input projection with the bias folded in.
    #     Transpose x (small: T*B*F) to time-major FIRST so the big (T,B,4Hp)
    #     gx product is written time-major directly (no HBM transpose of gx).
    x_tm = jnp.transpose(jnp.asarray(x, jnp.float32).astype(mxu_dtype),
                         (1, 0, 2))                                   # (T,B,F)
    if B_pad != B:
        x_tm = jnp.pad(x_tm, ((0, 0), (0, B_pad - B), (0, 0)))
    gx = jnp.einsum('tbf,fg->tbg', x_tm, w_ih_t.astype(mxu_dtype),
                    preferred_element_type=jnp.float32) + bias[None]  # (T,Bp,4Hp)
    if T_pad != T:
        gx = jnp.pad(gx, ((0, T_pad - T), (0, 0), (0, 0)))
    gx = gx.astype(mxu_dtype)                  # bf16 HBM/VMEM stream on TPU
    w_hh_k = w_hh_t.astype(mxu_dtype)

    len_col = jnp.zeros((B_pad, 1), jnp.int32)
    len_col = len_col.at[:B, 0].set(jnp.asarray(lengths, jnp.int32))

    kernel = functools.partial(_lstm_recurrence_kernel, hidden_pad=Hp,
                               t_chunk=Tc, unroll=min(8, Tc),
                               mxu_dtype=mxu_dtype)

    n_tc = T_pad // Tc
    out_bt = pl.pallas_call(
        kernel,
        out_shape=jax.ShapeDtypeStruct((B_pad, T_pad, Hp), jnp.float32),
        grid_spec=pltpu.PrefetchScalarGridSpec(
            num_scalar_prefetch=0,
            grid=(n_b, n_tc),                  # (batch blocks, time chunks)
            in_specs=[
                pl.BlockSpec((Tc, Bb, 4 * Hp), lambda b, c: (c, b, 0)),  # gx
                pl.BlockSpec((Hp, 4 * Hp), lambda b, c: (0, 0)),         # W_hh^T
                pl.BlockSpec((Bb, 1), lambda b, c: (b, 0)),              # lengths
            ],
            out_specs=pl.BlockSpec((Bb, Tc, Hp), lambda b, c: (b, c, 0)),
            scratch_shapes=[
                pltpu.VMEM((Bb, Hp), jnp.float32),   # h state
                pltpu.VMEM((Bb, Hp), jnp.float32),   # c state
            ],
        ),
        compiler_params=pltpu.CompilerParams(
            dimension_semantics=("parallel", "arbitrary"),  # B parallel, T serial
            vmem_limit_bytes=int(vmem_limit)),
    )(gx, w_hh_k, len_col)

    # PyTorch pad_packed_sequence returns max(lengths) timesteps.
    try:
        t_out = min(int(np.max(np.asarray(lengths))), T)
    except Exception:                          # traced lengths: assume max == T
        t_out = T
    # Output is already batch-major; only strip padding (no HBM transpose).
    return out_bt[:B, :t_out, :H]


def _reference(x, lengths, w_ih, w_hh, b_ih, b_hh):
    """Pure-JAX reference (lax.scan) matching torch.nn.LSTM + pack/unpack."""
    B, T, F = x.shape
    H = w_hh.shape[1]
    w_ih_t, w_hh_t = w_ih.T, w_hh.T
    bias = b_ih + b_hh

    def step(carry, x_t):
        h, c = carry
        gates = x_t @ w_ih_t + h @ w_hh_t + bias
        i = jax.nn.sigmoid(gates[:, 0 * H:1 * H])
        f = jax.nn.sigmoid(gates[:, 1 * H:2 * H])
        g = jnp.tanh(gates[:, 2 * H:3 * H])
        o = jax.nn.sigmoid(gates[:, 3 * H:4 * H])
        c_new = f * c + i * g
        h_new = o * jnp.tanh(c_new)
        return (h_new, c_new), h_new

    init = (jnp.zeros((B, H), jnp.float32), jnp.zeros((B, H), jnp.float32))
    _, hs = lax.scan(step, init, jnp.transpose(x, (1, 0, 2)))
    hs = jnp.transpose(hs, (1, 0, 2))
    mask = (jnp.arange(T)[None, :, None] < lengths[:, None, None])
    return jnp.where(mask, hs, 0.0)


if __name__ == "__main__":
    B, T, F, H = 2, 8, 16, 32

    key = jax.random.PRNGKey(0)
    kx, kx2, k1, k2, k3, k4 = jax.random.split(key, 6)

    bound = 1.0 / np.sqrt(H)   # PyTorch LSTM init: U(-1/sqrt(H), 1/sqrt(H))
    w_ih = jax.random.uniform(k1, (4 * H, F), jnp.float32, -bound, bound)
    w_hh = jax.random.uniform(k2, (4 * H, H), jnp.float32, -bound, bound)
    b_ih = jax.random.uniform(k3, (4 * H,), jnp.float32, -bound, bound)
    b_hh = jax.random.uniform(k4, (4 * H,), jnp.float32, -bound, bound)

    x = jax.random.normal(kx, (B, T, F), jnp.float32)
    lengths = jnp.array([8, 5], dtype=jnp.int32)   # sorted descending, max == T

    ref = _reference(x, lengths, w_ih, w_hh, b_ih, b_hh)

    # 1) Exact-math path (f32 streams): tight tolerance.
    out_f32 = visual_lstm_encoder(x, lengths, w_ih, w_hh, b_ih, b_hh,
                                  mxu_dtype=jnp.float32)
    out_f32 = jax.block_until_ready(out_f32)
    np.testing.assert_allclose(np.asarray(out_f32), np.asarray(ref),
                               rtol=2e-5, atol=2e-5)

    # 2) Default fast path: bf16 MXU/HBM streams on TPU (gating/state f32),
    #    automatic f32 fallback off-TPU.  Tolerance covers bf16 rounding only.
    out_fast = visual_lstm_encoder(x, lengths, w_ih, w_hh, b_ih, b_hh)
    out_fast = jax.block_until_ready(out_fast)
    np.testing.assert_allclose(np.asarray(out_fast), np.asarray(ref),
                               rtol=0.1, atol=0.1)

    # 3) Multi-chunk state carry + real 2-way batch-block split (the v7x
    #    megacore path), f32 for a tight check.
    T2 = 24
    x2 = jax.random.normal(kx2, (B, T2, F), jnp.float32)
    lengths2 = jnp.array([24, 13], dtype=jnp.int32)
    ref2 = _reference(x2, lengths2, w_ih, w_hh, b_ih, b_hh)
    out2 = visual_lstm_encoder(x2, lengths2, w_ih, w_hh, b_ih, b_hh,
                               mxu_dtype=jnp.float32, t_chunk=8,
                               n_batch_blocks=2)
    out2 = jax.block_until_ready(out2)
    np.testing.assert_allclose(np.asarray(out2), np.asarray(ref2),
                               rtol=2e-5, atol=2e-5)

    print("KERNEL_OK")
</pallas_src>

<mosaic_0001>
module attributes {stable_mosaic.version = 11 : i64} {
  func.func @_lstm_recurrence_kernel(%arg0: i32, %arg1: i32, %arg2: memref<8x8x512xf32, #tpu.memory_space<vmem>>, %arg3: memref<128x512xf32, #tpu.memory_space<vmem>>, %arg4: memref<8x1xi32, #tpu.memory_space<vmem>>, %arg5: memref<8x8x128xf32, #tpu.memory_space<vmem>>, %arg6: memref<8x128xf32, #tpu.memory_space<vmem>>, %arg7: memref<8x128xf32, #tpu.memory_space<vmem>>) attributes {dimension_semantics = [#tpu.dimension_semantics<parallel>, #tpu.dimension_semantics<arbitrary>], iteration_bounds = array<i64: 1, 1>, scalar_prefetch = 0 : i64, scratch_operands = 2 : i64, tpu.core_type = #tpu.core_type<tc>, window_params = [{transform_indices = @transform_0, window_bounds = array<i64: 8, 8, 512>}, {pipeline_mode = #tpu.pipeline_mode<synchronous>, transform_indices = @transform_1, window_bounds = array<i64: 128, 512>}, {transform_indices = @transform_2, window_bounds = array<i64: 8, 1>}, {transform_indices = @transform_3, window_bounds = array<i64: 8, 8, 128>}]} {
    %c0_i32 = arith.constant 0 : i32
    %0 = arith.cmpi eq, %arg1, %c0_i32 : i32
    %1 = arith.extui %0 : i1 to i32
    %c0_i32_0 = arith.constant 0 : i32
    %2 = arith.cmpi ne, %1, %c0_i32_0 : i32
    scf.if %2 {
      %cst_99 = arith.constant 0.000000e+00 : f32
      %345 = vector.broadcast %cst_99 : f32 to vector<8x128xf32>
      %c0_100 = arith.constant 0 : index
      %c0_101 = arith.constant 0 : index
      %346 = vector.load %arg6[%c0_100, %c0_101] : memref<8x128xf32, #tpu.memory_space<vmem>>, vector<8x128xf32>
      tpu.vector_store %arg6[%c0_100, %c0_101], %345 {strides = array<i32>} : memref<8x128xf32, #tpu.memory_space<vmem>>, vector<8x128xf32>,
      %cst_102 = arith.constant 0.000000e+00 : f32
      %347 = vector.broadcast %cst_102 : f32 to vector<8x128xf32>
      %c0_103 = arith.constant 0 : index
      %c0_104 = arith.constant 0 : index
      %348 = vector.load %arg7[%c0_103, %c0_104] : memref<8x128xf32, #tpu.memory_space<vmem>>, vector<8x128xf32>
      tpu.vector_store %arg7[%c0_103, %c0_104], %347 {strides = array<i32>} : memref<8x128xf32, #tpu.memory_space<vmem>>, vector<8x128xf32>,
    } else {
    }
    %c0 = arith.constant 0 : index
    %c0_1 = arith.constant 0 : index
    %3 = vector.load %arg4[%c0, %c0_1] : memref<8x1xi32, #tpu.memory_space<vmem>>, vector<8x1xi32>
    %c8_i32 = arith.constant 8 : i32
    %4 = arith.muli %arg1, %c8_i32 : i32
    %c0_2 = arith.constant 0 : index
    %c0_3 = arith.constant 0 : index
    %5 = vector.load %arg6[%c0_2, %c0_3] : memref<8x128xf32, #tpu.memory_space<vmem>>, vector<8x128xf32>
    %c0_4 = arith.constant 0 : index
    %c0_5 = arith.constant 0 : index
    %6 = vector.load %arg7[%c0_4, %c0_5] : memref<8x128xf32, #tpu.memory_space<vmem>>, vector<8x128xf32>
    %c0_i32_6 = arith.constant 0 : i32
    %7 = arith.index_cast %c0_i32_6 : i32 to index
    %c0_7 = arith.constant 0 : index
    %c0_8 = arith.constant 0 : index
    %8 = vector.load %arg2[%7, %c0_7, %c0_8] : memref<8x8x512xf32, #tpu.memory_space<vmem>>, vector<1x8x512xf32>
    %9 = vector.shape_cast %8 : vector<1x8x512xf32> to vector<8x512xf32>
    %c0_9 = arith.constant 0 : index
    %c0_10 = arith.constant 0 : index
    %10 = vector.load %arg3[%c0_9, %c0_10] : memref<128x512xf32, #tpu.memory_space<vmem>>, vector<128x512xf32>
    %cst = arith.constant dense<0.000000e+00> : vector<8x512xf32>
    %11 = tpu.matmul %5, %10, %cst {dimension_numbers = #tpu.dot_dimension_numbers<[1], [0], [0], [1], [0, 0, 1, 1], [], []>} : vector<8x128xf32>, vector<128x512xf32>, vector<8x512xf32> -> vector<8x512xf32>
    %12 = arith.addf %9, %11 : vector<8x512xf32>
    %13 = vector.extract_strided_slice %12 {offsets = [0, 0], sizes = [8, 128], strides = [1, 1]} : vector<8x512xf32> to vector<8x128xf32>
    %14 = arith.negf %13 : vector<8x128xf32>
    %15 = math.exp %14 : vector<8x128xf32>
    %cst_11 = arith.constant 1.000000e+00 : f32
    %16 = vector.broadcast %cst_11 : f32 to vector<8x128xf32>
    %17 = arith.addf %16, %15 : vector<8x128xf32>
    %18 = arith.divf %16, %17 : vector<8x128xf32>
    %19 = vector.extract_strided_slice %12 {offsets = [0, 128], sizes = [8, 128], strides = [1, 1]} : vector<8x512xf32> to vector<8x128xf32>
    %20 = arith.negf %19 : vector<8x128xf32>
    %21 = math.exp %20 : vector<8x128xf32>
    %cst_12 = arith.constant 1.000000e+00 : f32
    %22 = vector.broadcast %cst_12 : f32 to vector<8x128xf32>
    %23 = arith.addf %22, %21 : vector<8x128xf32>
    %24 = arith.divf %22, %23 : vector<8x128xf32>
    %25 = vector.extract_strided_slice %12 {offsets = [0, 256], sizes = [8, 128], strides = [1, 1]} : vector<8x512xf32> to vector<8x128xf32>
    %26 = math.tanh %25 : vector<8x128xf32>
    %27 = vector.extract_strided_slice %12 {offsets = [0, 384], sizes = [8, 128], strides = [1, 1]} : vector<8x512xf32> to vector<8x128xf32>
    %28 = arith.negf %27 : vector<8x128xf32>
    %29 = math.exp %28 : vector<8x128xf32>
    %cst_13 = arith.constant 1.000000e+00 : f32
    %30 = vector.broadcast %cst_13 : f32 to vector<8x128xf32>
    %31 = arith.addf %30, %29 : vector<8x128xf32>
    %32 = arith.divf %30, %31 : vector<8x128xf32>
    %33 = arith.mulf %24, %6 : vector<8x128xf32>
    %34 = arith.mulf %18, %26 : vector<8x128xf32>
    %35 = arith.addf %33, %34 : vector<8x128xf32>
    %36 = math.tanh %35 : vector<8x128xf32>
    %37 = arith.mulf %32, %36 : vector<8x128xf32>
    %38 = arith.addi %4, %c0_i32_6 : i32
    %39 = vector.broadcast %38 : i32 to vector<8x1xi32>
    %40 = arith.cmpi slt, %39, %3 : vector<8x1xi32>
    %cst_14 = arith.constant 0.000000e+00 : f32
    %41 = vector.shape_cast %40 : vector<8x1xi1> to vector<8x1xi1>
    %42 = vector.broadcast %41 : vector<8x1xi1> to vector<8x128xi1>
    %43 = vector.broadcast %cst_14 : f32 to vector<8x128xf32>
    %44 = arith.select %42, %37, %43 : vector<8x128xi1>, vector<8x128xf32>
    %c0_15 = arith.constant 0 : index
    %45 = arith.index_cast %c0_i32_6 : i32 to index
    %c0_16 = arith.constant 0 : index
    %46 = vector.load %arg5[%c0_15, %45, %c0_16] : memref<8x8x128xf32, #tpu.memory_space<vmem>>, vector<8x1x128xf32>
    %47 = vector.shape_cast %46 : vector<8x1x128xf32> to vector<8x128xf32>
    %48 = vector.shape_cast %44 : vector<8x128xf32> to vector<8x1x128xf32>
    tpu.vector_store %arg5[%c0_15, %45, %c0_16], %48 {strides = array<i32>} : memref<8x8x128xf32, #tpu.memory_space<vmem>>, vector<8x1x128xf32>,
    %c1_i32 = arith.constant 1 : i32
    %49 = arith.index_cast %c1_i32 : i32 to index
    %c0_17 = arith.constant 0 : index
    %c0_18 = arith.constant 0 : index
    %50 = vector.load %arg2[%49, %c0_17, %c0_18] : memref<8x8x512xf32, #tpu.memory_space<vmem>>, vector<1x8x512xf32>
    %51 = vector.shape_cast %50 : vector<1x8x512xf32> to vector<8x512xf32>
    %c0_19 = arith.constant 0 : index
    %c0_20 = arith.constant 0 : index
    %52 = vector.load %arg3[%c0_19, %c0_20] : memref<128x512xf32, #tpu.memory_space<vmem>>, vector<128x512xf32>
    %cst_21 = arith.constant dense<0.000000e+00> : vector<8x512xf32>
    %53 = tpu.matmul %37, %52, %cst_21 {dimension_numbers = #tpu.dot_dimension_numbers<[1], [0], [0], [1], [0, 0, 1, 1], [], []>} : vector<8x128xf32>, vector<128x512xf32>, vector<8x512xf32> -> vector<8x512xf32>
    %54 = arith.addf %51, %53 : vector<8x512xf32>
    %55 = vector.extract_strided_slice %54 {offsets = [0, 0], sizes = [8, 128], strides = [1, 1]} : vector<8x512xf32> to vector<8x128xf32>
    %56 = arith.negf %55 : vector<8x128xf32>
    %57 = math.exp %56 : vector<8x128xf32>
    %cst_22 = arith.constant 1.000000e+00 : f32
    %58 = vector.broadcast %cst_22 : f32 to vector<8x128xf32>
    %59 = arith.addf %58, %57 : vector<8x128xf32>
    %60 = arith.divf %58, %59 : vector<8x128xf32>
    %61 = vector.extract_strided_slice %54 {offsets = [0, 128], sizes = [8, 128], strides = [1, 1]} : vector<8x512xf32> to vector<8x128xf32>
    %62 = arith.negf %61 : vector<8x128xf32>
    %63 = math.exp %62 : vector<8x128xf32>
    %cst_23 = arith.constant 1.000000e+00 : f32
    %64 = vector.broadcast %cst_23 : f32 to vector<8x128xf32>
    %65 = arith.addf %64, %63 : vector<8x128xf32>
    %66 = arith.divf %64, %65 : vector<8x128xf32>
    %67 = vector.extract_strided_slice %54 {offsets = [0, 256], sizes = [8, 128], strides = [1, 1]} : vector<8x512xf32> to vector<8x128xf32>
    %68 = math.tanh %67 : vector<8x128xf32>
    %69 = vector.extract_strided_slice %54 {offsets = [0, 384], sizes = [8, 128], strides = [1, 1]} : vector<8x512xf32> to vector<8x128xf32>
    %70 = arith.negf %69 : vector<8x128xf32>
    %71 = math.exp %70 : vector<8x128xf32>
    %cst_24 = arith.constant 1.000000e+00 : f32
    %72 = vector.broadcast %cst_24 : f32 to vector<8x128xf32>
    %73 = arith.addf %72, %71 : vector<8x128xf32>
    %74 = arith.divf %72, %73 : vector<8x128xf32>
    %75 = arith.mulf %66, %35 : vector<8x128xf32>
    %76 = arith.mulf %60, %68 : vector<8x128xf32>
    %77 = arith.addf %75, %76 : vector<8x128xf32>
    %78 = math.tanh %77 : vector<8x128xf32>
    %79 = arith.mulf %74, %78 : vector<8x128xf32>
    %80 = arith.addi %4, %c1_i32 : i32
    %81 = vector.broadcast %80 : i32 to vector<8x1xi32>
    %82 = arith.cmpi slt, %81, %3 : vector<8x1xi32>
    %cst_25 = arith.constant 0.000000e+00 : f32
    %83 = vector.shape_cast %82 : vector<8x1xi1> to vector<8x1xi1>
    %84 = vector.broadcast %83 : vector<8x1xi1> to vector<8x128xi1>
    %85 = vector.broadcast %cst_25 : f32 to vector<8x128xf32>
    %86 = arith.select %84, %79, %85 : vector<8x128xi1>, vector<8x128xf32>
    %c0_26 = arith.constant 0 : index
    %87 = arith.index_cast %c1_i32 : i32 to index
    %c0_27 = arith.constant 0 : index
    %88 = vector.load %arg5[%c0_26, %87, %c0_27] : memref<8x8x128xf32, #tpu.memory_space<vmem>>, vector<8x1x128xf32>
    %89 = vector.shape_cast %88 : vector<8x1x128xf32> to vector<8x128xf32>
    %90 = vector.shape_cast %86 : vector<8x128xf32> to vector<8x1x128xf32>
    tpu.vector_store %arg5[%c0_26, %87, %c0_27], %90 {strides = array<i32>} : memref<8x8x128xf32, #tpu.memory_space<vmem>>, vector<8x1x128xf32>,
    %c2_i32 = arith.constant 2 : i32
    %91 = arith.index_cast %c2_i32 : i32 to index
    %c0_28 = arith.constant 0 : index
    %c0_29 = arith.constant 0 : index
    %92 = vector.load %arg2[%91, %c0_28, %c0_29] : memref<8x8x512xf32, #tpu.memory_space<vmem>>, vector<1x8x512xf32>
    %93 = vector.shape_cast %92 : vector<1x8x512xf32> to vector<8x512xf32>
    %c0_30 = arith.constant 0 : index
    %c0_31 = arith.constant 0 : index
    %94 = vector.load %arg3[%c0_30, %c0_31] : memref<128x512xf32, #tpu.memory_space<vmem>>, vector<128x512xf32>
    %cst_32 = arith.constant dense<0.000000e+00> : vector<8x512xf32>
    %95 = tpu.matmul %79, %94, %cst_32 {dimension_numbers = #tpu.dot_dimension_numbers<[1], [0], [0], [1], [0, 0, 1, 1], [], []>} : vector<8x128xf32>, vector<128x512xf32>, vector<8x512xf32> -> vector<8x512xf32>
    %96 = arith.addf %93, %95 : vector<8x512xf32>
    %97 = vector.extract_strided_slice %96 {offsets = [0, 0], sizes = [8, 128], strides = [1, 1]} : vector<8x512xf32> to vector<8x128xf32>
    %98 = arith.negf %97 : vector<8x128xf32>
    %99 = math.exp %98 : vector<8x128xf32>
    %cst_33 = arith.constant 1.000000e+00 : f32
    %100 = vector.broadcast %cst_33 : f32 to vector<8x128xf32>
    %101 = arith.addf %100, %99 : vector<8x128xf32>
    %102 = arith.divf %100, %101 : vector<8x128xf32>
    %103 = vector.extract_strided_slice %96 {offsets = [0, 128], sizes = [8, 128], strides = [1, 1]} : vector<8x512xf32> to vector<8x128xf32>
    %104 = arith.negf %103 : vector<8x128xf32>
    %105 = math.exp %104 : vector<8x128xf32>
    %cst_34 = arith.constant 1.000000e+00 : f32
    %106 = vector.broadcast %cst_34 : f32 to vector<8x128xf32>
    %107 = arith.addf %106, %105 : vector<8x128xf32>
    %108 = arith.divf %106, %107 : vector<8x128xf32>
    %109 = vector.extract_strided_slice %96 {offsets = [0, 256], sizes = [8, 128], strides = [1, 1]} : vector<8x512xf32> to vector<8x128xf32>
    %110 = math.tanh %109 : vector<8x128xf32>
    %111 = vector.extract_strided_slice %96 {offsets = [0, 384], sizes = [8, 128], strides = [1, 1]} : vector<8x512xf32> to vector<8x128xf32>
    %112 = arith.negf %111 : vector<8x128xf32>
    %113 = math.exp %112 : vector<8x128xf32>
    %cst_35 = arith.constant 1.000000e+00 : f32
    %114 = vector.broadcast %cst_35 : f32 to vector<8x128xf32>
    %115 = arith.addf %114, %113 : vector<8x128xf32>
    %116 = arith.divf %114, %115 : vector<8x128xf32>
    %117 = arith.mulf %108, %77 : vector<8x128xf32>
    %118 = arith.mulf %102, %110 : vector<8x128xf32>
    %119 = arith.addf %117, %118 : vector<8x128xf32>
    %120 = math.tanh %119 : vector<8x128xf32>
    %121 = arith.mulf %116, %120 : vector<8x128xf32>
    %122 = arith.addi %4, %c2_i32 : i32
    %123 = vector.broadcast %122 : i32 to vector<8x1xi32>
    %124 = arith.cmpi slt, %123, %3 : vector<8x1xi32>
    %cst_36 = arith.constant 0.000000e+00 : f32
    %125 = vector.shape_cast %124 : vector<8x1xi1> to vector<8x1xi1>
    %126 = vector.broadcast %125 : vector<8x1xi1> to vector<8x128xi1>
    %127 = vector.broadcast %cst_36 : f32 to vector<8x128xf32>
    %128 = arith.select %126, %121, %127 : vector<8x128xi1>, vector<8x128xf32>
    %c0_37 = arith.constant 0 : index
    %129 = arith.index_cast %c2_i32 : i32 to index
    %c0_38 = arith.constant 0 : index
    %130 = vector.load %arg5[%c0_37, %129, %c0_38] : memref<8x8x128xf32, #tpu.memory_space<vmem>>, vector<8x1x128xf32>
    %131 = vector.shape_cast %130 : vector<8x1x128xf32> to vector<8x128xf32>
    %132 = vector.shape_cast %128 : vector<8x128xf32> to vector<8x1x128xf32>
    tpu.vector_store %arg5[%c0_37, %129, %c0_38], %132 {strides = array<i32>} : memref<8x8x128xf32, #tpu.memory_space<vmem>>, vector<8x1x128xf32>,
    %c3_i32 = arith.constant 3 : i32
    %133 = arith.index_cast %c3_i32 : i32 to index
    %c0_39 = arith.constant 0 : index
    %c0_40 = arith.constant 0 : index
    %134 = vector.load %arg2[%133, %c0_39, %c0_40] : memref<8x8x512xf32, #tpu.memory_space<vmem>>, vector<1x8x512xf32>
    %135 = vector.shape_cast %134 : vector<1x8x512xf32> to vector<8x512xf32>
    %c0_41 = arith.constant 0 : index
    %c0_42 = arith.constant 0 : index
    %136 = vector.load %arg3[%c0_41, %c0_42] : memref<128x512xf32, #tpu.memory_space<vmem>>, vector<128x512xf32>
    %cst_43 = arith.constant dense<0.000000e+00> : vector<8x512xf32>
    %137 = tpu.matmul %121, %136, %cst_43 {dimension_numbers = #tpu.dot_dimension_numbers<[1], [0], [0], [1], [0, 0, 1, 1], [], []>} : vector<8x128xf32>, vector<128x512xf32>, vector<8x512xf32> -> vector<8x512xf32>
    %138 = arith.addf %135, %137 : vector<8x512xf32>
    %139 = vector.extract_strided_slice %138 {offsets = [0, 0], sizes = [8, 128], strides = [1, 1]} : vector<8x512xf32> to vector<8x128xf32>
    %140 = arith.negf %139 : vector<8x128xf32>
    %141 = math.exp %140 : vector<8x128xf32>
    %cst_44 = arith.constant 1.000000e+00 : f32
    %142 = vector.broadcast %cst_44 : f32 to vector<8x128xf32>
    %143 = arith.addf %142, %141 : vector<8x128xf32>
    %144 = arith.divf %142, %143 : vector<8x128xf32>
    %145 = vector.extract_strided_slice %138 {offsets = [0, 128], sizes = [8, 128], strides = [1, 1]} : vector<8x512xf32> to vector<8x128xf32>
    %146 = arith.negf %145 : vector<8x128xf32>
    %147 = math.exp %146 : vector<8x128xf32>
    %cst_45 = arith.constant 1.000000e+00 : f32
    %148 = vector.broadcast %cst_45 : f32 to vector<8x128xf32>
    %149 = arith.addf %148, %147 : vector<8x128xf32>
    %150 = arith.divf %148, %149 : vector<8x128xf32>
    %151 = vector.extract_strided_slice %138 {offsets = [0, 256], sizes = [8, 128], strides = [1, 1]} : vector<8x512xf32> to vector<8x128xf32>
    %152 = math.tanh %151 : vector<8x128xf32>
    %153 = vector.extract_strided_slice %138 {offsets = [0, 384], sizes = [8, 128], strides = [1, 1]} : vector<8x512xf32> to vector<8x128xf32>
    %154 = arith.negf %153 : vector<8x128xf32>
    %155 = math.exp %154 : vector<8x128xf32>
    %cst_46 = arith.constant 1.000000e+00 : f32
    %156 = vector.broadcast %cst_46 : f32 to vector<8x128xf32>
    %157 = arith.addf %156, %155 : vector<8x128xf32>
    %158 = arith.divf %156, %157 : vector<8x128xf32>
    %159 = arith.mulf %150, %119 : vector<8x128xf32>
    %160 = arith.mulf %144, %152 : vector<8x128xf32>
    %161 = arith.addf %159, %160 : vector<8x128xf32>
    %162 = math.tanh %161 : vector<8x128xf32>
    %163 = arith.mulf %158, %162 : vector<8x128xf32>
    %164 = arith.addi %4, %c3_i32 : i32
    %165 = vector.broadcast %164 : i32 to vector<8x1xi32>
    %166 = arith.cmpi slt, %165, %3 : vector<8x1xi32>
    %cst_47 = arith.constant 0.000000e+00 : f32
    %167 = vector.shape_cast %166 : vector<8x1xi1> to vector<8x1xi1>
    %168 = vector.broadcast %167 : vector<8x1xi1> to vector<8x128xi1>
    %169 = vector.broadcast %cst_47 : f32 to vector<8x128xf32>
    %170 = arith.select %168, %163, %169 : vector<8x128xi1>, vector<8x128xf32>
    %c0_48 = arith.constant 0 : index
    %171 = arith.index_cast %c3_i32 : i32 to index
    %c0_49 = arith.constant 0 : index
    %172 = vector.load %arg5[%c0_48, %171, %c0_49] : memref<8x8x128xf32, #tpu.memory_space<vmem>>, vector<8x1x128xf32>
    %173 = vector.shape_cast %172 : vector<8x1x128xf32> to vector<8x128xf32>
    %174 = vector.shape_cast %170 : vector<8x128xf32> to vector<8x1x128xf32>
    tpu.vector_store %arg5[%c0_48, %171, %c0_49], %174 {strides = array<i32>} : memref<8x8x128xf32, #tpu.memory_space<vmem>>, vector<8x1x128xf32>,
    %c4_i32 = arith.constant 4 : i32
    %175 = arith.index_cast %c4_i32 : i32 to index
    %c0_50 = arith.constant 0 : index
    %c0_51 = arith.constant 0 : index
    %176 = vector.load %arg2[%175, %c0_50, %c0_51] : memref<8x8x512xf32, #tpu.memory_space<vmem>>, vector<1x8x512xf32>
    %177 = vector.shape_cast %176 : vector<1x8x512xf32> to vector<8x512xf32>
    %c0_52 = arith.constant 0 : index
    %c0_53 = arith.constant 0 : index
    %178 = vector.load %arg3[%c0_52, %c0_53] : memref<128x512xf32, #tpu.memory_space<vmem>>, vector<128x512xf32>
    %cst_54 = arith.constant dense<0.000000e+00> : vector<8x512xf32>
    %179 = tpu.matmul %163, %178, %cst_54 {dimension_numbers = #tpu.dot_dimension_numbers<[1], [0], [0], [1], [0, 0, 1, 1], [], []>} : vector<8x128xf32>, vector<128x512xf32>, vector<8x512xf32> -> vector<8x512xf32>
    %180 = arith.addf %177, %179 : vector<8x512xf32>
    %181 = vector.extract_strided_slice %180 {offsets = [0, 0], sizes = [8, 128], strides = [1, 1]} : vector<8x512xf32> to vector<8x128xf32>
    %182 = arith.negf %181 : vector<8x128xf32>
    %183 = math.exp %182 : vector<8x128xf32>
    %cst_55 = arith.constant 1.000000e+00 : f32
    %184 = vector.broadcast %cst_55 : f32 to vector<8x128xf32>
    %185 = arith.addf %184, %183 : vector<8x128xf32>
    %186 = arith.divf %184, %185 : vector<8x128xf32>
    %187 = vector.extract_strided_slice %180 {offsets = [0, 128], sizes = [8, 128], strides = [1, 1]} : vector<8x512xf32> to vector<8x128xf32>
    %188 = arith.negf %187 : vector<8x128xf32>
    %189 = math.exp %188 : vector<8x128xf32>
    %cst_56 = arith.constant 1.000000e+00 : f32
    %190 = vector.broadcast %cst_56 : f32 to vector<8x128xf32>
    %191 = arith.addf %190, %189 : vector<8x128xf32>
    %192 = arith.divf %190, %191 : vector<8x128xf32>
    %193 = vector.extract_strided_slice %180 {offsets = [0, 256], sizes = [8, 128], strides = [1, 1]} : vector<8x512xf32> to vector<8x128xf32>
    %194 = math.tanh %193 : vector<8x128xf32>
    %195 = vector.extract_strided_slice %180 {offsets = [0, 384], sizes = [8, 128], strides = [1, 1]} : vector<8x512xf32> to vector<8x128xf32>
    %196 = arith.negf %195 : vector<8x128xf32>
    %197 = math.exp %196 : vector<8x128xf32>
    %cst_57 = arith.constant 1.000000e+00 : f32
    %198 = vector.broadcast %cst_57 : f32 to vector<8x128xf32>
    %199 = arith.addf %198, %197 : vector<8x128xf32>
    %200 = arith.divf %198, %199 : vector<8x128xf32>
    %201 = arith.mulf %192, %161 : vector<8x128xf32>
    %202 = arith.mulf %186, %194 : vector<8x128xf32>
    %203 = arith.addf %201, %202 : vector<8x128xf32>
    %204 = math.tanh %203 : vector<8x128xf32>
    %205 = arith.mulf %200, %204 : vector<8x128xf32>
    %206 = arith.addi %4, %c4_i32 : i32
    %207 = vector.broadcast %206 : i32 to vector<8x1xi32>
    %208 = arith.cmpi slt, %207, %3 : vector<8x1xi32>
    %cst_58 = arith.constant 0.000000e+00 : f32
    %209 = vector.shape_cast %208 : vector<8x1xi1> to vector<8x1xi1>
    %210 = vector.broadcast %209 : vector<8x1xi1> to vector<8x128xi1>
    %211 = vector.broadcast %cst_58 : f32 to vector<8x128xf32>
    %212 = arith.select %210, %205, %211 : vector<8x128xi1>, vector<8x128xf32>
    %c0_59 = arith.constant 0 : index
    %213 = arith.index_cast %c4_i32 : i32 to index
    %c0_60 = arith.constant 0 : index
    %214 = vector.load %arg5[%c0_59, %213, %c0_60] : memref<8x8x128xf32, #tpu.memory_space<vmem>>, vector<8x1x128xf32>
    %215 = vector.shape_cast %214 : vector<8x1x128xf32> to vector<8x128xf32>
    %216 = vector.shape_cast %212 : vector<8x128xf32> to vector<8x1x128xf32>
    tpu.vector_store %arg5[%c0_59, %213, %c0_60], %216 {strides = array<i32>} : memref<8x8x128xf32, #tpu.memory_space<vmem>>, vector<8x1x128xf32>,
    %c5_i32 = arith.constant 5 : i32
    %217 = arith.index_cast %c5_i32 : i32 to index
    %c0_61 = arith.constant 0 : index
    %c0_62 = arith.constant 0 : index
    %218 = vector.load %arg2[%217, %c0_61, %c0_62] : memref<8x8x512xf32, #tpu.memory_space<vmem>>, vector<1x8x512xf32>
    %219 = vector.shape_cast %218 : vector<1x8x512xf32> to vector<8x512xf32>
    %c0_63 = arith.constant 0 : index
    %c0_64 = arith.constant 0 : index
    %220 = vector.load %arg3[%c0_63, %c0_64] : memref<128x512xf32, #tpu.memory_space<vmem>>, vector<128x512xf32>
    %cst_65 = arith.constant dense<0.000000e+00> : vector<8x512xf32>
    %221 = tpu.matmul %205, %220, %cst_65 {dimension_numbers = #tpu.dot_dimension_numbers<[1], [0], [0], [1], [0, 0, 1, 1], [], []>} : vector<8x128xf32>, vector<128x512xf32>, vector<8x512xf32> -> vector<8x512xf32>
    %222 = arith.addf %219, %221 : vector<8x512xf32>
    %223 = vector.extract_strided_slice %222 {offsets = [0, 0], sizes = [8, 128], strides = [1, 1]} : vector<8x512xf32> to vector<8x128xf32>
    %224 = arith.negf %223 : vector<8x128xf32>
    %225 = math.exp %224 : vector<8x128xf32>
    %cst_66 = arith.constant 1.000000e+00 : f32
    %226 = vector.broadcast %cst_66 : f32 to vector<8x128xf32>
    %227 = arith.addf %226, %225 : vector<8x128xf32>
    %228 = arith.divf %226, %227 : vector<8x128xf32>
    %229 = vector.extract_strided_slice %222 {offsets = [0, 128], sizes = [8, 128], strides = [1, 1]} : vector<8x512xf32> to vector<8x128xf32>
    %230 = arith.negf %229 : vector<8x128xf32>
    %231 = math.exp %230 : vector<8x128xf32>
    %cst_67 = arith.constant 1.000000e+00 : f32
    %232 = vector.broadcast %cst_67 : f32 to vector<8x128xf32>
    %233 = arith.addf %232, %231 : vector<8x128xf32>
    %234 = arith.divf %232, %233 : vector<8x128xf32>
    %235 = vector.extract_strided_slice %222 {offsets = [0, 256], sizes = [8, 128], strides = [1, 1]} : vector<8x512xf32> to vector<8x128xf32>
    %236 = math.tanh %235 : vector<8x128xf32>
    %237 = vector.extract_strided_slice %222 {offsets = [0, 384], sizes = [8, 128], strides = [1, 1]} : vector<8x512xf32> to vector<8x128xf32>
    %238 = arith.negf %237 : vector<8x128xf32>
    %239 = math.exp %238 : vector<8x128xf32>
    %cst_68 = arith.constant 1.000000e+00 : f32
    %240 = vector.broadcast %cst_68 : f32 to vector<8x128xf32>
    %241 = arith.addf %240, %239 : vector<8x128xf32>
    %242 = arith.divf %240, %241 : vector<8x128xf32>
    %243 = arith.mulf %234, %203 : vector<8x128xf32>
    %244 = arith.mulf %228, %236 : vector<8x128xf32>
    %245 = arith.addf %243, %244 : vector<8x128xf32>
    %246 = math.tanh %245 : vector<8x128xf32>
    %247 = arith.mulf %242, %246 : vector<8x128xf32>
    %248 = arith.addi %4, %c5_i32 : i32
    %249 = vector.broadcast %248 : i32 to vector<8x1xi32>
    %250 = arith.cmpi slt, %249, %3 : vector<8x1xi32>
    %cst_69 = arith.constant 0.000000e+00 : f32
    %251 = vector.shape_cast %250 : vector<8x1xi1> to vector<8x1xi1>
    %252 = vector.broadcast %251 : vector<8x1xi1> to vector<8x128xi1>
    %253 = vector.broadcast %cst_69 : f32 to vector<8x128xf32>
    %254 = arith.select %252, %247, %253 : vector<8x128xi1>, vector<8x128xf32>
    %c0_70 = arith.constant 0 : index
    %255 = arith.index_cast %c5_i32 : i32 to index
    %c0_71 = arith.constant 0 : index
    %256 = vector.load %arg5[%c0_70, %255, %c0_71] : memref<8x8x128xf32, #tpu.memory_space<vmem>>, vector<8x1x128xf32>
    %257 = vector.shape_cast %256 : vector<8x1x128xf32> to vector<8x128xf32>
    %258 = vector.shape_cast %254 : vector<8x128xf32> to vector<8x1x128xf32>
    tpu.vector_store %arg5[%c0_70, %255, %c0_71], %258 {strides = array<i32>} : memref<8x8x128xf32, #tpu.memory_space<vmem>>, vector<8x1x128xf32>,
    %c6_i32 = arith.constant 6 : i32
    %259 = arith.index_cast %c6_i32 : i32 to index
    %c0_72 = arith.constant 0 : index
    %c0_73 = arith.constant 0 : index
    %260 = vector.load %arg2[%259, %c0_72, %c0_73] : memref<8x8x512xf32, #tpu.memory_space<vmem>>, vector<1x8x512xf32>
    %261 = vector.shape_cast %260 : vector<1x8x512xf32> to vector<8x512xf32>
    %c0_74 = arith.constant 0 : index
    %c0_75 = arith.constant 0 : index
    %262 = vector.load %arg3[%c0_74, %c0_75] : memref<128x512xf32, #tpu.memory_space<vmem>>, vector<128x512xf32>
    %cst_76 = arith.constant dense<0.000000e+00> : vector<8x512xf32>
    %263 = tpu.matmul %247, %262, %cst_76 {dimension_numbers = #tpu.dot_dimension_numbers<[1], [0], [0], [1], [0, 0, 1, 1], [], []>} : vector<8x128xf32>, vector<128x512xf32>, vector<8x512xf32> -> vector<8x512xf32>
    %264 = arith.addf %261, %263 : vector<8x512xf32>
    %265 = vector.extract_strided_slice %264 {offsets = [0, 0], sizes = [8, 128], strides = [1, 1]} : vector<8x512xf32> to vector<8x128xf32>
    %266 = arith.negf %265 : vector<8x128xf32>
    %267 = math.exp %266 : vector<8x128xf32>
    %cst_77 = arith.constant 1.000000e+00 : f32
    %268 = vector.broadcast %cst_77 : f32 to vector<8x128xf32>
    %269 = arith.addf %268, %267 : vector<8x128xf32>
    %270 = arith.divf %268, %269 : vector<8x128xf32>
    %271 = vector.extract_strided_slice %264 {offsets = [0, 128], sizes = [8, 128], strides = [1, 1]} : vector<8x512xf32> to vector<8x128xf32>
    %272 = arith.negf %271 : vector<8x128xf32>
    %273 = math.exp %272 : vector<8x128xf32>
    %cst_78 = arith.constant 1.000000e+00 : f32
    %274 = vector.broadcast %cst_78 : f32 to vector<8x128xf32>
    %275 = arith.addf %274, %273 : vector<8x128xf32>
    %276 = arith.divf %274, %275 : vector<8x128xf32>
    %277 = vector.extract_strided_slice %264 {offsets = [0, 256], sizes = [8, 128], strides = [1, 1]} : vector<8x512xf32> to vector<8x128xf32>
    %278 = math.tanh %277 : vector<8x128xf32>
    %279 = vector.extract_strided_slice %264 {offsets = [0, 384], sizes = [8, 128], strides = [1, 1]} : vector<8x512xf32> to vector<8x128xf32>
    %280 = arith.negf %279 : vector<8x128xf32>
    %281 = math.exp %280 : vector<8x128xf32>
    %cst_79 = arith.constant 1.000000e+00 : f32
    %282 = vector.broadcast %cst_79 : f32 to vector<8x128xf32>
    %283 = arith.addf %282, %281 : vector<8x128xf32>
    %284 = arith.divf %282, %283 : vector<8x128xf32>
    %285 = arith.mulf %276, %245 : vector<8x128xf32>
    %286 = arith.mulf %270, %278 : vector<8x128xf32>
    %287 = arith.addf %285, %286 : vector<8x128xf32>
    %288 = math.tanh %287 : vector<8x128xf32>
    %289 = arith.mulf %284, %288 : vector<8x128xf32>
    %290 = arith.addi %4, %c6_i32 : i32
    %291 = vector.broadcast %290 : i32 to vector<8x1xi32>
    %292 = arith.cmpi slt, %291, %3 : vector<8x1xi32>
    %cst_80 = arith.constant 0.000000e+00 : f32
    %293 = vector.shape_cast %292 : vector<8x1xi1> to vector<8x1xi1>
    %294 = vector.broadcast %293 : vector<8x1xi1> to vector<8x128xi1>
    %295 = vector.broadcast %cst_80 : f32 to vector<8x128xf32>
    %296 = arith.select %294, %289, %295 : vector<8x128xi1>, vector<8x128xf32>
    %c0_81 = arith.constant 0 : index
    %297 = arith.index_cast %c6_i32 : i32 to index
    %c0_82 = arith.constant 0 : index
    %298 = vector.load %arg5[%c0_81, %297, %c0_82] : memref<8x8x128xf32, #tpu.memory_space<vmem>>, vector<8x1x128xf32>
    %299 = vector.shape_cast %298 : vector<8x1x128xf32> to vector<8x128xf32>
    %300 = vector.shape_cast %296 : vector<8x128xf32> to vector<8x1x128xf32>
    tpu.vector_store %arg5[%c0_81, %297, %c0_82], %300 {strides = array<i32>} : memref<8x8x128xf32, #tpu.memory_space<vmem>>, vector<8x1x128xf32>,
    %c7_i32 = arith.constant 7 : i32
    %301 = arith.index_cast %c7_i32 : i32 to index
    %c0_83 = arith.constant 0 : index
    %c0_84 = arith.constant 0 : index
    %302 = vector.load %arg2[%301, %c0_83, %c0_84] : memref<8x8x512xf32, #tpu.memory_space<vmem>>, vector<1x8x512xf32>
    %303 = vector.shape_cast %302 : vector<1x8x512xf32> to vector<8x512xf32>
    %c0_85 = arith.constant 0 : index
    %c0_86 = arith.constant 0 : index
    %304 = vector.load %arg3[%c0_85, %c0_86] : memref<128x512xf32, #tpu.memory_space<vmem>>, vector<128x512xf32>
    %cst_87 = arith.constant dense<0.000000e+00> : vector<8x512xf32>
    %305 = tpu.matmul %289, %304, %cst_87 {dimension_numbers = #tpu.dot_dimension_numbers<[1], [0], [0], [1], [0, 0, 1, 1], [], []>} : vector<8x128xf32>, vector<128x512xf32>, vector<8x512xf32> -> vector<8x512xf32>
    %306 = arith.addf %303, %305 : vector<8x512xf32>
    %307 = vector.extract_strided_slice %306 {offsets = [0, 0], sizes = [8, 128], strides = [1, 1]} : vector<8x512xf32> to vector<8x128xf32>
    %308 = arith.negf %307 : vector<8x128xf32>
    %309 = math.exp %308 : vector<8x128xf32>
    %cst_88 = arith.constant 1.000000e+00 : f32
    %310 = vector.broadcast %cst_88 : f32 to vector<8x128xf32>
    %311 = arith.addf %310, %309 : vector<8x128xf32>
    %312 = arith.divf %310, %311 : vector<8x128xf32>
    %313 = vector.extract_strided_slice %306 {offsets = [0, 128], sizes = [8, 128], strides = [1, 1]} : vector<8x512xf32> to vector<8x128xf32>
    %314 = arith.negf %313 : vector<8x128xf32>
    %315 = math.exp %314 : vector<8x128xf32>
    %cst_89 = arith.constant 1.000000e+00 : f32
    %316 = vector.broadcast %cst_89 : f32 to vector<8x128xf32>
    %317 = arith.addf %316, %315 : vector<8x128xf32>
    %318 = arith.divf %316, %317 : vector<8x128xf32>
    %319 = vector.extract_strided_slice %306 {offsets = [0, 256], sizes = [8, 128], strides = [1, 1]} : vector<8x512xf32> to vector<8x128xf32>
    %320 = math.tanh %319 : vector<8x128xf32>
    %321 = vector.extract_strided_slice %306 {offsets = [0, 384], sizes = [8, 128], strides = [1, 1]} : vector<8x512xf32> to vector<8x128xf32>
    %322 = arith.negf %321 : vector<8x128xf32>
    %323 = math.exp %322 : vector<8x128xf32>
    %cst_90 = arith.constant 1.000000e+00 : f32
    %324 = vector.broadcast %cst_90 : f32 to vector<8x128xf32>
    %325 = arith.addf %324, %323 : vector<8x128xf32>
    %326 = arith.divf %324, %325 : vector<8x128xf32>
    %327 = arith.mulf %318, %287 : vector<8x128xf32>
    %328 = arith.mulf %312, %320 : vector<8x128xf32>
    %329 = arith.addf %327, %328 : vector<8x128xf32>
    %330 = math.tanh %329 : vector<8x128xf32>
    %331 = arith.mulf %326, %330 : vector<8x128xf32>
    %332 = arith.addi %4, %c7_i32 : i32
    %333 = vector.broadcast %332 : i32 to vector<8x1xi32>
    %334 = arith.cmpi slt, %333, %3 : vector<8x1xi32>
    %cst_91 = arith.constant 0.000000e+00 : f32
    %335 = vector.shape_cast %334 : vector<8x1xi1> to vector<8x1xi1>
    %336 = vector.broadcast %335 : vector<8x1xi1> to vector<8x128xi1>
    %337 = vector.broadcast %cst_91 : f32 to vector<8x128xf32>
    %338 = arith.select %336, %331, %337 : vector<8x128xi1>, vector<8x128xf32>
    %c0_92 = arith.constant 0 : index
    %339 = arith.index_cast %c7_i32 : i32 to index
    %c0_93 = arith.constant 0 : index
    %340 = vector.load %arg5[%c0_92, %339, %c0_93] : memref<8x8x128xf32, #tpu.memory_space<vmem>>, vector<8x1x128xf32>
    %341 = vector.shape_cast %340 : vector<8x1x128xf32> to vector<8x128xf32>
    %342 = vector.shape_cast %338 : vector<8x128xf32> to vector<8x1x128xf32>
    tpu.vector_store %arg5[%c0_92, %339, %c0_93], %342 {strides = array<i32>} : memref<8x8x128xf32, #tpu.memory_space<vmem>>, vector<8x1x128xf32>,
    %c8_i32_94 = arith.constant 8 : i32
    %c0_95 = arith.constant 0 : index
    %c0_96 = arith.constant 0 : index
    %343 = vector.load %arg6[%c0_95, %c0_96] : memref<8x128xf32, #tpu.memory_space<vmem>>, vector<8x128xf32>
    tpu.vector_store %arg6[%c0_95, %c0_96], %331 {strides = array<i32>} : memref<8x128xf32, #tpu.memory_space<vmem>>, vector<8x128xf32>,
    %c0_97 = arith.constant 0 : index
    %c0_98 = arith.constant 0 : index
    %344 = vector.load %arg7[%c0_97, %c0_98] : memref<8x128xf32, #tpu.memory_space<vmem>>, vector<8x128xf32>
    tpu.vector_store %arg7[%c0_97, %c0_98], %329 {strides = array<i32>} : memref<8x128xf32, #tpu.memory_space<vmem>>, vector<8x128xf32>,
    return
  }
  func.func @transform_0(%arg0: i32, %arg1: i32) -> (i32, i32, i32) {
    %c0_i32 = arith.constant 0 : i32
    %c0_i32_0 = arith.constant 0 : i32
    return %arg1, %arg0, %c0_i32 : i32, i32, i32
  }
  func.func @transform_1(%arg0: i32, %arg1: i32) -> (i32, i32) {
    %c0_i32 = arith.constant 0 : i32
    %c0_i32_0 = arith.constant 0 : i32
    %c0_i32_1 = arith.constant 0 : i32
    return %c0_i32, %c0_i32_0 : i32, i32
  }
  func.func @transform_2(%arg0: i32, %arg1: i32) -> (i32, i32) {
    %c0_i32 = arith.constant 0 : i32
    %c0_i32_0 = arith.constant 0 : i32
    return %arg0, %c0_i32 : i32, i32
  }
  func.func @transform_3(%arg0: i32, %arg1: i32) -> (i32, i32, i32) {
    %c0_i32 = arith.constant 0 : i32
    %c0_i32_0 = arith.constant 0 : i32
    return %arg0, %arg1, %c0_i32 : i32, i32, i32
  }
}

</mosaic_0001>

<llo_original>
// kernel: tpu_custom_call.1
$region0: #{tpu_custom_call.1}
  #allocation0 [shape = 'u32[]', space=smem, size = 0x4, offset = 0x4, fixed_abs, tag = 'smem constant byte address 0x4 - core index']
  #allocation1 [shape = 'u32[144,128]{1,0:T(1,128)}', space=vmem, size = 0x12000, scoped, tag = 'internal scratch']
  #allocation2 [shape = 'f32[8,128]{1,0:T(8,128)}', space=vmem, size = 0x1000, scoped, tag = 'scratch operand']
  #allocation3 [shape = 'f32[8,128]{1,0:T(8,128)}', space=vmem, size = 0x1000, scoped, tag = 'scratch operand']
  %s0 = inlined_call_operand.hbm [shape: f32[8,8,512], index: 0, kind: input, shape index: {}]
  %s1 = inlined_call_operand.hbm [shape: f32[128,512], index: 1, kind: input, shape index: {}]
  %s2 = inlined_call_operand.vmem [shape: s32[8,1], index: 2, kind: input, shape index: {}]
  %s3 = inlined_call_operand.hbm [shape: f32[8,8,128], index: 3, kind: output, shape index: {}]
  %s4 = sld [smem:[#allocation0]]
  $region34: #{tpu_custom_call.1} parent=0
    _
  %s6 = ssub.s32 1, %s4
  %s7 = scalar_select 0, %s6, %s4
  $region1: #{tpu_custom_call.1} parent=0
    #allocation4 [shape = 'u8[131072]{0}', space=vmem, size = 0x20000, scoped, tag = 'input window, operand 0, single buffered']
    #allocation5 [shape = 's32[1]{0}', space=sflag, size = 0x4, scoped, tag = 'scoped memory for tpu_custom_call.1']
    #allocation6 [shape = 's32[1]{0}', space=sflag, size = 0x4, scoped, tag = 'scoped memory for tpu_custom_call.1']
    #allocation7 [shape = 'u8[262144]{0}', space=vmem, size = 0x40000, scoped, tag = 'input window, operand 1, single buffered']
    #allocation8 [shape = 's32[1]{0}', space=sflag, size = 0x4, scoped, tag = 'scoped memory for tpu_custom_call.1']
    #allocation9 [shape = 'u8[32768]{0}', space=vmem, size = 0x8000, scoped, tag = 'output window, operand 0, single buffered']
    %8 = vsyncpa [#allocation5], 0
    %9 = vsyncpa [#allocation8], 0
    %10 = vsyncpa [#allocation6], 0
    // Predicated region
    $region2: #{tpu_custom_call.1} parent=1 // pred_check
      _
    $region3: #{tpu_custom_call.1} parent=1 // pred_check_branch
      %12 = sbr.rel (0) target = $region5
    $region4: #{tpu_custom_call.1} parent=1 // pred_region
      %s14 = ssub.s32 4096, 4096
      %15 = vsyncadd [#allocation5], %s14
      %s16 = sshll.u32 [#allocation4], 4
      %s17 = int_to_ptr.vmem [resolvable:$true] %s16
      %22 = dma.hbm_to_vmem [thread:$0]  %s0, 4096, %s17, [#allocation5], 512, 512, 32
    $region5: #{tpu_custom_call.1} parent=1 // pred_fallthru
      _
    // Predicated region
    $region6: #{tpu_custom_call.1} parent=1 // pred_check
      _
    $region7: #{tpu_custom_call.1} parent=1 // pred_check_branch
      %24 = sbr.rel (0) target = $region9
    $region8: #{tpu_custom_call.1} parent=1 // pred_region
      %s26 = ssub.s32 8192, 8192
      %27 = vsyncadd [#allocation8], %s26
      %s28 = sshll.u32 [#allocation7], 4
      %s29 = int_to_ptr.vmem [resolvable:$true] %s28
      %34 = dma.hbm_to_vmem [thread:$0]  %s1, 8192, %s29, [#allocation8], 512, 512, 32
    $region9: #{tpu_custom_call.1} parent=1 // pred_fallthru
      _
    // Predicated region
    $region10: #{tpu_custom_call.1} parent=1 // pred_check
      _
    $region11: #{tpu_custom_call.1} parent=1 // pred_check_branch
      %36 = sbr.rel (0) target = $region13
    $region12: #{tpu_custom_call.1} parent=1 // pred_region
      _
    $region13: #{tpu_custom_call.1} parent=1 // pred_fallthru
      _
    // Predicated region
    $region14: #{tpu_custom_call.1} parent=1 // pred_check
      _
    $region15: #{tpu_custom_call.1} parent=1 // pred_check_branch
      %38 = sbr.rel (0) target = $region17
    $region16: #{tpu_custom_call.1} parent=1 // pred_region
      %39 = dma.done [#allocation5], 4096
    $region17: #{tpu_custom_call.1} parent=1 // pred_fallthru
      _
    // Predicated region
    $region18: #{tpu_custom_call.1} parent=1 // pred_check
      _
    $region19: #{tpu_custom_call.1} parent=1 // pred_check_branch
      %41 = sbr.rel (0) target = $region21
    $region20: #{tpu_custom_call.1} parent=1 // pred_region
      %42 = dma.done [#allocation8], 8192
    $region21: #{tpu_custom_call.1} parent=1 // pred_fallthru
      _
    %p43 = scmp.eq.s32.totalorder 0, 0
    // Predicated region
    $region22: #{tpu_custom_call.1} parent=1 // pred_check
      %p44 = pneg %p43
    $region23: #{tpu_custom_call.1} parent=1 // pred_check_branch
      %46 = sbr.rel (%p44) target = $region25
    $region24: #{tpu_custom_call.1} parent=1 // pred_region
      %47 = vst [vmem:[#allocation2] sm:$0xff] 0.0
      %48 = vst [vmem:[#allocation3] sm:$0xff] 0.0
    $region25: #{tpu_custom_call.1} parent=1 // pred_fallthru
      _
    %v49 = vld [vmem:[%s2] sm:$0xff]
    %s50 = smul.u32 0, 8
    %v51 = vld [vmem:[#allocation2] sm:$0xff]
    %v52 = vld [vmem:[#allocation3] sm:$0xff]
    %v53 = vld [vmem:[#allocation4] sm:$0xff]
    %v54 = vld [vmem:[#allocation4 + $0x8] sm:$0xff]
    %v55 = vld [vmem:[#allocation4 + $0x10] sm:$0xff]
    %v56 = vld [vmem:[#allocation4 + $0x18] sm:$0xff]
    %v57 = vld [vmem:[#allocation7] sm:$0xff]
    %v58 = vld [vmem:[#allocation7 + $0x8] sm:$0xff]
    %v59 = vld [vmem:[#allocation7 + $0x10] sm:$0xff]
    %v60 = vld [vmem:[#allocation7 + $0x18] sm:$0xff]
    %v61 = vld [vmem:[#allocation7 + $0x20] sm:$0xff]
    %v62 = vld [vmem:[#allocation7 + $0x28] sm:$0xff]
    %v63 = vld [vmem:[#allocation7 + $0x30] sm:$0xff]
    %v64 = vld [vmem:[#allocation7 + $0x38] sm:$0xff]
    %v65 = vld [vmem:[#allocation7 + $0x40] sm:$0xff]
    %v66 = vld [vmem:[#allocation7 + $0x48] sm:$0xff]
    %v67 = vld [vmem:[#allocation7 + $0x50] sm:$0xff]
    %v68 = vld [vmem:[#allocation7 + $0x58] sm:$0xff]
    %v69 = vld [vmem:[#allocation7 + $0x60] sm:$0xff]
    %v70 = vld [vmem:[#allocation7 + $0x68] sm:$0xff]
    %v71 = vld [vmem:[#allocation7 + $0x70] sm:$0xff]
    %v72 = vld [vmem:[#allocation7 + $0x78] sm:$0xff]
    %v73 = vld [vmem:[#allocation7 + $0x80] sm:$0xff]
    %v74 = vld [vmem:[#allocation7 + $0x88] sm:$0xff]
    %v75 = vld [vmem:[#allocation7 + $0x90] sm:$0xff]
    %v76 = vld [vmem:[#allocation7 + $0x98] sm:$0xff]
    %v77 = vld [vmem:[#allocation7 + $0xa0] sm:$0xff]
    %v78 = vld [vmem:[#allocation7 + $0xa8] sm:$0xff]
    %v79 = vld [vmem:[#allocation7 + $0xb0] sm:$0xff]
    %v80 = vld [vmem:[#allocation7 + $0xb8] sm:$0xff]
    %v81 = vld [vmem:[#allocation7 + $0xc0] sm:$0xff]
    %v82 = vld [vmem:[#allocation7 + $0xc8] sm:$0xff]
    %v83 = vld [vmem:[#allocation7 + $0xd0] sm:$0xff]
    %v84 = vld [vmem:[#allocation7 + $0xd8] sm:$0xff]
    %v85 = vld [vmem:[#allocation7 + $0xe0] sm:$0xff]
    %v86 = vld [vmem:[#allocation7 + $0xe8] sm:$0xff]
    %v87 = vld [vmem:[#allocation7 + $0xf0] sm:$0xff]
    %v88 = vld [vmem:[#allocation7 + $0xf8] sm:$0xff]
    %v89 = vld [vmem:[#allocation7 + $0x100] sm:$0xff]
    %v90 = vld [vmem:[#allocation7 + $0x108] sm:$0xff]
    %v91 = vld [vmem:[#allocation7 + $0x110] sm:$0xff]
    %v92 = vld [vmem:[#allocation7 + $0x118] sm:$0xff]
    %v93 = vld [vmem:[#allocation7 + $0x120] sm:$0xff]
    %v94 = vld [vmem:[#allocation7 + $0x128] sm:$0xff]
    %v95 = vld [vmem:[#allocation7 + $0x130] sm:$0xff]
    %v96 = vld [vmem:[#allocation7 + $0x138] sm:$0xff]
    %v97 = vld [vmem:[#allocation7 + $0x140] sm:$0xff]
    %v98 = vld [vmem:[#allocation7 + $0x148] sm:$0xff]
    %v99 = vld [vmem:[#allocation7 + $0x150] sm:$0xff]
    %v100 = vld [vmem:[#allocation7 + $0x158] sm:$0xff]
    %v101 = vld [vmem:[#allocation7 + $0x160] sm:$0xff]
    %v102 = vld [vmem:[#allocation7 + $0x168] sm:$0xff]
    %v103 = vld [vmem:[#allocation7 + $0x170] sm:$0xff]
    %v104 = vld [vmem:[#allocation7 + $0x178] sm:$0xff]
    %v105 = vld [vmem:[#allocation7 + $0x180] sm:$0xff]
    %v106 = vld [vmem:[#allocation7 + $0x188] sm:$0xff]
    %v107 = vld [vmem:[#allocation7 + $0x190] sm:$0xff]
    %v108 = vld [vmem:[#allocation7 + $0x198] sm:$0xff]
    %v109 = vld [vmem:[#allocation7 + $0x1a0] sm:$0xff]
    %v110 = vld [vmem:[#allocation7 + $0x1a8] sm:$0xff]
    %v111 = vld [vmem:[#allocation7 + $0x1b0] sm:$0xff]
    %v112 = vld [vmem:[#allocation7 + $0x1b8] sm:$0xff]
    %v113 = vld [vmem:[#allocation7 + $0x1c0] sm:$0xff]
    %v114 = vld [vmem:[#allocation7 + $0x1c8] sm:$0xff]
    %v115 = vld [vmem:[#allocation7 + $0x1d0] sm:$0xff]
    %v116 = vld [vmem:[#allocation7 + $0x1d8] sm:$0xff]
    %v117 = vld [vmem:[#allocation7 + $0x1e0] sm:$0xff]
    %v118 = vld [vmem:[#allocation7 + $0x1e8] sm:$0xff]
    %v119 = vld [vmem:[#allocation7 + $0x1f0] sm:$0xff]
    %v120 = vld [vmem:[#allocation7 + $0x1f8] sm:$0xff]
    %121 = vmatprep.subr.mxu0 %v58
    %122 = vmatpush1.msra.mxu0 %v57
    %123 = vmatprep.subr.mxu0 %v62
    %124 = vmatpush1.msra.mxu0 %v61
    %125 = vmatprep.subr.mxu0 %v66
    %126 = vmatpush1.msra.mxu0 %v65
    %127 = vmatprep.subr.mxu0 %v70
    %128 = vmatpush1.msra.mxu0 %v69
    %129 = vmatprep.subr.mxu0 %v74
    %130 = vmatpush1.msra.mxu0 %v73
    %131 = vmatprep.subr.mxu0 %v78
    %132 = vmatpush1.msra.mxu0 %v77
    %133 = vmatprep.subr.mxu0 %v82
    %134 = vmatpush1.msra.mxu0 %v81
    %135 = vmatprep.subr.mxu0 %v86
    %136 = vmatpush1.msra.mxu0 %v85
    %137 = vmatprep.subr.mxu0 %v90
    %138 = vmatpush1.msra.mxu0 %v89
    %139 = vmatprep.subr.mxu0 %v94
    %140 = vmatpush1.msra.mxu0 %v93
    %141 = vmatprep.subr.mxu0 %v98
    %142 = vmatpush1.msra.mxu0 %v97
    %143 = vmatprep.subr.mxu0 %v102
    %144 = vmatpush1.msra.mxu0 %v101
    %145 = vmatprep.subr.mxu0 %v106
    %146 = vmatpush1.msra.mxu0 %v105
    %147 = vmatprep.subr.mxu0 %v110
    %148 = vmatpush1.msra.mxu0 %v109
    %149 = vmatprep.subr.mxu0 %v114
    %150 = vmatpush1.msra.mxu0 %v113
    %151 = vmatprep.subr.mxu0 %v118
    %152 = vmatpush1.msra.mxu0 %v117
    %153 = vmatprep.subr.mxu0 0.0
    %154 = vmatpush1.msra.mxu0 0.0
    %155 = vmatprep.subr.mxu0 0.0
    %156 = vmatpush1.msra.mxu0 0.0
    %157 = vmatprep.subr.mxu0 0.0
    %158 = vmatpush1.msra.mxu0 0.0
    %159 = vmatprep.subr.mxu0 0.0
    %160 = vmatpush1.msra.mxu0 0.0
    %161 = vmatprep.subr.mxu0 0.0
    %162 = vmatpush1.msra.mxu0 0.0
    %163 = vmatprep.subr.mxu0 0.0
    %164 = vmatpush1.msra.mxu0 0.0
    %165 = vmatprep.subr.mxu0 0.0
    %166 = vmatpush1.msra.mxu0 0.0
    %167 = vmatprep.subr.mxu0 0.0
    %168 = vmatpush1.msra.mxu0 0.0
    %169 = vmatprep.subr.mxu0 0.0
    %170 = vmatpush1.msra.mxu0 0.0
    %171 = vmatprep.subr.mxu0 0.0
    %172 = vmatpush1.msra.mxu0 0.0
    %173 = vmatprep.subr.mxu0 0.0
    %174 = vmatpush1.msra.mxu0 0.0
    %175 = vmatprep.subr.mxu0 0.0
    %176 = vmatpush1.msra.mxu0 0.0
    %177 = vmatprep.subr.mxu0 0.0
    %178 = vmatpush1.msra.mxu0 0.0
    %179 = vmatprep.subr.mxu0 0.0
    %180 = vmatpush1.msra.mxu0 0.0
    %181 = vmatprep.subr.mxu0 0.0
    %182 = vmatpush1.msra.mxu0 0.0
    %183 = vmatprep.subr.mxu0 0.0
    %184 = vmatpush1.msra.mxu0 0.0
    %185 = vmatprep.mubr.f32.mxu0 0.0
    %186 = vmatmul.mubr.f32.gmra.mrb[0].mxu0 %v51
    %v187 = vpop.f32.mrb[0].mxu0
    %v188 = vadd.f32 0.0, %v187
    %v189 = vpop.f32.mrb[0].mxu0
    %v190 = vadd.f32 0.0, %v189
    %191 = vdwg.mxu0
    %192 = vmatprep.subr.mxu0 %v60
    %193 = vmatpush1.msra.mxu0 %v59
    %194 = vmatprep.subr.mxu0 %v64
    %195 = vmatpush1.msra.mxu0 %v63
    %196 = vmatprep.subr.mxu0 %v68
    %197 = vmatpush1.msra.mxu0 %v67
    %198 = vmatprep.subr.mxu0 %v72
    %199 = vmatpush1.msra.mxu0 %v71
    %200 = vmatprep.subr.mxu0 %v76
    %201 = vmatpush1.msra.mxu0 %v75
    %202 = vmatprep.subr.mxu0 %v80
    %203 = vmatpush1.msra.mxu0 %v79
    %204 = vmatprep.subr.mxu0 %v84
    %205 = vmatpush1.msra.mxu0 %v83
    %206 = vmatprep.subr.mxu0 %v88
    %207 = vmatpush1.msra.mxu0 %v87
    %208 = vmatprep.subr.mxu0 %v92
    %209 = vmatpush1.msra.mxu0 %v91
    %210 = vmatprep.subr.mxu0 %v96
    %211 = vmatpush1.msra.mxu0 %v95
    %212 = vmatprep.subr.mxu0 %v100
    %213 = vmatpush1.msra.mxu0 %v99
    %214 = vmatprep.subr.mxu0 %v104
    %215 = vmatpush1.msra.mxu0 %v103
    %216 = vmatprep.subr.mxu0 %v108
    %217 = vmatpush1.msra.mxu0 %v107
    %218 = vmatprep.subr.mxu0 %v112
    %219 = vmatpush1.msra.mxu0 %v111
    %220 = vmatprep.subr.mxu0 %v116
    %221 = vmatpush1.msra.mxu0 %v115
    %222 = vmatprep.subr.mxu0 %v120
    %223 = vmatpush1.msra.mxu0 %v119
    %224 = vmatprep.subr.mxu0 0.0
    %225 = vmatpush1.msra.mxu0 0.0
    %226 = vmatprep.subr.mxu0 0.0
    %227 = vmatpush1.msra.mxu0 0.0
    %228 = vmatprep.subr.mxu0 0.0
    %229 = vmatpush1.msra.mxu0 0.0
    %230 = vmatprep.subr.mxu0 0.0
    %231 = vmatpush1.msra.mxu0 0.0
    %232 = vmatprep.subr.mxu0 0.0
    %233 = vmatpush1.msra.mxu0 0.0
    %234 = vmatprep.subr.mxu0 0.0
    %235 = vmatpush1.msra.mxu0 0.0
    %236 = vmatprep.subr.mxu0 0.0
    %237 = vmatpush1.msra.mxu0 0.0
    %238 = vmatprep.subr.mxu0 0.0
    %239 = vmatpush1.msra.mxu0 0.0
    %240 = vmatprep.subr.mxu0 0.0
    %241 = vmatpush1.msra.mxu0 0.0
    %242 = vmatprep.subr.mxu0 0.0
    %243 = vmatpush1.msra.mxu0 0.0
    %244 = vmatprep.subr.mxu0 0.0
    %245 = vmatpush1.msra.mxu0 0.0
    %246 = vmatprep.subr.mxu0 0.0
    %247 = vmatpush1.msra.mxu0 0.0
    %248 = vmatprep.subr.mxu0 0.0
    %249 = vmatpush1.msra.mxu0 0.0
    %250 = vmatprep.subr.mxu0 0.0
    %251 = vmatpush1.msra.mxu0 0.0
    %252 = vmatprep.subr.mxu0 0.0
    %253 = vmatpush1.msra.mxu0 0.0
    %254 = vmatprep.subr.mxu0 0.0
    %255 = vmatpush1.msra.mxu0 0.0
    %256 = vmatprep.mubr.f32.mxu0 0.0
    %257 = vmatmul.mubr.f32.gmra.mrb[0].mxu0 %v51
    %v258 = vpop.f32.mrb[0].mxu0
    %v259 = vadd.f32 0.0, %v258
    %v260 = vpop.f32.mrb[0].mxu0
    %v261 = vadd.f32 0.0, %v260
    %262 = vdwg.mxu0
    %v263 = vadd.f32 %v53, %v188
    %v264 = vadd.f32 %v54, %v190
    %v265 = vadd.f32 %v55, %v259
    %v266 = vadd.f32 %v56, %v261
    %v267 = vxor.u32 %v263, 2147483648
    %v268 = vmul.f32 %v267, 1.442695
    %v269 = vpow.pop %v268
    %v270 = vadd.f32 %v269, 1.0
    %v271 = vrcp.pop %v270
    %v272 = vmul.f32 1.0, %v271
    %v273 = vxor.u32 %v264, 2147483648
    %v274 = vmul.f32 %v273, 1.442695
    %v275 = vpow.pop %v274
    %v276 = vadd.f32 %v275, 1.0
    %v277 = vrcp.pop %v276
    %v278 = vmul.f32 1.0, %v277
    %v279 = vtanh.pop %v265
    %v280 = vxor.u32 %v266, 2147483648
    %v281 = vmul.f32 %v280, 1.442695
    %v282 = vpow.pop %v281
    %v283 = vadd.f32 %v282, 1.0
    %v284 = vrcp.pop %v283
    %v285 = vmul.f32 1.0, %v284
    %v286 = vmul.f32 %v278, %v52
    %v287 = vmul.f32 %v272, %v279
    %v288 = vadd.f32 %v286, %v287
    %v289 = vtanh.pop %v288
    %v290 = vmul.f32 %v285, %v289
    %v291 = vstv %s50
    %vm292 = vcmp.lt.s32.totalorder %v291, %v49
    %v293 = vsel %vm292, 1, 0
    %294 = vset.pattern.permute.xlu0 0
    %295 = vperm.xlu0 %294, %v293
    %v296 = vpop.permute.xlu0 %295
    %vm297 = vcmp.eq.s32.totalorder %v296, 1
    %v298 = vsel %vm297, %v290, 0.0
    %v300 = vcombine.high %v298, %v298
    %v302 = vunpack.c.l.s4 1966171168
    %v303 = vunpack.c.0.s8 %v302
    %v304 = vlaneseq
    %v305 = vshrl.u32 %v304, 7
    %v306 = vsub.s32 %v303, %v305
    %v307 = vrot.slane %v298, %v306
    %v309 = vunpack.c.l.s4 1966171168
    %v310 = vunpack.c.0.s8 %v309
    %v311 = vlaneseq
    %v312 = vshrl.u32 %v311, 7
    %v313 = vsub.s32 %v310, %v312
    %v314 = vrot.slane %v300, %v313
    %v315 = vcombine.high %v307, %v307
    %v316 = vcombine.high %v314, %v314
    %v318 = vunpack.c.l.s4 1966171168
    %v319 = vunpack.c.0.s8 %v318
    %v320 = vlaneseq
    %v321 = vshrl.u32 %v320, 7
    %v322 = vsub.s32 %v319, %v321
    %v323 = vrot.slane %v307, %v322
    %v325 = vunpack.c.l.s4 1966171168
    %v326 = vunpack.c.0.s8 %v325
    %v327 = vlaneseq
    %v328 = vshrl.u32 %v327, 7
    %v329 = vsub.s32 %v326, %v328
    %v330 = vrot.slane %v314, %v329
    %v332 = vunpack.c.l.s4 1966171168
    %v333 = vunpack.c.0.s8 %v332
    %v334 = vlaneseq
    %v335 = vshrl.u32 %v334, 7
    %v336 = vsub.s32 %v333, %v335
    %v337 = vrot.slane %v315, %v336
    %v339 = vunpack.c.l.s4 1966171168
    %v340 = vunpack.c.0.s8 %v339
    %v341 = vlaneseq
    %v342 = vshrl.u32 %v341, 7
    %v343 = vsub.s32 %v340, %v342
    %v344 = vrot.slane %v316, %v343
    %v345 = vcombine.high %v323, %v323
    %v346 = vcombine.high %v330, %v330
    %v347 = vcombine.high %v337, %v337
    %v348 = vcombine.high %v344, %v344
    %357 = vst [vmem:[#allocation9] sm:$0x1] %v323
    %358 = vst [vmem:[#allocation9 + $0x8] sm:$0x1] %v337
    %359 = vst [vmem:[#allocation9 + $0x10] sm:$0x1] %v345
    %360 = vst [vmem:[#allocation9 + $0x18] sm:$0x1] %v347
    %361 = vst [vmem:[#allocation9 + $0x20] sm:$0x1] %v330
    %362 = vst [vmem:[#allocation9 + $0x28] sm:$0x1] %v344
    %363 = vst [vmem:[#allocation9 + $0x30] sm:$0x1] %v346
    %364 = vst [vmem:[#allocation9 + $0x38] sm:$0x1] %v348
    %s365 = scalar_lea.vmem [#allocation4], 32
    %v366 = vld [vmem:[%s365] sm:$0xff]
    %v367 = vld [vmem:[%s365 + $0x8] sm:$0xff]
    %v368 = vld [vmem:[%s365 + $0x10] sm:$0xff]
    %v369 = vld [vmem:[%s365 + $0x18] sm:$0xff]
    %v370 = vld [vmem:[#allocation7] sm:$0xff]
    %v371 = vld [vmem:[#allocation7 + $0x8] sm:$0xff]
    %v372 = vld [vmem:[#allocation7 + $0x10] sm:$0xff]
    %v373 = vld [vmem:[#allocation7 + $0x18] sm:$0xff]
    %v374 = vld [vmem:[#allocation7 + $0x20] sm:$0xff]
    %v375 = vld [vmem:[#allocation7 + $0x28] sm:$0xff]
    %v376 = vld [vmem:[#allocation7 + $0x30] sm:$0xff]
    %v377 = vld [vmem:[#allocation7 + $0x38] sm:$0xff]
    %v378 = vld [vmem:[#allocation7 + $0x40] sm:$0xff]
    %v379 = vld [vmem:[#allocation7 + $0x48] sm:$0xff]
    %v380 = vld [vmem:[#allocation7 + $0x50] sm:$0xff]
    %v381 = vld [vmem:[#allocation7 + $0x58] sm:$0xff]
    %v382 = vld [vmem:[#allocation7 + $0x60] sm:$0xff]
    %v383 = vld [vmem:[#allocation7 + $0x68] sm:$0xff]
    %v384 = vld [vmem:[#allocation7 + $0x70] sm:$0xff]
    %v385 = vld [vmem:[#allocation7 + $0x78] sm:$0xff]
    %v386 = vld [vmem:[#allocation7 + $0x80] sm:$0xff]
    %v387 = vld [vmem:[#allocation7 + $0x88] sm:$0xff]
    %v388 = vld [vmem:[#allocation7 + $0x90] sm:$0xff]
    %v389 = vld [vmem:[#allocation7 + $0x98] sm:$0xff]
    %v390 = vld [vmem:[#allocation7 + $0xa0] sm:$0xff]
    %v391 = vld [vmem:[#allocation7 + $0xa8] sm:$0xff]
    %v392 = vld [vmem:[#allocation7 + $0xb0] sm:$0xff]
    %v393 = vld [vmem:[#allocation7 + $0xb8] sm:$0xff]
    %v394 = vld [vmem:[#allocation7 + $0xc0] sm:$0xff]
    %v395 = vld [vmem:[#allocation7 + $0xc8] sm:$0xff]
    %v396 = vld [vmem:[#allocation7 + $0xd0] sm:$0xff]
    %v397 = vld [vmem:[#allocation7 + $0xd8] sm:$0xff]
    %v398 = vld [vmem:[#allocation7 + $0xe0] sm:$0xff]
    %v399 = vld [vmem:[#allocation7 + $0xe8] sm:$0xff]
    %v400 = vld [vmem:[#allocation7 + $0xf0] sm:$0xff]
    %v401 = vld [vmem:[#allocation7 + $0xf8] sm:$0xff]
    %v402 = vld [vmem:[#allocation7 + $0x100] sm:$0xff]
    %v403 = vld [vmem:[#allocation7 + $0x108] sm:$0xff]
    %v404 = vld [vmem:[#allocation7 + $0x110] sm:$0xff]
    %v405 = vld [vmem:[#allocation7 + $0x118] sm:$0xff]
    %v406 = vld [vmem:[#allocation7 + $0x120] sm:$0xff]
    %v407 = vld [vmem:[#allocation7 + $0x128] sm:$0xff]
    %v408 = vld [vmem:[#allocation7 + $0x130] sm:$0xff]
    %v409 = vld [vmem:[#allocation7 + $0x138] sm:$0xff]
    %v410 = vld [vmem:[#allocation7 + $0x140] sm:$0xff]
    %v411 = vld [vmem:[#allocation7 + $0x148] sm:$0xff]
    %v412 = vld [vmem:[#allocation7 + $0x150] sm:$0xff]
    %v413 = vld [vmem:[#allocation7 + $0x158] sm:$0xff]
    %v414 = vld [vmem:[#allocation7 + $0x160] sm:$0xff]
    %v415 = vld [vmem:[#allocation7 + $0x168] sm:$0xff]
    %v416 = vld [vmem:[#allocation7 + $0x170] sm:$0xff]
    %v417 = vld [vmem:[#allocation7 + $0x178] sm:$0xff]
    %v418 = vld [vmem:[#allocation7 + $0x180] sm:$0xff]
    %v419 = vld [vmem:[#allocation7 + $0x188] sm:$0xff]
    %v420 = vld [vmem:[#allocation7 + $0x190] sm:$0xff]
    %v421 = vld [vmem:[#allocation7 + $0x198] sm:$0xff]
    %v422 = vld [vmem:[#allocation7 + $0x1a0] sm:$0xff]
    %v423 = vld [vmem:[#allocation7 + $0x1a8] sm:$0xff]
    %v424 = vld [vmem:[#allocation7 + $0x1b0] sm:$0xff]
    %v425 = vld [vmem:[#allocation7 + $0x1b8] sm:$0xff]
    %v426 = vld [vmem:[#allocation7 + $0x1c0] sm:$0xff]
    %v427 = vld [vmem:[#allocation7 + $0x1c8] sm:$0xff]
    %v428 = vld [vmem:[#allocation7 + $0x1d0] sm:$0xff]
    %v429 = vld [vmem:[#allocation7 + $0x1d8] sm:$0xff]
    %v430 = vld [vmem:[#allocation7 + $0x1e0] sm:$0xff]
    %v431 = vld [vmem:[#allocation7 + $0x1e8] sm:$0xff]
    %v432 = vld [vmem:[#allocation7 + $0x1f0] sm:$0xff]
    %v433 = vld [vmem:[#allocation7 + $0x1f8] sm:$0xff]
    %434 = vmatprep.subr.mxu0 %v371
    %435 = vmatpush1.msra.mxu0 %v370
    %436 = vmatprep.subr.mxu0 %v375
    %437 = vmatpush1.msra.mxu0 %v374
    %438 = vmatprep.subr.mxu0 %v379
    %439 = vmatpush1.msra.mxu0 %v378
    %440 = vmatprep.subr.mxu0 %v383
    %441 = vmatpush1.msra.mxu0 %v382
    %442 = vmatprep.subr.mxu0 %v387
    %443 = vmatpush1.msra.mxu0 %v386
    %444 = vmatprep.subr.mxu0 %v391
    %445 = vmatpush1.msra.mxu0 %v390
    %446 = vmatprep.subr.mxu0 %v395
    %447 = vmatpush1.msra.mxu0 %v394
    %448 = vmatprep.subr.mxu0 %v399
    %449 = vmatpush1.msra.mxu0 %v398
    %450 = vmatprep.subr.mxu0 %v403
    %451 = vmatpush1.msra.mxu0 %v402
    %452 = vmatprep.subr.mxu0 %v407
    %453 = vmatpush1.msra.mxu0 %v406
    %454 = vmatprep.subr.mxu0 %v411
    %455 = vmatpush1.msra.mxu0 %v410
    %456 = vmatprep.subr.mxu0 %v415
    %457 = vmatpush1.msra.mxu0 %v414
    %458 = vmatprep.subr.mxu0 %v419
    %459 = vmatpush1.msra.mxu0 %v418
    %460 = vmatprep.subr.mxu0 %v423
    %461 = vmatpush1.msra.mxu0 %v422
    %462 = vmatprep.subr.mxu0 %v427
    %463 = vmatpush1.msra.mxu0 %v426
    %464 = vmatprep.subr.mxu0 %v431
    %465 = vmatpush1.msra.mxu0 %v430
    %466 = vmatprep.subr.mxu0 0.0
    %467 = vmatpush1.msra.mxu0 0.0
    %468 = vmatprep.subr.mxu0 0.0
    %469 = vmatpush1.msra.mxu0 0.0
    %470 = vmatprep.subr.mxu0 0.0
    %471 = vmatpush1.msra.mxu0 0.0
    %472 = vmatprep.subr.mxu0 0.0
    %473 = vmatpush1.msra.mxu0 0.0
    %474 = vmatprep.subr.mxu0 0.0
    %475 = vmatpush1.msra.mxu0 0.0
    %476 = vmatprep.subr.mxu0 0.0
    %477 = vmatpush1.msra.mxu0 0.0
    %478 = vmatprep.subr.mxu0 0.0
    %479 = vmatpush1.msra.mxu0 0.0
    %480 = vmatprep.subr.mxu0 0.0
    %481 = vmatpush1.msra.mxu0 0.0
    %482 = vmatprep.subr.mxu0 0.0
    %483 = vmatpush1.msra.mxu0 0.0
    %484 = vmatprep.subr.mxu0 0.0
    %485 = vmatpush1.msra.mxu0 0.0
    %486 = vmatprep.subr.mxu0 0.0
    %487 = vmatpush1.msra.mxu0 0.0
    %488 = vmatprep.subr.mxu0 0.0
    %489 = vmatpush1.msra.mxu0 0.0
    %490 = vmatprep.subr.mxu0 0.0
    %491 = vmatpush1.msra.mxu0 0.0
    %492 = vmatprep.subr.mxu0 0.0
    %493 = vmatpush1.msra.mxu0 0.0
    %494 = vmatprep.subr.mxu0 0.0
    %495 = vmatpush1.msra.mxu0 0.0
    %496 = vmatprep.subr.mxu0 0.0
    %497 = vmatpush1.msra.mxu0 0.0
    %498 = vmatprep.mubr.f32.mxu0 0.0
    %499 = vmatmul.mubr.f32.gmra.mrb[0].mxu0 %v290
    %v500 = vpop.f32.mrb[0].mxu0
    %v501 = vadd.f32 0.0, %v500
    %v502 = vpop.f32.mrb[0].mxu0
    %v503 = vadd.f32 0.0, %v502
    %504 = vdwg.mxu0
    %505 = vmatprep.subr.mxu0 %v373
    %506 = vmatpush1.msra.mxu0 %v372
    %507 = vmatprep.subr.mxu0 %v377
    %508 = vmatpush1.msra.mxu0 %v376
    %509 = vmatprep.subr.mxu0 %v381
    %510 = vmatpush1.msra.mxu0 %v380
    %511 = vmatprep.subr.mxu0 %v385
    %512 = vmatpush1.msra.mxu0 %v384
    %513 = vmatprep.subr.mxu0 %v389
    %514 = vmatpush1.msra.mxu0 %v388
    %515 = vmatprep.subr.mxu0 %v393
    %516 = vmatpush1.msra.mxu0 %v392
    %517 = vmatprep.subr.mxu0 %v397
    %518 = vmatpush1.msra.mxu0 %v396
    %519 = vmatprep.subr.mxu0 %v401
    %520 = vmatpush1.msra.mxu0 %v400
    %521 = vmatprep.subr.mxu0 %v405
    %522 = vmatpush1.msra.mxu0 %v404
    %523 = vmatprep.subr.mxu0 %v409
    %524 = vmatpush1.msra.mxu0 %v408
    %525 = vmatprep.subr.mxu0 %v413
    %526 = vmatpush1.msra.mxu0 %v412
    %527 = vmatprep.subr.mxu0 %v417
    %528 = vmatpush1.msra.mxu0 %v416
    %529 = vmatprep.subr.mxu0 %v421
    %530 = vmatpush1.msra.mxu0 %v420
    %531 = vmatprep.subr.mxu0 %v425
    %532 = vmatpush1.msra.mxu0 %v424
    %533 = vmatprep.subr.mxu0 %v429
    %534 = vmatpush1.msra.mxu0 %v428
    %535 = vmatprep.subr.mxu0 %v433
    %536 = vmatpush1.msra.mxu0 %v432
    %537 = vmatprep.subr.mxu0 0.0
    %538 = vmatpush1.msra.mxu0 0.0
    %539 = vmatprep.subr.mxu0 0.0
    %540 = vmatpush1.msra.mxu0 0.0
    %541 = vmatprep.subr.mxu0 0.0
    %542 = vmatpush1.msra.mxu0 0.0
    %543 = vmatprep.subr.mxu0 0.0
    %544 = vmatpush1.msra.mxu0 0.0
    %545 = vmatprep.subr.mxu0 0.0
    %546 = vmatpush1.msra.mxu0 0.0
    %547 = vmatprep.subr.mxu0 0.0
    %548 = vmatpush1.msra.mxu0 0.0
    %549 = vmatprep.subr.mxu0 0.0
    %550 = vmatpush1.msra.mxu0 0.0
    %551 = vmatprep.subr.mxu0 0.0
    %552 = vmatpush1.msra.mxu0 0.0
    %553 = vmatprep.subr.mxu0 0.0
    %554 = vmatpush1.msra.mxu0 0.0
    %555 = vmatprep.subr.mxu0 0.0
    %556 = vmatpush1.msra.mxu0 0.0
    %557 = vmatprep.subr.mxu0 0.0
    %558 = vmatpush1.msra.mxu0 0.0
    %559 = vmatprep.subr.mxu0 0.0
    %560 = vmatpush1.msra.mxu0 0.0
    %561 = vmatprep.subr.mxu0 0.0
    %562 = vmatpush1.msra.mxu0 0.0
    %563 = vmatprep.subr.mxu0 0.0
    %564 = vmatpush1.msra.mxu0 0.0
    %565 = vmatprep.subr.mxu0 0.0
    %566 = vmatpush1.msra.mxu0 0.0
    %567 = vmatprep.subr.mxu0 0.0
    %568 = vmatpush1.msra.mxu0 0.0
    %569 = vmatprep.mubr.f32.mxu0 0.0
    %570 = vmatmul.mubr.f32.gmra.mrb[0].mxu0 %v290
    %v571 = vpop.f32.mrb[0].mxu0
    %v572 = vadd.f32 0.0, %v571
    %v573 = vpop.f32.mrb[0].mxu0
    %v574 = vadd.f32 0.0, %v573
    %575 = vdwg.mxu0
    %v576 = vadd.f32 %v366, %v501
    %v577 = vadd.f32 %v367, %v503
    %v578 = vadd.f32 %v368, %v572
    %v579 = vadd.f32 %v369, %v574
    %v580 = vxor.u32 %v576, 2147483648
    %v581 = vmul.f32 %v580, 1.442695
    %v582 = vpow.pop %v581
    %v583 = vadd.f32 %v582, 1.0
    %v584 = vrcp.pop %v583
    %v585 = vmul.f32 1.0, %v584
    %v586 = vxor.u32 %v577, 2147483648
    %v587 = vmul.f32 %v586, 1.442695
    %v588 = vpow.pop %v587
    %v589 = vadd.f32 %v588, 1.0
    %v590 = vrcp.pop %v589
    %v591 = vmul.f32 1.0, %v590
    %v592 = vtanh.pop %v578
    %v593 = vxor.u32 %v579, 2147483648
    %v594 = vmul.f32 %v593, 1.442695
    %v595 = vpow.pop %v594
    %v596 = vadd.f32 %v595, 1.0
    %v597 = vrcp.pop %v596
    %v598 = vmul.f32 1.0, %v597
    %v599 = vmul.f32 %v591, %v288
    %v600 = vmul.f32 %v585, %v592
    %v601 = vadd.f32 %v599, %v600
    %v602 = vtanh.pop %v601
    %v603 = vmul.f32 %v598, %v602
    %s604 = sadd.s32 %s50, 1
    %v605 = vstv %s604
    %vm606 = vcmp.lt.s32.totalorder %v605, %v49
    %v607 = vsel %vm606, 1, 0
    %608 = vset.pattern.permute.xlu0 0
    %609 = vperm.xlu0 %608, %v607
    %v610 = vpop.permute.xlu0 %609
    %vm611 = vcmp.eq.s32.totalorder %v610, 1
    %v612 = vsel %vm611, %v603, 0.0
    %v614 = vcombine.high %v612, %v612
    %v616 = vunpack.c.l.s4 1966171168
    %v617 = vunpack.c.0.s8 %v616
    %v618 = vlaneseq
    %v619 = vshrl.u32 %v618, 7
    %v620 = vsub.s32 %v617, %v619
    %v621 = vrot.slane %v612, %v620
    %v623 = vunpack.c.l.s4 1966171168
    %v624 = vunpack.c.0.s8 %v623
    %v625 = vlaneseq
    %v626 = vshrl.u32 %v625, 7
    %v627 = vsub.s32 %v624, %v626
    %v628 = vrot.slane %v614, %v627
    %v629 = vcombine.high %v621, %v621
    %v630 = vcombine.high %v628, %v628
    %v632 = vunpack.c.l.s4 1966171168
    %v633 = vunpack.c.0.s8 %v632
    %v634 = vlaneseq
    %v635 = vshrl.u32 %v634, 7
    %v636 = vsub.s32 %v633, %v635
    %v637 = vrot.slane %v621, %v636
    %v639 = vunpack.c.l.s4 1966171168
    %v640 = vunpack.c.0.s8 %v639
    %v641 = vlaneseq
    %v642 = vshrl.u32 %v641, 7
    %v643 = vsub.s32 %v640, %v642
    %v644 = vrot.slane %v628, %v643
    %v646 = vunpack.c.l.s4 1966171168
    %v647 = vunpack.c.0.s8 %v646
    %v648 = vlaneseq
    %v649 = vshrl.u32 %v648, 7
    %v650 = vsub.s32 %v647, %v649
    %v651 = vrot.slane %v629, %v650
    %v653 = vunpack.c.l.s4 1966171168
    %v654 = vunpack.c.0.s8 %v653
    %v655 = vlaneseq
    %v656 = vshrl.u32 %v655, 7
    %v657 = vsub.s32 %v654, %v656
    %v658 = vrot.slane %v630, %v657
    %v659 = vcombine.high %v637, %v637
    %v660 = vcombine.high %v644, %v644
    %v661 = vcombine.high %v651, %v651
    %v662 = vcombine.high %v658, %v658
    %671 = vst [vmem:[#allocation9 + $0x1] sm:$0x1] %v637
    %672 = vst [vmem:[#allocation9 + $0x9] sm:$0x1] %v651
    %673 = vst [vmem:[#allocation9 + $0x11] sm:$0x1] %v659
    %674 = vst [vmem:[#allocation9 + $0x19] sm:$0x1] %v661
    %675 = vst [vmem:[#allocation9 + $0x21] sm:$0x1] %v644
    %676 = vst [vmem:[#allocation9 + $0x29] sm:$0x1] %v658
    %677 = vst [vmem:[#allocation9 + $0x31] sm:$0x1] %v660
    %678 = vst [vmem:[#allocation9 + $0x39] sm:$0x1] %v662
    %s679 = scalar_lea.vmem [#allocation4], 64
    %v680 = vld [vmem:[%s679] sm:$0xff]
    %v681 = vld [vmem:[%s679 + $0x8] sm:$0xff]
    %v682 = vld [vmem:[%s679 + $0x10] sm:$0xff]
    %v683 = vld [vmem:[%s679 + $0x18] sm:$0xff]
    %v684 = vld [vmem:[#allocation7] sm:$0xff]
    %v685 = vld [vmem:[#allocation7 + $0x8] sm:$0xff]
    %v686 = vld [vmem:[#allocation7 + $0x10] sm:$0xff]
    %v687 = vld [vmem:[#allocation7 + $0x18] sm:$0xff]
    %v688 = vld [vmem:[#allocation7 + $0x20] sm:$0xff]
    %v689 = vld [vmem:[#allocation7 + $0x28] sm:$0xff]
    %v690 = vld [vmem:[#allocation7 + $0x30] sm:$0xff]
    %v691 = vld [vmem:[#allocation7 + $0x38] sm:$0xff]
    %v692 = vld [vmem:[#allocation7 + $0x40] sm:$0xff]
    %v693 = vld [vmem:[#allocation7 + $0x48] sm:$0xff]
    %v694 = vld [vmem:[#allocation7 + $0x50] sm:$0xff]
    %v695 = vld [vmem:[#allocation7 + $0x58] sm:$0xff]
    %v696 = vld [vmem:[#allocation7 + $0x60] sm:$0xff]
    %v697 = vld [vmem:[#allocation7 + $0x68] sm:$0xff]
    %v698 = vld [vmem:[#allocation7 + $0x70] sm:$0xff]
    %v699 = vld [vmem:[#allocation7 + $0x78] sm:$0xff]
    %v700 = vld [vmem:[#allocation7 + $0x80] sm:$0xff]
    %v701 = vld [vmem:[#allocation7 + $0x88] sm:$0xff]
    %v702 = vld [vmem:[#allocation7 + $0x90] sm:$0xff]
    %v703 = vld [vmem:[#allocation7 + $0x98] sm:$0xff]
    %v704 = vld [vmem:[#allocation7 + $0xa0] sm:$0xff]
    %v705 = vld [vmem:[#allocation7 + $0xa8] sm:$0xff]
    %v706 = vld [vmem:[#allocation7 + $0xb0] sm:$0xff]
    %v707 = vld [vmem:[#allocation7 + $0xb8] sm:$0xff]
    %v708 = vld [vmem:[#allocation7 + $0xc0] sm:$0xff]
    %v709 = vld [vmem:[#allocation7 + $0xc8] sm:$0xff]
    %v710 = vld [vmem:[#allocation7 + $0xd0] sm:$0xff]
    %v711 = vld [vmem:[#allocation7 + $0xd8] sm:$0xff]
    %v712 = vld [vmem:[#allocation7 + $0xe0] sm:$0xff]
    %v713 = vld [vmem:[#allocation7 + $0xe8] sm:$0xff]
    %v714 = vld [vmem:[#allocation7 + $0xf0] sm:$0xff]
    %v715 = vld [vmem:[#allocation7 + $0xf8] sm:$0xff]
    %v716 = vld [vmem:[#allocation7 + $0x100] sm:$0xff]
    %v717 = vld [vmem:[#allocation7 + $0x108] sm:$0xff]
    %v718 = vld [vmem:[#allocation7 + $0x110] sm:$0xff]
    %v719 = vld [vmem:[#allocation7 + $0x118] sm:$0xff]
    %v720 = vld [vmem:[#allocation7 + $0x120] sm:$0xff]
    %v721 = vld [vmem:[#allocation7 + $0x128] sm:$0xff]
    %v722 = vld [vmem:[#allocation7 + $0x130] sm:$0xff]
    %v723 = vld [vmem:[#allocation7 + $0x138] sm:$0xff]
    %v724 = vld [vmem:[#allocation7 + $0x140] sm:$0xff]
    %v725 = vld [vmem:[#allocation7 + $0x148] sm:$0xff]
    %v726 = vld [vmem:[#allocation7 + $0x150] sm:$0xff]
    %v727 = vld [vmem:[#allocation7 + $0x158] sm:$0xff]
    %v728 = vld [vmem:[#allocation7 + $0x160] sm:$0xff]
    %v729 = vld [vmem:[#allocation7 + $0x168] sm:$0xff]
    %v730 = vld [vmem:[#allocation7 + $0x170] sm:$0xff]
    %v731 = vld [vmem:[#allocation7 + $0x178] sm:$0xff]
    %v732 = vld [vmem:[#allocation7 + $0x180] sm:$0xff]
    %v733 = vld [vmem:[#allocation7 + $0x188] sm:$0xff]
    %v734 = vld [vmem:[#allocation7 + $0x190] sm:$0xff]
    %v735 = vld [vmem:[#allocation7 + $0x198] sm:$0xff]
    %v736 = vld [vmem:[#allocation7 + $0x1a0] sm:$0xff]
    %v737 = vld [vmem:[#allocation7 + $0x1a8] sm:$0xff]
    %v738 = vld [vmem:[#allocation7 + $0x1b0] sm:$0xff]
    %v739 = vld [vmem:[#allocation7 + $0x1b8] sm:$0xff]
    %v740 = vld [vmem:[#allocation7 + $0x1c0] sm:$0xff]
    %v741 = vld [vmem:[#allocation7 + $0x1c8] sm:$0xff]
    %v742 = vld [vmem:[#allocation7 + $0x1d0] sm:$0xff]
    %v743 = vld [vmem:[#allocation7 + $0x1d8] sm:$0xff]
    %v744 = vld [vmem:[#allocation7 + $0x1e0] sm:$0xff]
    %v745 = vld [vmem:[#allocation7 + $0x1e8] sm:$0xff]
    %v746 = vld [vmem:[#allocation7 + $0x1f0] sm:$0xff]
    %v747 = vld [vmem:[#allocation7 + $0x1f8] sm:$0xff]
    %748 = vmatprep.subr.mxu0 %v685
    %749 = vmatpush1.msra.mxu0 %v684
    %750 = vmatprep.subr.mxu0 %v689
    %751 = vmatpush1.msra.mxu0 %v688
    %752 = vmatprep.subr.mxu0 %v693
    %753 = vmatpush1.msra.mxu0 %v692
    %754 = vmatprep.subr.mxu0 %v697
    %755 = vmatpush1.msra.mxu0 %v696
    %756 = vmatprep.subr.mxu0 %v701
    %757 = vmatpush1.msra.mxu0 %v700
    %758 = vmatprep.subr.mxu0 %v705
    %759 = vmatpush1.msra.mxu0 %v704
    %760 = vmatprep.subr.mxu0 %v709
    %761 = vmatpush1.msra.mxu0 %v708
    %762 = vmatprep.subr.mxu0 %v713
    %763 = vmatpush1.msra.mxu0 %v712
    %764 = vmatprep.subr.mxu0 %v717
    %765 = vmatpush1.msra.mxu0 %v716
    %766 = vmatprep.subr.mxu0 %v721
    %767 = vmatpush1.msra.mxu0 %v720
    %768 = vmatprep.subr.mxu0 %v725
    %769 = vmatpush1.msra.mxu0 %v724
    %770 = vmatprep.subr.mxu0 %v729
    %771 = vmatpush1.msra.mxu0 %v728
    %772 = vmatprep.subr.mxu0 %v733
    %773 = vmatpush1.msra.mxu0 %v732
    %774 = vmatprep.subr.mxu0 %v737
    %775 = vmatpush1.msra.mxu0 %v736
    %776 = vmatprep.subr.mxu0 %v741
    %777 = vmatpush1.msra.mxu0 %v740
    %778 = vmatprep.subr.mxu0 %v745
    %779 = vmatpush1.msra.mxu0 %v744
    %780 = vmatprep.subr.mxu0 0.0
    %781 = vmatpush1.msra.mxu0 0.0
    %782 = vmatprep.subr.mxu0 0.0
    %783 = vmatpush1.msra.mxu0 0.0
    %784 = vmatprep.subr.mxu0 0.0
    %785 = vmatpush1.msra.mxu0 0.0
    %786 = vmatprep.subr.mxu0 0.0
    %787 = vmatpush1.msra.mxu0 0.0
    %788 = vmatprep.subr.mxu0 0.0
    %789 = vmatpush1.msra.mxu0 0.0
    %790 = vmatprep.subr.mxu0 0.0
    %791 = vmatpush1.msra.mxu0 0.0
    %792 = vmatprep.subr.mxu0 0.0
    %793 = vmatpush1.msra.mxu0 0.0
    %794 = vmatprep.subr.mxu0 0.0
    %795 = vmatpush1.msra.mxu0 0.0
    %796 = vmatprep.subr.mxu0 0.0
    %797 = vmatpush1.msra.mxu0 0.0
    %798 = vmatprep.subr.mxu0 0.0
    %799 = vmatpush1.msra.mxu0 0.0
    %800 = vmatprep.subr.mxu0 0.0
    %801 = vmatpush1.msra.mxu0 0.0
    %802 = vmatprep.subr.mxu0 0.0
    %803 = vmatpush1.msra.mxu0 0.0
    %804 = vmatprep.subr.mxu0 0.0
    %805 = vmatpush1.msra.mxu0 0.0
    %806 = vmatprep.subr.mxu0 0.0
    %807 = vmatpush1.msra.mxu0 0.0
    %808 = vmatprep.subr.mxu0 0.0
    %809 = vmatpush1.msra.mxu0 0.0
    %810 = vmatprep.subr.mxu0 0.0
    %811 = vmatpush1.msra.mxu0 0.0
    %812 = vmatprep.mubr.f32.mxu0 0.0
    %813 = vmatmul.mubr.f32.gmra.mrb[0].mxu0 %v603
    %v814 = vpop.f32.mrb[0].mxu0
    %v815 = vadd.f32 0.0, %v814
    %v816 = vpop.f32.mrb[0].mxu0
    %v817 = vadd.f32 0.0, %v816
    %818 = vdwg.mxu0
    %819 = vmatprep.subr.mxu0 %v687
    %820 = vmatpush1.msra.mxu0 %v686
    %821 = vmatprep.subr.mxu0 %v691
    %822 = vmatpush1.msra.mxu0 %v690
    %823 = vmatprep.subr.mxu0 %v695
    %824 = vmatpush1.msra.mxu0 %v694
    %825 = vmatprep.subr.mxu0 %v699
    %826 = vmatpush1.msra.mxu0 %v698
    %827 = vmatprep.subr.mxu0 %v703
    %828 = vmatpush1.msra.mxu0 %v702
    %829 = vmatprep.subr.mxu0 %v707
    %830 = vmatpush1.msra.mxu0 %v706
    %831 = vmatprep.subr.mxu0 %v711
    %832 = vmatpush1.msra.mxu0 %v710
    %833 = vmatprep.subr.mxu0 %v715
    %834 = vmatpush1.msra.mxu0 %v714
    %835 = vmatprep.subr.mxu0 %v719
    %836 = vmatpush1.msra.mxu0 %v718
    %837 = vmatprep.subr.mxu0 %v723
    %838 = vmatpush1.msra.mxu0 %v722
    %839 = vmatprep.subr.mxu0 %v727
    %840 = vmatpush1.msra.mxu0 %v726
    %841 = vmatprep.subr.mxu0 %v731
    %842 = vmatpush1.msra.mxu0 %v730
    %843 = vmatprep.subr.mxu0 %v735
    %844 = vmatpush1.msra.mxu0 %v734
    %845 = vmatprep.subr.mxu0 %v739
    %846 = vmatpush1.msra.mxu0 %v738
    %847 = vmatprep.subr.mxu0 %v743
    %848 = vmatpush1.msra.mxu0 %v742
    %849 = vmatprep.subr.mxu0 %v747
    %850 = vmatpush1.msra.mxu0 %v746
    %851 = vmatprep.subr.mxu0 0.0
    %852 = vmatpush1.msra.mxu0 0.0
    %853 = vmatprep.subr.mxu0 0.0
    %854 = vmatpush1.msra.mxu0 0.0
    %855 = vmatprep.subr.mxu0 0.0
    %856 = vmatpush1.msra.mxu0 0.0
    %857 = vmatprep.subr.mxu0 0.0
    %858 = vmatpush1.msra.mxu0 0.0
    %859 = vmatprep.subr.mxu0 0.0
    %860 = vmatpush1.msra.mxu0 0.0
    %861 = vmatprep.subr.mxu0 0.0
    %862 = vmatpush1.msra.mxu0 0.0
    %863 = vmatprep.subr.mxu0 0.0
    %864 = vmatpush1.msra.mxu0 0.0
    %865 = vmatprep.subr.mxu0 0.0
    %866 = vmatpush1.msra.mxu0 0.0
    %867 = vmatprep.subr.mxu0 0.0
    %868 = vmatpush1.msra.mxu0 0.0
    %869 = vmatprep.subr.mxu0 0.0
    %870 = vmatpush1.msra.mxu0 0.0
    %871 = vmatprep.subr.mxu0 0.0
    %872 = vmatpush1.msra.mxu0 0.0
    %873 = vmatprep.subr.mxu0 0.0
    %874 = vmatpush1.msra.mxu0 0.0
    %875 = vmatprep.subr.mxu0 0.0
    %876 = vmatpush1.msra.mxu0 0.0
    %877 = vmatprep.subr.mxu0 0.0
    %878 = vmatpush1.msra.mxu0 0.0
    %879 = vmatprep.subr.mxu0 0.0
    %880 = vmatpush1.msra.mxu0 0.0
    %881 = vmatprep.subr.mxu0 0.0
    %882 = vmatpush1.msra.mxu0 0.0
    %883 = vmatprep.mubr.f32.mxu0 0.0
    %884 = vmatmul.mubr.f32.gmra.mrb[0].mxu0 %v603
    %v885 = vpop.f32.mrb[0].mxu0
    %v886 = vadd.f32 0.0, %v885
    %v887 = vpop.f32.mrb[0].mxu0
    %v888 = vadd.f32 0.0, %v887
    %889 = vdwg.mxu0
    %v890 = vadd.f32 %v680, %v815
    %v891 = vadd.f32 %v681, %v817
    %v892 = vadd.f32 %v682, %v886
    %v893 = vadd.f32 %v683, %v888
    %v894 = vxor.u32 %v890, 2147483648
    %v895 = vmul.f32 %v894, 1.442695
    %v896 = vpow.pop %v895
    %v897 = vadd.f32 %v896, 1.0
    %v898 = vrcp.pop %v897
    %v899 = vmul.f32 1.0, %v898
    %v900 = vxor.u32 %v891, 2147483648
    %v901 = vmul.f32 %v900, 1.442695
    %v902 = vpow.pop %v901
    %v903 = vadd.f32 %v902, 1.0
    %v904 = vrcp.pop %v903
    %v905 = vmul.f32 1.0, %v904
    %v906 = vtanh.pop %v892
    %v907 = vxor.u32 %v893, 2147483648
    %v908 = vmul.f32 %v907, 1.442695
    %v909 = vpow.pop %v908
    %v910 = vadd.f32 %v909, 1.0
    %v911 = vrcp.pop %v910
    %v912 = vmul.f32 1.0, %v911
    %v913 = vmul.f32 %v905, %v601
    %v914 = vmul.f32 %v899, %v906
    %v915 = vadd.f32 %v913, %v914
    %v916 = vtanh.pop %v915
    %v917 = vmul.f32 %v912, %v916
    %s918 = sadd.s32 %s50, 2
    %v919 = vstv %s918
    %vm920 = vcmp.lt.s32.totalorder %v919, %v49
    %v921 = vsel %vm920, 1, 0
    %922 = vset.pattern.permute.xlu0 0
    %923 = vperm.xlu0 %922, %v921
    %v924 = vpop.permute.xlu0 %923
    %vm925 = vcmp.eq.s32.totalorder %v924, 1
    %v926 = vsel %vm925, %v917, 0.0
    %v928 = vcombine.high %v926, %v926
    %v930 = vunpack.c.l.s4 1966171168
    %v931 = vunpack.c.0.s8 %v930
    %v932 = vlaneseq
    %v933 = vshrl.u32 %v932, 7
    %v934 = vsub.s32 %v931, %v933
    %v935 = vrot.slane %v926, %v934
    %v937 = vunpack.c.l.s4 1966171168
    %v938 = vunpack.c.0.s8 %v937
    %v939 = vlaneseq
    %v940 = vshrl.u32 %v939, 7
    %v941 = vsub.s32 %v938, %v940
    %v942 = vrot.slane %v928, %v941
    %v943 = vcombine.high %v935, %v935
    %v944 = vcombine.high %v942, %v942
    %v946 = vunpack.c.l.s4 1966171168
    %v947 = vunpack.c.0.s8 %v946
    %v948 = vlaneseq
    %v949 = vshrl.u32 %v948, 7
    %v950 = vsub.s32 %v947, %v949
    %v951 = vrot.slane %v935, %v950
    %v953 = vunpack.c.l.s4 1966171168
    %v954 = vunpack.c.0.s8 %v953
    %v955 = vlaneseq
    %v956 = vshrl.u32 %v955, 7
    %v957 = vsub.s32 %v954, %v956
    %v958 = vrot.slane %v942, %v957
    %v960 = vunpack.c.l.s4 1966171168
    %v961 = vunpack.c.0.s8 %v960
    %v962 = vlaneseq
    %v963 = vshrl.u32 %v962, 7
    %v964 = vsub.s32 %v961, %v963
    %v965 = vrot.slane %v943, %v964
    %v967 = vunpack.c.l.s4 1966171168
    %v968 = vunpack.c.0.s8 %v967
    %v969 = vlaneseq
    %v970 = vshrl.u32 %v969, 7
    %v971 = vsub.s32 %v968, %v970
    %v972 = vrot.slane %v944, %v971
    %v973 = vcombine.high %v951, %v951
    %v974 = vcombine.high %v958, %v958
    %v975 = vcombine.high %v965, %v965
    %v976 = vcombine.high %v972, %v972
    %985 = vst [vmem:[#allocation9 + $0x2] sm:$0x1] %v951
    %986 = vst [vmem:[#allocation9 + $0xa] sm:$0x1] %v965
    %987 = vst [vmem:[#allocation9 + $0x12] sm:$0x1] %v973
    %988 = vst [vmem:[#allocation9 + $0x1a] sm:$0x1] %v975
    %989 = vst [vmem:[#allocation9 + $0x22] sm:$0x1] %v958
    %990 = vst [vmem:[#allocation9 + $0x2a] sm:$0x1] %v972
    %991 = vst [vmem:[#allocation9 + $0x32] sm:$0x1] %v974
    %992 = vst [vmem:[#allocation9 + $0x3a] sm:$0x1] %v976
    %s993 = scalar_lea.vmem [#allocation4], 96
    %v994 = vld [vmem:[%s993] sm:$0xff]
    %v995 = vld [vmem:[%s993 + $0x8] sm:$0xff]
    %v996 = vld [vmem:[%s993 + $0x10] sm:$0xff]
    %v997 = vld [vmem:[%s993 + $0x18] sm:$0xff]
    %v998 = vld [vmem:[#allocation7] sm:$0xff]
    %v999 = vld [vmem:[#allocation7 + $0x8] sm:$0xff]
    %v1000 = vld [vmem:[#allocation7 + $0x10] sm:$0xff]
    %v1001 = vld [vmem:[#allocation7 + $0x18] sm:$0xff]
    %v1002 = vld [vmem:[#allocation7 + $0x20] sm:$0xff]
    %v1003 = vld [vmem:[#allocation7 + $0x28] sm:$0xff]
    %v1004 = vld [vmem:[#allocation7 + $0x30] sm:$0xff]
    %v1005 = vld [vmem:[#allocation7 + $0x38] sm:$0xff]
    %v1006 = vld [vmem:[#allocation7 + $0x40] sm:$0xff]
    %v1007 = vld [vmem:[#allocation7 + $0x48] sm:$0xff]
    %v1008 = vld [vmem:[#allocation7 + $0x50] sm:$0xff]
    %v1009 = vld [vmem:[#allocation7 + $0x58] sm:$0xff]
    %v1010 = vld [vmem:[#allocation7 + $0x60] sm:$0xff]
    %v1011 = vld [vmem:[#allocation7 + $0x68] sm:$0xff]
    %v1012 = vld [vmem:[#allocation7 + $0x70] sm:$0xff]
    %v1013 = vld [vmem:[#allocation7 + $0x78] sm:$0xff]
    %v1014 = vld [vmem:[#allocation7 + $0x80] sm:$0xff]
    %v1015 = vld [vmem:[#allocation7 + $0x88] sm:$0xff]
    %v1016 = vld [vmem:[#allocation7 + $0x90] sm:$0xff]
    %v1017 = vld [vmem:[#allocation7 + $0x98] sm:$0xff]
    %v1018 = vld [vmem:[#allocation7 + $0xa0] sm:$0xff]
    %v1019 = vld [vmem:[#allocation7 + $0xa8] sm:$0xff]
    %v1020 = vld [vmem:[#allocation7 + $0xb0] sm:$0xff]
    %v1021 = vld [vmem:[#allocation7 + $0xb8] sm:$0xff]
    %v1022 = vld [vmem:[#allocation7 + $0xc0] sm:$0xff]
    %v1023 = vld [vmem:[#allocation7 + $0xc8] sm:$0xff]
    %v1024 = vld [vmem:[#allocation7 + $0xd0] sm:$0xff]
    %v1025 = vld [vmem:[#allocation7 + $0xd8] sm:$0xff]
    %v1026 = vld [vmem:[#allocation7 + $0xe0] sm:$0xff]
    %v1027 = vld [vmem:[#allocation7 + $0xe8] sm:$0xff]
    %v1028 = vld [vmem:[#allocation7 + $0xf0] sm:$0xff]
    %v1029 = vld [vmem:[#allocation7 + $0xf8] sm:$0xff]
    %v1030 = vld [vmem:[#allocation7 + $0x100] sm:$0xff]
    %v1031 = vld [vmem:[#allocation7 + $0x108] sm:$0xff]
    %v1032 = vld [vmem:[#allocation7 + $0x110] sm:$0xff]
    %v1033 = vld [vmem:[#allocation7 + $0x118] sm:$0xff]
    %v1034 = vld [vmem:[#allocation7 + $0x120] sm:$0xff]
    %v1035 = vld [vmem:[#allocation7 + $0x128] sm:$0xff]
    %v1036 = vld [vmem:[#allocation7 + $0x130] sm:$0xff]
    %v1037 = vld [vmem:[#allocation7 + $0x138] sm:$0xff]
    %v1038 = vld [vmem:[#allocation7 + $0x140] sm:$0xff]
    %v1039 = vld [vmem:[#allocation7 + $0x148] sm:$0xff]
    %v1040 = vld [vmem:[#allocation7 + $0x150] sm:$0xff]
    %v1041 = vld [vmem:[#allocation7 + $0x158] sm:$0xff]
    %v1042 = vld [vmem:[#allocation7 + $0x160] sm:$0xff]
    %v1043 = vld [vmem:[#allocation7 + $0x168] sm:$0xff]
    %v1044 = vld [vmem:[#allocation7 + $0x170] sm:$0xff]
    %v1045 = vld [vmem:[#allocation7 + $0x178] sm:$0xff]
    %v1046 = vld [vmem:[#allocation7 + $0x180] sm:$0xff]
    %v1047 = vld [vmem:[#allocation7 + $0x188] sm:$0xff]
    %v1048 = vld [vmem:[#allocation7 + $0x190] sm:$0xff]
    %v1049 = vld [vmem:[#allocation7 + $0x198] sm:$0xff]
    %v1050 = vld [vmem:[#allocation7 + $0x1a0] sm:$0xff]
    %v1051 = vld [vmem:[#allocation7 + $0x1a8] sm:$0xff]
    %v1052 = vld [vmem:[#allocation7 + $0x1b0] sm:$0xff]
    %v1053 = vld [vmem:[#allocation7 + $0x1b8] sm:$0xff]
    %v1054 = vld [vmem:[#allocation7 + $0x1c0] sm:$0xff]
    %v1055 = vld [vmem:[#allocation7 + $0x1c8] sm:$0xff]
    %v1056 = vld [vmem:[#allocation7 + $0x1d0] sm:$0xff]
    %v1057 = vld [vmem:[#allocation7 + $0x1d8] sm:$0xff]
    %v1058 = vld [vmem:[#allocation7 + $0x1e0] sm:$0xff]
    %v1059 = vld [vmem:[#allocation7 + $0x1e8] sm:$0xff]
    %v1060 = vld [vmem:[#allocation7 + $0x1f0] sm:$0xff]
    %v1061 = vld [vmem:[#allocation7 + $0x1f8] sm:$0xff]
    %1062 = vmatprep.subr.mxu0 %v999
    %1063 = vmatpush1.msra.mxu0 %v998
    %1064 = vmatprep.subr.mxu0 %v1003
    %1065 = vmatpush1.msra.mxu0 %v1002
    %1066 = vmatprep.subr.mxu0 %v1007
    %1067 = vmatpush1.msra.mxu0 %v1006
    %1068 = vmatprep.subr.mxu0 %v1011
    %1069 = vmatpush1.msra.mxu0 %v1010
    %1070 = vmatprep.subr.mxu0 %v1015
    %1071 = vmatpush1.msra.mxu0 %v1014
    %1072 = vmatprep.subr.mxu0 %v1019
    %1073 = vmatpush1.msra.mxu0 %v1018
    %1074 = vmatprep.subr.mxu0 %v1023
    %1075 = vmatpush1.msra.mxu0 %v1022
    %1076 = vmatprep.subr.mxu0 %v1027
    %1077 = vmatpush1.msra.mxu0 %v1026
    %1078 = vmatprep.subr.mxu0 %v1031
    %1079 = vmatpush1.msra.mxu0 %v1030
    %1080 = vmatprep.subr.mxu0 %v1035
    %1081 = vmatpush1.msra.mxu0 %v1034
    %1082 = vmatprep.subr.mxu0 %v1039
    %1083 = vmatpush1.msra.mxu0 %v1038
    %1084 = vmatprep.subr.mxu0 %v1043
    %1085 = vmatpush1.msra.mxu0 %v1042
    %1086 = vmatprep.subr.mxu0 %v1047
    %1087 = vmatpush1.msra.mxu0 %v1046
    %1088 = vmatprep.subr.mxu0 %v1051
    %1089 = vmatpush1.msra.mxu0 %v1050
    %1090 = vmatprep.subr.mxu0 %v1055
    %1091 = vmatpush1.msra.mxu0 %v1054
    %1092 = vmatprep.subr.mxu0 %v1059
    %1093 = vmatpush1.msra.mxu0 %v1058
    %1094 = vmatprep.subr.mxu0 0.0
    %1095 = vmatpush1.msra.mxu0 0.0
    %1096 = vmatprep.subr.mxu0 0.0
    %1097 = vmatpush1.msra.mxu0 0.0
    %1098 = vmatprep.subr.mxu0 0.0
    %1099 = vmatpush1.msra.mxu0 0.0
    %1100 = vmatprep.subr.mxu0 0.0
    %1101 = vmatpush1.msra.mxu0 0.0
    %1102 = vmatprep.subr.mxu0 0.0
    %1103 = vmatpush1.msra.mxu0 0.0
    %1104 = vmatprep.subr.mxu0 0.0
    %1105 = vmatpush1.msra.mxu0 0.0
    %1106 = vmatprep.subr.mxu0 0.0
    %1107 = vmatpush1.msra.mxu0 0.0
    %1108 = vmatprep.subr.mxu0 0.0
    %1109 = vmatpush1.msra.mxu0 0.0
    %1110 = vmatprep.subr.mxu0 0.0
    %1111 = vmatpush1.msra.mxu0 0.0
    %1112 = vmatprep.subr.mxu0 0.0
    %1113 = vmatpush1.msra.mxu0 0.0
    %1114 = vmatprep.subr.mxu0 0.0
    %1115 = vmatpush1.msra.mxu0 0.0
    %1116 = vmatprep.subr.mxu0 0.0
    %1117 = vmatpush1.msra.mxu0 0.0
    %1118 = vmatprep.subr.mxu0 0.0
    %1119 = vmatpush1.msra.mxu0 0.0
    %1120 = vmatprep.subr.mxu0 0.0
    %1121 = vmatpush1.msra.mxu0 0.0
    %1122 = vmatprep.subr.mxu0 0.0
    %1123 = vmatpush1.msra.mxu0 0.0
    %1124 = vmatprep.subr.mxu0 0.0
    %1125 = vmatpush1.msra.mxu0 0.0
    %1126 = vmatprep.mubr.f32.mxu0 0.0
    %1127 = vmatmul.mubr.f32.gmra.mrb[0].mxu0 %v917
    %v1128 = vpop.f32.mrb[0].mxu0
    %v1129 = vadd.f32 0.0, %v1128
    %v1130 = vpop.f32.mrb[0].mxu0
    %v1131 = vadd.f32 0.0, %v1130
    %1132 = vdwg.mxu0
    %1133 = vmatprep.subr.mxu0 %v1001
    %1134 = vmatpush1.msra.mxu0 %v1000
    %1135 = vmatprep.subr.mxu0 %v1005
    %1136 = vmatpush1.msra.mxu0 %v1004
    %1137 = vmatprep.subr.mxu0 %v1009
    %1138 = vmatpush1.msra.mxu0 %v1008
    %1139 = vmatprep.subr.mxu0 %v1013
    %1140 = vmatpush1.msra.mxu0 %v1012
    %1141 = vmatprep.subr.mxu0 %v1017
    %1142 = vmatpush1.msra.mxu0 %v1016
    %1143 = vmatprep.subr.mxu0 %v1021
    %1144 = vmatpush1.msra.mxu0 %v1020
    %1145 = vmatprep.subr.mxu0 %v1025
    %1146 = vmatpush1.msra.mxu0 %v1024
    %1147 = vmatprep.subr.mxu0 %v1029
    %1148 = vmatpush1.msra.mxu0 %v1028
    %1149 = vmatprep.subr.mxu0 %v1033
    %1150 = vmatpush1.msra.mxu0 %v1032
    %1151 = vmatprep.subr.mxu0 %v1037
    %1152 = vmatpush1.msra.mxu0 %v1036
    %1153 = vmatprep.subr.mxu0 %v1041
    %1154 = vmatpush1.msra.mxu0 %v1040
    %1155 = vmatprep.subr.mxu0 %v1045
    %1156 = vmatpush1.msra.mxu0 %v1044
    %1157 = vmatprep.subr.mxu0 %v1049
    %1158 = vmatpush1.msra.mxu0 %v1048
    %1159 = vmatprep.subr.mxu0 %v1053
    %1160 = vmatpush1.msra.mxu0 %v1052
    %1161 = vmatprep.subr.mxu0 %v1057
    %1162 = vmatpush1.msra.mxu0 %v1056
    %1163 = vmatprep.subr.mxu0 %v1061
    %1164 = vmatpush1.msra.mxu0 %v1060
    %1165 = vmatprep.subr.mxu0 0.0
    %1166 = vmatpush1.msra.mxu0 0.0
    %1167 = vmatprep.subr.mxu0 0.0
    %1168 = vmatpush1.msra.mxu0 0.0
    %1169 = vmatprep.subr.mxu0 0.0
    %1170 = vmatpush1.msra.mxu0 0.0
    %1171 = vmatprep.subr.mxu0 0.0
    %1172 = vmatpush1.msra.mxu0 0.0
    %1173 = vmatprep.subr.mxu0 0.0
    %1174 = vmatpush1.msra.mxu0 0.0
    %1175 = vmatprep.subr.mxu0 0.0
    %1176 = vmatpush1.msra.mxu0 0.0
    %1177 = vmatprep.subr.mxu0 0.0
    %1178 = vmatpush1.msra.mxu0 0.0
    %1179 = vmatprep.subr.mxu0 0.0
    %1180 = vmatpush1.msra.mxu0 0.0
    %1181 = vmatprep.subr.mxu0 0.0
    %1182 = vmatpush1.msra.mxu0 0.0
    %1183 = vmatprep.subr.mxu0 0.0
    %1184 = vmatpush1.msra.mxu0 0.0
    %1185 = vmatprep.subr.mxu0 0.0
    %1186 = vmatpush1.msra.mxu0 0.0
    %1187 = vmatprep.subr.mxu0 0.0
    %1188 = vmatpush1.msra.mxu0 0.0
    %1189 = vmatprep.subr.mxu0 0.0
    %1190 = vmatpush1.msra.mxu0 0.0
    %1191 = vmatprep.subr.mxu0 0.0
    %1192 = vmatpush1.msra.mxu0 0.0
    %1193 = vmatprep.subr.mxu0 0.0
    %1194 = vmatpush1.msra.mxu0 0.0
    %1195 = vmatprep.subr.mxu0 0.0
    %1196 = vmatpush1.msra.mxu0 0.0
    %1197 = vmatprep.mubr.f32.mxu0 0.0
    %1198 = vmatmul.mubr.f32.gmra.mrb[0].mxu0 %v917
    %v1199 = vpop.f32.mrb[0].mxu0
    %v1200 = vadd.f32 0.0, %v1199
    %v1201 = vpop.f32.mrb[0].mxu0
    %v1202 = vadd.f32 0.0, %v1201
    %1203 = vdwg.mxu0
    %v1204 = vadd.f32 %v994, %v1129
    %v1205 = vadd.f32 %v995, %v1131
    %v1206 = vadd.f32 %v996, %v1200
    %v1207 = vadd.f32 %v997, %v1202
    %v1208 = vxor.u32 %v1204, 2147483648
    %v1209 = vmul.f32 %v1208, 1.442695
    %v1210 = vpow.pop %v1209
    %v1211 = vadd.f32 %v1210, 1.0
    %v1212 = vrcp.pop %v1211
    %v1213 = vmul.f32 1.0, %v1212
    %v1214 = vxor.u32 %v1205, 2147483648
    %v1215 = vmul.f32 %v1214, 1.442695
    %v1216 = vpow.pop %v1215
    %v1217 = vadd.f32 %v1216, 1.0
    %v1218 = vrcp.pop %v1217
    %v1219 = vmul.f32 1.0, %v1218
    %v1220 = vtanh.pop %v1206
    %v1221 = vxor.u32 %v1207, 2147483648
    %v1222 = vmul.f32 %v1221, 1.442695
    %v1223 = vpow.pop %v1222
    %v1224 = vadd.f32 %v1223, 1.0
    %v1225 = vrcp.pop %v1224
    %v1226 = vmul.f32 1.0, %v1225
    %v1227 = vmul.f32 %v1219, %v915
    %v1228 = vmul.f32 %v1213, %v1220
    %v1229 = vadd.f32 %v1227, %v1228
    %v1230 = vtanh.pop %v1229
    %v1231 = vmul.f32 %v1226, %v1230
    %s1232 = sadd.s32 %s50, 3
    %v1233 = vstv %s1232
    %vm1234 = vcmp.lt.s32.totalorder %v1233, %v49
    %v1235 = vsel %vm1234, 1, 0
    %1236 = vset.pattern.permute.xlu0 0
    %1237 = vperm.xlu0 %1236, %v1235
    %v1238 = vpop.permute.xlu0 %1237
    %vm1239 = vcmp.eq.s32.totalorder %v1238, 1
    %v1240 = vsel %vm1239, %v1231, 0.0
    %v1242 = vcombine.high %v1240, %v1240
    %v1244 = vunpack.c.l.s4 1966171168
    %v1245 = vunpack.c.0.s8 %v1244
    %v1246 = vlaneseq
    %v1247 = vshrl.u32 %v1246, 7
    %v1248 = vsub.s32 %v1245, %v1247
    %v1249 = vrot.slane %v1240, %v1248
    %v1251 = vunpack.c.l.s4 1966171168
    %v1252 = vunpack.c.0.s8 %v1251
    %v1253 = vlaneseq
    %v1254 = vshrl.u32 %v1253, 7
    %v1255 = vsub.s32 %v1252, %v1254
    %v1256 = vrot.slane %v1242, %v1255
    %v1257 = vcombine.high %v1249, %v1249
    %v1258 = vcombine.high %v1256, %v1256
    %v1260 = vunpack.c.l.s4 1966171168
    %v1261 = vunpack.c.0.s8 %v1260
    %v1262 = vlaneseq
    %v1263 = vshrl.u32 %v1262, 7
    %v1264 = vsub.s32 %v1261, %v1263
    %v1265 = vrot.slane %v1249, %v1264
    %v1267 = vunpack.c.l.s4 1966171168
    %v1268 = vunpack.c.0.s8 %v1267
    %v1269 = vlaneseq
    %v1270 = vshrl.u32 %v1269, 7
    %v1271 = vsub.s32 %v1268, %v1270
    %v1272 = vrot.slane %v1256, %v1271
    %v1274 = vunpack.c.l.s4 1966171168
    %v1275 = vunpack.c.0.s8 %v1274
    %v1276 = vlaneseq
    %v1277 = vshrl.u32 %v1276, 7
    %v1278 = vsub.s32 %v1275, %v1277
    %v1279 = vrot.slane %v1257, %v1278
    %v1281 = vunpack.c.l.s4 1966171168
    %v1282 = vunpack.c.0.s8 %v1281
    %v1283 = vlaneseq
    %v1284 = vshrl.u32 %v1283, 7
    %v1285 = vsub.s32 %v1282, %v1284
    %v1286 = vrot.slane %v1258, %v1285
    %v1287 = vcombine.high %v1265, %v1265
    %v1288 = vcombine.high %v1272, %v1272
    %v1289 = vcombine.high %v1279, %v1279
    %v1290 = vcombine.high %v1286, %v1286
    %1299 = vst [vmem:[#allocation9 + $0x3] sm:$0x1] %v1265
    %1300 = vst [vmem:[#allocation9 + $0xb] sm:$0x1] %v1279
    %1301 = vst [vmem:[#allocation9 + $0x13] sm:$0x1] %v1287
    %1302 = vst [vmem:[#allocation9 + $0x1b] sm:$0x1] %v1289
    %1303 = vst [vmem:[#allocation9 + $0x23] sm:$0x1] %v1272
    %1304 = vst [vmem:[#allocation9 + $0x2b] sm:$0x1] %v1286
    %1305 = vst [vmem:[#allocation9 + $0x33] sm:$0x1] %v1288
    %1306 = vst [vmem:[#allocation9 + $0x3b] sm:$0x1] %v1290
    %s1307 = scalar_lea.vmem [#allocation4], 128
    %v1308 = vld [vmem:[%s1307] sm:$0xff]
    %v1309 = vld [vmem:[%s1307 + $0x8] sm:$0xff]
    %v1310 = vld [vmem:[%s1307 + $0x10] sm:$0xff]
    %v1311 = vld [vmem:[%s1307 + $0x18] sm:$0xff]
    %v1312 = vld [vmem:[#allocation7] sm:$0xff]
    %v1313 = vld [vmem:[#allocation7 + $0x8] sm:$0xff]
    %v1314 = vld [vmem:[#allocation7 + $0x10] sm:$0xff]
    %v1315 = vld [vmem:[#allocation7 + $0x18] sm:$0xff]
    %v1316 = vld [vmem:[#allocation7 + $0x20] sm:$0xff]
    %v1317 = vld [vmem:[#allocation7 + $0x28] sm:$0xff]
    %v1318 = vld [vmem:[#allocation7 + $0x30] sm:$0xff]
    %v1319 = vld [vmem:[#allocation7 + $0x38] sm:$0xff]
    %v1320 = vld [vmem:[#allocation7 + $0x40] sm:$0xff]
    %v1321 = vld [vmem:[#allocation7 + $0x48] sm:$0xff]
    %v1322 = vld [vmem:[#allocation7 + $0x50] sm:$0xff]
    %v1323 = vld [vmem:[#allocation7 + $0x58] sm:$0xff]
    %v1324 = vld [vmem:[#allocation7 + $0x60] sm:$0xff]
    %v1325 = vld [vmem:[#allocation7 + $0x68] sm:$0xff]
    %v1326 = vld [vmem:[#allocation7 + $0x70] sm:$0xff]
    %v1327 = vld [vmem:[#allocation7 + $0x78] sm:$0xff]
    %v1328 = vld [vmem:[#allocation7 + $0x80] sm:$0xff]
    %v1329 = vld [vmem:[#allocation7 + $0x88] sm:$0xff]
    %v1330 = vld [vmem:[#allocation7 + $0x90] sm:$0xff]
    %v1331 = vld [vmem:[#allocation7 + $0x98] sm:$0xff]
    %v1332 = vld [vmem:[#allocation7 + $0xa0] sm:$0xff]
    %v1333 = vld [vmem:[#allocation7 + $0xa8] sm:$0xff]
    %v1334 = vld [vmem:[#allocation7 + $0xb0] sm:$0xff]
    %v1335 = vld [vmem:[#allocation7 + $0xb8] sm:$0xff]
    %v1336 = vld [vmem:[#allocation7 + $0xc0] sm:$0xff]
    %v1337 = vld [vmem:[#allocation7 + $0xc8] sm:$0xff]
    %v1338 = vld [vmem:[#allocation7 + $0xd0] sm:$0xff]
    %v1339 = vld [vmem:[#allocation7 + $0xd8] sm:$0xff]
    %v1340 = vld [vmem:[#allocation7 + $0xe0] sm:$0xff]
    %v1341 = vld [vmem:[#allocation7 + $0xe8] sm:$0xff]
    %v1342 = vld [vmem:[#allocation7 + $0xf0] sm:$0xff]
    %v1343 = vld [vmem:[#allocation7 + $0xf8] sm:$0xff]
    %v1344 = vld [vmem:[#allocation7 + $0x100] sm:$0xff]
    %v1345 = vld [vmem:[#allocation7 + $0x108] sm:$0xff]
    %v1346 = vld [vmem:[#allocation7 + $0x110] sm:$0xff]
    %v1347 = vld [vmem:[#allocation7 + $0x118] sm:$0xff]
    %v1348 = vld [vmem:[#allocation7 + $0x120] sm:$0xff]
    %v1349 = vld [vmem:[#allocation7 + $0x128] sm:$0xff]
    %v1350 = vld [vmem:[#allocation7 + $0x130] sm:$0xff]
    %v1351 = vld [vmem:[#allocation7 + $0x138] sm:$0xff]
    %v1352 = vld [vmem:[#allocation7 + $0x140] sm:$0xff]
    %v1353 = vld [vmem:[#allocation7 + $0x148] sm:$0xff]
    %v1354 = vld [vmem:[#allocation7 + $0x150] sm:$0xff]
    %v1355 = vld [vmem:[#allocation7 + $0x158] sm:$0xff]
    %v1356 = vld [vmem:[#allocation7 + $0x160] sm:$0xff]
    %v1357 = vld [vmem:[#allocation7 + $0x168] sm:$0xff]
    %v1358 = vld [vmem:[#allocation7 + $0x170] sm:$0xff]
    %v1359 = vld [vmem:[#allocation7 + $0x178] sm:$0xff]
    %v1360 = vld [vmem:[#allocation7 + $0x180] sm:$0xff]
    %v1361 = vld [vmem:[#allocation7 + $0x188] sm:$0xff]
    %v1362 = vld [vmem:[#allocation7 + $0x190] sm:$0xff]
    %v1363 = vld [vmem:[#allocation7 + $0x198] sm:$0xff]
    %v1364 = vld [vmem:[#allocation7 + $0x1a0] sm:$0xff]
    %v1365 = vld [vmem:[#allocation7 + $0x1a8] sm:$0xff]
    %v1366 = vld [vmem:[#allocation7 + $0x1b0] sm:$0xff]
    %v1367 = vld [vmem:[#allocation7 + $0x1b8] sm:$0xff]
    %v1368 = vld [vmem:[#allocation7 + $0x1c0] sm:$0xff]
    %v1369 = vld [vmem:[#allocation7 + $0x1c8] sm:$0xff]
    %v1370 = vld [vmem:[#allocation7 + $0x1d0] sm:$0xff]
    %v1371 = vld [vmem:[#allocation7 + $0x1d8] sm:$0xff]
    %v1372 = vld [vmem:[#allocation7 + $0x1e0] sm:$0xff]
    %v1373 = vld [vmem:[#allocation7 + $0x1e8] sm:$0xff]
    %v1374 = vld [vmem:[#allocation7 + $0x1f0] sm:$0xff]
    %v1375 = vld [vmem:[#allocation7 + $0x1f8] sm:$0xff]
    %1376 = vmatprep.subr.mxu0 %v1313
    %1377 = vmatpush1.msra.mxu0 %v1312
    %1378 = vmatprep.subr.mxu0 %v1317
    %1379 = vmatpush1.msra.mxu0 %v1316
    %1380 = vmatprep.subr.mxu0 %v1321
    %1381 = vmatpush1.msra.mxu0 %v1320
    %1382 = vmatprep.subr.mxu0 %v1325
    %1383 = vmatpush1.msra.mxu0 %v1324
    %1384 = vmatprep.subr.mxu0 %v1329
    %1385 = vmatpush1.msra.mxu0 %v1328
    %1386 = vmatprep.subr.mxu0 %v1333
    %1387 = vmatpush1.msra.mxu0 %v1332
    %1388 = vmatprep.subr.mxu0 %v1337
    %1389 = vmatpush1.msra.mxu0 %v1336
    %1390 = vmatprep.subr.mxu0 %v1341
    %1391 = vmatpush1.msra.mxu0 %v1340
    %1392 = vmatprep.subr.mxu0 %v1345
    %1393 = vmatpush1.msra.mxu0 %v1344
    %1394 = vmatprep.subr.mxu0 %v1349
    %1395 = vmatpush1.msra.mxu0 %v1348
    %1396 = vmatprep.subr.mxu0 %v1353
    %1397 = vmatpush1.msra.mxu0 %v1352
    %1398 = vmatprep.subr.mxu0 %v1357
    %1399 = vmatpush1.msra.mxu0 %v1356
    %1400 = vmatprep.subr.mxu0 %v1361
    %1401 = vmatpush1.msra.mxu0 %v1360
    %1402 = vmatprep.subr.mxu0 %v1365
    %1403 = vmatpush1.msra.mxu0 %v1364
    %1404 = vmatprep.subr.mxu0 %v1369
    %1405 = vmatpush1.msra.mxu0 %v1368
    %1406 = vmatprep.subr.mxu0 %v1373
    %1407 = vmatpush1.msra.mxu0 %v1372
    %1408 = vmatprep.subr.mxu0 0.0
    %1409 = vmatpush1.msra.mxu0 0.0
    %1410 = vmatprep.subr.mxu0 0.0
    %1411 = vmatpush1.msra.mxu0 0.0
    %1412 = vmatprep.subr.mxu0 0.0
    %1413 = vmatpush1.msra.mxu0 0.0
    %1414 = vmatprep.subr.mxu0 0.0
    %1415 = vmatpush1.msra.mxu0 0.0
    %1416 = vmatprep.subr.mxu0 0.0
    %1417 = vmatpush1.msra.mxu0 0.0
    %1418 = vmatprep.subr.mxu0 0.0
    %1419 = vmatpush1.msra.mxu0 0.0
    %1420 = vmatprep.subr.mxu0 0.0
    %1421 = vmatpush1.msra.mxu0 0.0
    %1422 = vmatprep.subr.mxu0 0.0
    %1423 = vmatpush1.msra.mxu0 0.0
    %1424 = vmatprep.subr.mxu0 0.0
    %1425 = vmatpush1.msra.mxu0 0.0
    %1426 = vmatprep.subr.mxu0 0.0
    %1427 = vmatpush1.msra.mxu0 0.0
    %1428 = vmatprep.subr.mxu0 0.0
    %1429 = vmatpush1.msra.mxu0 0.0
    %1430 = vmatprep.subr.mxu0 0.0
    %1431 = vmatpush1.msra.mxu0 0.0
    %1432 = vmatprep.subr.mxu0 0.0
    %1433 = vmatpush1.msra.mxu0 0.0
    %1434 = vmatprep.subr.mxu0 0.0
    %1435 = vmatpush1.msra.mxu0 0.0
    %1436 = vmatprep.subr.mxu0 0.0
    %1437 = vmatpush1.msra.mxu0 0.0
    %1438 = vmatprep.subr.mxu0 0.0
    %1439 = vmatpush1.msra.mxu0 0.0
    %1440 = vmatprep.mubr.f32.mxu0 0.0
    %1441 = vmatmul.mubr.f32.gmra.mrb[0].mxu0 %v1231
    %v1442 = vpop.f32.mrb[0].mxu0
    %v1443 = vadd.f32 0.0, %v1442
    %v1444 = vpop.f32.mrb[0].mxu0
    %v1445 = vadd.f32 0.0, %v1444
    %1446 = vdwg.mxu0
    %1447 = vmatprep.subr.mxu0 %v1315
    %1448 = vmatpush1.msra.mxu0 %v1314
    %1449 = vmatprep.subr.mxu0 %v1319
    %1450 = vmatpush1.msra.mxu0 %v1318
    %1451 = vmatprep.subr.mxu0 %v1323
    %1452 = vmatpush1.msra.mxu0 %v1322
    %1453 = vmatprep.subr.mxu0 %v1327
    %1454 = vmatpush1.msra.mxu0 %v1326
    %1455 = vmatprep.subr.mxu0 %v1331
    %1456 = vmatpush1.msra.mxu0 %v1330
    %1457 = vmatprep.subr.mxu0 %v1335
    %1458 = vmatpush1.msra.mxu0 %v1334
    %1459 = vmatprep.subr.mxu0 %v1339
    %1460 = vmatpush1.msra.mxu0 %v1338
    %1461 = vmatprep.subr.mxu0 %v1343
    %1462 = vmatpush1.msra.mxu0 %v1342
    %1463 = vmatprep.subr.mxu0 %v1347
    %1464 = vmatpush1.msra.mxu0 %v1346
    %1465 = vmatprep.subr.mxu0 %v1351
    %1466 = vmatpush1.msra.mxu0 %v1350
    %1467 = vmatprep.subr.mxu0 %v1355
    %1468 = vmatpush1.msra.mxu0 %v1354
    %1469 = vmatprep.subr.mxu0 %v1359
    %1470 = vmatpush1.msra.mxu0 %v1358
    %1471 = vmatprep.subr.mxu0 %v1363
    %1472 = vmatpush1.msra.mxu0 %v1362
    %1473 = vmatprep.subr.mxu0 %v1367
    %1474 = vmatpush1.msra.mxu0 %v1366
    %1475 = vmatprep.subr.mxu0 %v1371
    %1476 = vmatpush1.msra.mxu0 %v1370
    %1477 = vmatprep.subr.mxu0 %v1375
    %1478 = vmatpush1.msra.mxu0 %v1374
    %1479 = vmatprep.subr.mxu0 0.0
    %1480 = vmatpush1.msra.mxu0 0.0
    %1481 = vmatprep.subr.mxu0 0.0
    %1482 = vmatpush1.msra.mxu0 0.0
    %1483 = vmatprep.subr.mxu0 0.0
    %1484 = vmatpush1.msra.mxu0 0.0
    %1485 = vmatprep.subr.mxu0 0.0
    %1486 = vmatpush1.msra.mxu0 0.0
    %1487 = vmatprep.subr.mxu0 0.0
    %1488 = vmatpush1.msra.mxu0 0.0
    %1489 = vmatprep.subr.mxu0 0.0
    %1490 = vmatpush1.msra.mxu0 0.0
    %1491 = vmatprep.subr.mxu0 0.0
    %1492 = vmatpush1.msra.mxu0 0.0
    %1493 = vmatprep.subr.mxu0 0.0
    %1494 = vmatpush1.msra.mxu0 0.0
    %1495 = vmatprep.subr.mxu0 0.0
    %1496 = vmatpush1.msra.mxu0 0.0
    %1497 = vmatprep.subr.mxu0 0.0
    %1498 = vmatpush1.msra.mxu0 0.0
    %1499 = vmatprep.subr.mxu0 0.0
    %1500 = vmatpush1.msra.mxu0 0.0
    %1501 = vmatprep.subr.mxu0 0.0
    %1502 = vmatpush1.msra.mxu0 0.0
    %1503 = vmatprep.subr.mxu0 0.0
    %1504 = vmatpush1.msra.mxu0 0.0
    %1505 = vmatprep.subr.mxu0 0.0
    %1506 = vmatpush1.msra.mxu0 0.0
    %1507 = vmatprep.subr.mxu0 0.0
    %1508 = vmatpush1.msra.mxu0 0.0
    %1509 = vmatprep.subr.mxu0 0.0
    %1510 = vmatpush1.msra.mxu0 0.0
    %1511 = vmatprep.mubr.f32.mxu0 0.0
    %1512 = vmatmul.mubr.f32.gmra.mrb[0].mxu0 %v1231
    %v1513 = vpop.f32.mrb[0].mxu0
    %v1514 = vadd.f32 0.0, %v1513
    %v1515 = vpop.f32.mrb[0].mxu0
    %v1516 = vadd.f32 0.0, %v1515
    %1517 = vdwg.mxu0
    %v1518 = vadd.f32 %v1308, %v1443
    %v1519 = vadd.f32 %v1309, %v1445
    %v1520 = vadd.f32 %v1310, %v1514
    %v1521 = vadd.f32 %v1311, %v1516
    %v1522 = vxor.u32 %v1518, 2147483648
    %v1523 = vmul.f32 %v1522, 1.442695
    %v1524 = vpow.pop %v1523
    %v1525 = vadd.f32 %v1524, 1.0
    %v1526 = vrcp.pop %v1525
    %v1527 = vmul.f32 1.0, %v1526
    %v1528 = vxor.u32 %v1519, 2147483648
    %v1529 = vmul.f32 %v1528, 1.442695
    %v1530 = vpow.pop %v1529
    %v1531 = vadd.f32 %v1530, 1.0
    %v1532 = vrcp.pop %v1531
    %v1533 = vmul.f32 1.0, %v1532
    %v1534 = vtanh.pop %v1520
    %v1535 = vxor.u32 %v1521, 2147483648
    %v1536 = vmul.f32 %v1535, 1.442695
    %v1537 = vpow.pop %v1536
    %v1538 = vadd.f32 %v1537, 1.0
    %v1539 = vrcp.pop %v1538
    %v1540 = vmul.f32 1.0, %v1539
    %v1541 = vmul.f32 %v1533, %v1229
    %v1542 = vmul.f32 %v1527, %v1534
    %v1543 = vadd.f32 %v1541, %v1542
    %v1544 = vtanh.pop %v1543
    %v1545 = vmul.f32 %v1540, %v1544
    %s1546 = sadd.s32 %s50, 4
    %v1547 = vstv %s1546
    %vm1548 = vcmp.lt.s32.totalorder %v1547, %v49
    %v1549 = vsel %vm1548, 1, 0
    %1550 = vset.pattern.permute.xlu0 0
    %1551 = vperm.xlu0 %1550, %v1549
    %v1552 = vpop.permute.xlu0 %1551
    %vm1553 = vcmp.eq.s32.totalorder %v1552, 1
    %v1554 = vsel %vm1553, %v1545, 0.0
    %v1556 = vcombine.high %v1554, %v1554
    %v1558 = vunpack.c.l.s4 1966171168
    %v1559 = vunpack.c.0.s8 %v1558
    %v1560 = vlaneseq
    %v1561 = vshrl.u32 %v1560, 7
    %v1562 = vsub.s32 %v1559, %v1561
    %v1563 = vrot.slane %v1554, %v1562
    %v1565 = vunpack.c.l.s4 1966171168
    %v1566 = vunpack.c.0.s8 %v1565
    %v1567 = vlaneseq
    %v1568 = vshrl.u32 %v1567, 7
    %v1569 = vsub.s32 %v1566, %v1568
    %v1570 = vrot.slane %v1556, %v1569
    %v1571 = vcombine.high %v1563, %v1563
    %v1572 = vcombine.high %v1570, %v1570
    %v1574 = vunpack.c.l.s4 1966171168
    %v1575 = vunpack.c.0.s8 %v1574
    %v1576 = vlaneseq
    %v1577 = vshrl.u32 %v1576, 7
    %v1578 = vsub.s32 %v1575, %v1577
    %v1579 = vrot.slane %v1563, %v1578
    %v1581 = vunpack.c.l.s4 1966171168
    %v1582 = vunpack.c.0.s8 %v1581
    %v1583 = vlaneseq
    %v1584 = vshrl.u32 %v1583, 7
    %v1585 = vsub.s32 %v1582, %v1584
    %v1586 = vrot.slane %v1570, %v1585
    %v1588 = vunpack.c.l.s4 1966171168
    %v1589 = vunpack.c.0.s8 %v1588
    %v1590 = vlaneseq
    %v1591 = vshrl.u32 %v1590, 7
    %v1592 = vsub.s32 %v1589, %v1591
    %v1593 = vrot.slane %v1571, %v1592
    %v1595 = vunpack.c.l.s4 1966171168
    %v1596 = vunpack.c.0.s8 %v1595
    %v1597 = vlaneseq
    %v1598 = vshrl.u32 %v1597, 7
    %v1599 = vsub.s32 %v1596, %v1598
    %v1600 = vrot.slane %v1572, %v1599
    %v1601 = vcombine.high %v1579, %v1579
    %v1602 = vcombine.high %v1586, %v1586
    %v1603 = vcombine.high %v1593, %v1593
    %v1604 = vcombine.high %v1600, %v1600
    %1613 = vst [vmem:[#allocation9 + $0x4] sm:$0x1] %v1579
    %1614 = vst [vmem:[#allocation9 + $0xc] sm:$0x1] %v1593
    %1615 = vst [vmem:[#allocation9 + $0x14] sm:$0x1] %v1601
    %1616 = vst [vmem:[#allocation9 + $0x1c] sm:$0x1] %v1603
    %1617 = vst [vmem:[#allocation9 + $0x24] sm:$0x1] %v1586
    %1618 = vst [vmem:[#allocation9 + $0x2c] sm:$0x1] %v1600
    %1619 = vst [vmem:[#allocation9 + $0x34] sm:$0x1] %v1602
    %1620 = vst [vmem:[#allocation9 + $0x3c] sm:$0x1] %v1604
    %s1621 = scalar_lea.vmem [#allocation4], 160
    %v1622 = vld [vmem:[%s1621] sm:$0xff]
    %v1623 = vld [vmem:[%s1621 + $0x8] sm:$0xff]
    %v1624 = vld [vmem:[%s1621 + $0x10] sm:$0xff]
    %v1625 = vld [vmem:[%s1621 + $0x18] sm:$0xff]
    %v1626 = vld [vmem:[#allocation7] sm:$0xff]
    %v1627 = vld [vmem:[#allocation7 + $0x8] sm:$0xff]
    %v1628 = vld [vmem:[#allocation7 + $0x10] sm:$0xff]
    %v1629 = vld [vmem:[#allocation7 + $0x18] sm:$0xff]
    %v1630 = vld [vmem:[#allocation7 + $0x20] sm:$0xff]
    %v1631 = vld [vmem:[#allocation7 + $0x28] sm:$0xff]
    %v1632 = vld [vmem:[#allocation7 + $0x30] sm:$0xff]
    %v1633 = vld [vmem:[#allocation7 + $0x38] sm:$0xff]
    %v1634 = vld [vmem:[#allocation7 + $0x40] sm:$0xff]
    %v1635 = vld [vmem:[#allocation7 + $0x48] sm:$0xff]
    %v1636 = vld [vmem:[#allocation7 + $0x50] sm:$0xff]
    %v1637 = vld [vmem:[#allocation7 + $0x58] sm:$0xff]
    %v1638 = vld [vmem:[#allocation7 + $0x60] sm:$0xff]
    %v1639 = vld [vmem:[#allocation7 + $0x68] sm:$0xff]
    %v1640 = vld [vmem:[#allocation7 + $0x70] sm:$0xff]
    %v1641 = vld [vmem:[#allocation7 + $0x78] sm:$0xff]
    %v1642 = vld [vmem:[#allocation7 + $0x80] sm:$0xff]
    %v1643 = vld [vmem:[#allocation7 + $0x88] sm:$0xff]
    %v1644 = vld [vmem:[#allocation7 + $0x90] sm:$0xff]
    %v1645 = vld [vmem:[#allocation7 + $0x98] sm:$0xff]
    %v1646 = vld [vmem:[#allocation7 + $0xa0] sm:$0xff]
    %v1647 = vld [vmem:[#allocation7 + $0xa8] sm:$0xff]
    %v1648 = vld [vmem:[#allocation7 + $0xb0] sm:$0xff]
    %v1649 = vld [vmem:[#allocation7 + $0xb8] sm:$0xff]
    %v1650 = vld [vmem:[#allocation7 + $0xc0] sm:$0xff]
    %v1651 = vld [vmem:[#allocation7 + $0xc8] sm:$0xff]
    %v1652 = vld [vmem:[#allocation7 + $0xd0] sm:$0xff]
    %v1653 = vld [vmem:[#allocation7 + $0xd8] sm:$0xff]
    %v1654 = vld [vmem:[#allocation7 + $0xe0] sm:$0xff]
    %v1655 = vld [vmem:[#allocation7 + $0xe8] sm:$0xff]
    %v1656 = vld [vmem:[#allocation7 + $0xf0] sm:$0xff]
    %v1657 = vld [vmem:[#allocation7 + $0xf8] sm:$0xff]
    %v1658 = vld [vmem:[#allocation7 + $0x100] sm:$0xff]
    %v1659 = vld [vmem:[#allocation7 + $0x108] sm:$0xff]
    %v1660 = vld [vmem:[#allocation7 + $0x110] sm:$0xff]
    %v1661 = vld [vmem:[#allocation7 + $0x118] sm:$0xff]
    %v1662 = vld [vmem:[#allocation7 + $0x120] sm:$0xff]
    %v1663 = vld [vmem:[#allocation7 + $0x128] sm:$0xff]
    %v1664 = vld [vmem:[#allocation7 + $0x130] sm:$0xff]
    %v1665 = vld [vmem:[#allocation7 + $0x138] sm:$0xff]
    %v1666 = vld [vmem:[#allocation7 + $0x140] sm:$0xff]
    %v1667 = vld [vmem:[#allocation7 + $0x148] sm:$0xff]
    %v1668 = vld [vmem:[#allocation7 + $0x150] sm:$0xff]
    %v1669 = vld [vmem:[#allocation7 + $0x158] sm:$0xff]
    %v1670 = vld [vmem:[#allocation7 + $0x160] sm:$0xff]
    %v1671 = vld [vmem:[#allocation7 + $0x168] sm:$0xff]
    %v1672 = vld [vmem:[#allocation7 + $0x170] sm:$0xff]
    %v1673 = vld [vmem:[#allocation7 + $0x178] sm:$0xff]
    %v1674 = vld [vmem:[#allocation7 + $0x180] sm:$0xff]
    %v1675 = vld [vmem:[#allocation7 + $0x188] sm:$0xff]
    %v1676 = vld [vmem:[#allocation7 + $0x190] sm:$0xff]
    %v1677 = vld [vmem:[#allocation7 + $0x198] sm:$0xff]
    %v1678 = vld [vmem:[#allocation7 + $0x1a0] sm:$0xff]
    %v1679 = vld [vmem:[#allocation7 + $0x1a8] sm:$0xff]
    %v1680 = vld [vmem:[#allocation7 + $0x1b0] sm:$0xff]
    %v1681 = vld [vmem:[#allocation7 + $0x1b8] sm:$0xff]
    %v1682 = vld [vmem:[#allocation7 + $0x1c0] sm:$0xff]
    %v1683 = vld [vmem:[#allocation7 + $0x1c8] sm:$0xff]
    %v1684 = vld [vmem:[#allocation7 + $0x1d0] sm:$0xff]
    %v1685 = vld [vmem:[#allocation7 + $0x1d8] sm:$0xff]
    %v1686 = vld [vmem:[#allocation7 + $0x1e0] sm:$0xff]
    %v1687 = vld [vmem:[#allocation7 + $0x1e8] sm:$0xff]
    %v1688 = vld [vmem:[#allocation7 + $0x1f0] sm:$0xff]
    %v1689 = vld [vmem:[#allocation7 + $0x1f8] sm:$0xff]
    %1690 = vmatprep.subr.mxu0 %v1627
    %1691 = vmatpush1.msra.mxu0 %v1626
    %1692 = vmatprep.subr.mxu0 %v1631
    %1693 = vmatpush1.msra.mxu0 %v1630
    %1694 = vmatprep.subr.mxu0 %v1635
    %1695 = vmatpush1.msra.mxu0 %v1634
    %1696 = vmatprep.subr.mxu0 %v1639
    %1697 = vmatpush1.msra.mxu0 %v1638
    %1698 = vmatprep.subr.mxu0 %v1643
    %1699 = vmatpush1.msra.mxu0 %v1642
    %1700 = vmatprep.subr.mxu0 %v1647
    %1701 = vmatpush1.msra.mxu0 %v1646
    %1702 = vmatprep.subr.mxu0 %v1651
    %1703 = vmatpush1.msra.mxu0 %v1650
    %1704 = vmatprep.subr.mxu0 %v1655
    %1705 = vmatpush1.msra.mxu0 %v1654
    %1706 = vmatprep.subr.mxu0 %v1659
    %1707 = vmatpush1.msra.mxu0 %v1658
    %1708 = vmatprep.subr.mxu0 %v1663
    %1709 = vmatpush1.msra.mxu0 %v1662
    %1710 = vmatprep.subr.mxu0 %v1667
    %1711 = vmatpush1.msra.mxu0 %v1666
    %1712 = vmatprep.subr.mxu0 %v1671
    %1713 = vmatpush1.msra.mxu0 %v1670
    %1714 = vmatprep.subr.mxu0 %v1675
    %1715 = vmatpush1.msra.mxu0 %v1674
    %1716 = vmatprep.subr.mxu0 %v1679
    %1717 = vmatpush1.msra.mxu0 %v1678
    %1718 = vmatprep.subr.mxu0 %v1683
    %1719 = vmatpush1.msra.mxu0 %v1682
    %1720 = vmatprep.subr.mxu0 %v1687
    %1721 = vmatpush1.msra.mxu0 %v1686
    %1722 = vmatprep.subr.mxu0 0.0
    %1723 = vmatpush1.msra.mxu0 0.0
    %1724 = vmatprep.subr.mxu0 0.0
    %1725 = vmatpush1.msra.mxu0 0.0
    %1726 = vmatprep.subr.mxu0 0.0
    %1727 = vmatpush1.msra.mxu0 0.0
    %1728 = vmatprep.subr.mxu0 0.0
    %1729 = vmatpush1.msra.mxu0 0.0
    %1730 = vmatprep.subr.mxu0 0.0
    %1731 = vmatpush1.msra.mxu0 0.0
    %1732 = vmatprep.subr.mxu0 0.0
    %1733 = vmatpush1.msra.mxu0 0.0
    %1734 = vmatprep.subr.mxu0 0.0
    %1735 = vmatpush1.msra.mxu0 0.0
    %1736 = vmatprep.subr.mxu0 0.0
    %1737 = vmatpush1.msra.mxu0 0.0
    %1738 = vmatprep.subr.mxu0 0.0
    %1739 = vmatpush1.msra.mxu0 0.0
    %1740 = vmatprep.subr.mxu0 0.0
    %1741 = vmatpush1.msra.mxu0 0.0
    %1742 = vmatprep.subr.mxu0 0.0
    %1743 = vmatpush1.msra.mxu0 0.0
    %1744 = vmatprep.subr.mxu0 0.0
    %1745 = vmatpush1.msra.mxu0 0.0
    %1746 = vmatprep.subr.mxu0 0.0
    %1747 = vmatpush1.msra.mxu0 0.0
    %1748 = vmatprep.subr.mxu0 0.0
    %1749 = vmatpush1.msra.mxu0 0.0
    %1750 = vmatprep.subr.mxu0 0.0
    %1751 = vmatpush1.msra.mxu0 0.0
    %1752 = vmatprep.subr.mxu0 0.0
    %1753 = vmatpush1.msra.mxu0 0.0
    %1754 = vmatprep.mubr.f32.mxu0 0.0
    %1755 = vmatmul.mubr.f32.gmra.mrb[0].mxu0 %v1545
    %v1756 = vpop.f32.mrb[0].mxu0
    %v1757 = vadd.f32 0.0, %v1756
    %v1758 = vpop.f32.mrb[0].mxu0
    %v1759 = vadd.f32 0.0, %v1758
    %1760 = vdwg.mxu0
    %1761 = vmatprep.subr.mxu0 %v1629
    %1762 = vmatpush1.msra.mxu0 %v1628
    %1763 = vmatprep.subr.mxu0 %v1633
    %1764 = vmatpush1.msra.mxu0 %v1632
    %1765 = vmatprep.subr.mxu0 %v1637
    %1766 = vmatpush1.msra.mxu0 %v1636
    %1767 = vmatprep.subr.mxu0 %v1641
    %1768 = vmatpush1.msra.mxu0 %v1640
    %1769 = vmatprep.subr.mxu0 %v1645
    %1770 = vmatpush1.msra.mxu0 %v1644
    %1771 = vmatprep.subr.mxu0 %v1649
    %1772 = vmatpush1.msra.mxu0 %v1648
    %1773 = vmatprep.subr.mxu0 %v1653
    %1774 = vmatpush1.msra.mxu0 %v1652
    %1775 = vmatprep.subr.mxu0 %v1657
    %1776 = vmatpush1.msra.mxu0 %v1656
    %1777 = vmatprep.subr.mxu0 %v1661
    %1778 = vmatpush1.msra.mxu0 %v1660
    %1779 = vmatprep.subr.mxu0 %v1665
    %1780 = vmatpush1.msra.mxu0 %v1664
    %1781 = vmatprep.subr.mxu0 %v1669
    %1782 = vmatpush1.msra.mxu0 %v1668
    %1783 = vmatprep.subr.mxu0 %v1673
    %1784 = vmatpush1.msra.mxu0 %v1672
    %1785 = vmatprep.subr.mxu0 %v1677
    %1786 = vmatpush1.msra.mxu0 %v1676
    %1787 = vmatprep.subr.mxu0 %v1681
    %1788 = vmatpush1.msra.mxu0 %v1680
    %1789 = vmatprep.subr.mxu0 %v1685
    %1790 = vmatpush1.msra.mxu0 %v1684
    %1791 = vmatprep.subr.mxu0 %v1689
    %1792 = vmatpush1.msra.mxu0 %v1688
    %1793 = vmatprep.subr.mxu0 0.0
    %1794 = vmatpush1.msra.mxu0 0.0
    %1795 = vmatprep.subr.mxu0 0.0
    %1796 = vmatpush1.msra.mxu0 0.0
    %1797 = vmatprep.subr.mxu0 0.0
    %1798 = vmatpush1.msra.mxu0 0.0
    %1799 = vmatprep.subr.mxu0 0.0
    %1800 = vmatpush1.msra.mxu0 0.0
    %1801 = vmatprep.subr.mxu0 0.0
    %1802 = vmatpush1.msra.mxu0 0.0
    %1803 = vmatprep.subr.mxu0 0.0
    %1804 = vmatpush1.msra.mxu0 0.0
    %1805 = vmatprep.subr.mxu0 0.0
    %1806 = vmatpush1.msra.mxu0 0.0
    %1807 = vmatprep.subr.mxu0 0.0
    %1808 = vmatpush1.msra.mxu0 0.0
    %1809 = vmatprep.subr.mxu0 0.0
    %1810 = vmatpush1.msra.mxu0 0.0
    %1811 = vmatprep.subr.mxu0 0.0
    %1812 = vmatpush1.msra.mxu0 0.0
    %1813 = vmatprep.subr.mxu0 0.0
    %1814 = vmatpush1.msra.mxu0 0.0
    %1815 = vmatprep.subr.mxu0 0.0
    %1816 = vmatpush1.msra.mxu0 0.0
    %1817 = vmatprep.subr.mxu0 0.0
    %1818 = vmatpush1.msra.mxu0 0.0
    %1819 = vmatprep.subr.mxu0 0.0
    %1820 = vmatpush1.msra.mxu0 0.0
    %1821 = vmatprep.subr.mxu0 0.0
    %1822 = vmatpush1.msra.mxu0 0.0
    %1823 = vmatprep.subr.mxu0 0.0
    %1824 = vmatpush1.msra.mxu0 0.0
    %1825 = vmatprep.mubr.f32.mxu0 0.0
    %1826 = vmatmul.mubr.f32.gmra.mrb[0].mxu0 %v1545
    %v1827 = vpop.f32.mrb[0].mxu0
    %v1828 = vadd.f32 0.0, %v1827
    %v1829 = vpop.f32.mrb[0].mxu0
    %v1830 = vadd.f32 0.0, %v1829
    %1831 = vdwg.mxu0
    %v1832 = vadd.f32 %v1622, %v1757
    %v1833 = vadd.f32 %v1623, %v1759
    %v1834 = vadd.f32 %v1624, %v1828
    %v1835 = vadd.f32 %v1625, %v1830
    %v1836 = vxor.u32 %v1832, 2147483648
    %v1837 = vmul.f32 %v1836, 1.442695
    %v1838 = vpow.pop %v1837
    %v1839 = vadd.f32 %v1838, 1.0
    %v1840 = vrcp.pop %v1839
    %v1841 = vmul.f32 1.0, %v1840
    %v1842 = vxor.u32 %v1833, 2147483648
    %v1843 = vmul.f32 %v1842, 1.442695
    %v1844 = vpow.pop %v1843
    %v1845 = vadd.f32 %v1844, 1.0
    %v1846 = vrcp.pop %v1845
    %v1847 = vmul.f32 1.0, %v1846
    %v1848 = vtanh.pop %v1834
    %v1849 = vxor.u32 %v1835, 2147483648
    %v1850 = vmul.f32 %v1849, 1.442695
    %v1851 = vpow.pop %v1850
    %v1852 = vadd.f32 %v1851, 1.0
    %v1853 = vrcp.pop %v1852
    %v1854 = vmul.f32 1.0, %v1853
    %v1855 = vmul.f32 %v1847, %v1543
    %v1856 = vmul.f32 %v1841, %v1848
    %v1857 = vadd.f32 %v1855, %v1856
    %v1858 = vtanh.pop %v1857
    %v1859 = vmul.f32 %v1854, %v1858
    %s1860 = sadd.s32 %s50, 5
    %v1861 = vstv %s1860
    %vm1862 = vcmp.lt.s32.totalorder %v1861, %v49
    %v1863 = vsel %vm1862, 1, 0
    %1864 = vset.pattern.permute.xlu0 0
    %1865 = vperm.xlu0 %1864, %v1863
    %v1866 = vpop.permute.xlu0 %1865
    %vm1867 = vcmp.eq.s32.totalorder %v1866, 1
    %v1868 = vsel %vm1867, %v1859, 0.0
    %v1870 = vcombine.high %v1868, %v1868
    %v1872 = vunpack.c.l.s4 1966171168
    %v1873 = vunpack.c.0.s8 %v1872
    %v1874 = vlaneseq
    %v1875 = vshrl.u32 %v1874, 7
    %v1876 = vsub.s32 %v1873, %v1875
    %v1877 = vrot.slane %v1868, %v1876
    %v1879 = vunpack.c.l.s4 1966171168
    %v1880 = vunpack.c.0.s8 %v1879
    %v1881 = vlaneseq
    %v1882 = vshrl.u32 %v1881, 7
    %v1883 = vsub.s32 %v1880, %v1882
    %v1884 = vrot.slane %v1870, %v1883
    %v1885 = vcombine.high %v1877, %v1877
    %v1886 = vcombine.high %v1884, %v1884
    %v1888 = vunpack.c.l.s4 1966171168
    %v1889 = vunpack.c.0.s8 %v1888
    %v1890 = vlaneseq
    %v1891 = vshrl.u32 %v1890, 7
    %v1892 = vsub.s32 %v1889, %v1891
    %v1893 = vrot.slane %v1877, %v1892
    %v1895 = vunpack.c.l.s4 1966171168
    %v1896 = vunpack.c.0.s8 %v1895
    %v1897 = vlaneseq
    %v1898 = vshrl.u32 %v1897, 7
    %v1899 = vsub.s32 %v1896, %v1898
    %v1900 = vrot.slane %v1884, %v1899
    %v1902 = vunpack.c.l.s4 1966171168
    %v1903 = vunpack.c.0.s8 %v1902
    %v1904 = vlaneseq
    %v1905 = vshrl.u32 %v1904, 7
    %v1906 = vsub.s32 %v1903, %v1905
    %v1907 = vrot.slane %v1885, %v1906
    %v1909 = vunpack.c.l.s4 1966171168
    %v1910 = vunpack.c.0.s8 %v1909
    %v1911 = vlaneseq
    %v1912 = vshrl.u32 %v1911, 7
    %v1913 = vsub.s32 %v1910, %v1912
    %v1914 = vrot.slane %v1886, %v1913
    %v1915 = vcombine.high %v1893, %v1893
    %v1916 = vcombine.high %v1900, %v1900
    %v1917 = vcombine.high %v1907, %v1907
    %v1918 = vcombine.high %v1914, %v1914
    %1927 = vst [vmem:[#allocation9 + $0x5] sm:$0x1] %v1893
    %1928 = vst [vmem:[#allocation9 + $0xd] sm:$0x1] %v1907
    %1929 = vst [vmem:[#allocation9 + $0x15] sm:$0x1] %v1915
    %1930 = vst [vmem:[#allocation9 + $0x1d] sm:$0x1] %v1917
    %1931 = vst [vmem:[#allocation9 + $0x25] sm:$0x1] %v1900
    %1932 = vst [vmem:[#allocation9 + $0x2d] sm:$0x1] %v1914
    %1933 = vst [vmem:[#allocation9 + $0x35] sm:$0x1] %v1916
    %1934 = vst [vmem:[#allocation9 + $0x3d] sm:$0x1] %v1918
    %s1935 = scalar_lea.vmem [#allocation4], 192
    %v1936 = vld [vmem:[%s1935] sm:$0xff]
    %v1937 = vld [vmem:[%s1935 + $0x8] sm:$0xff]
    %v1938 = vld [vmem:[%s1935 + $0x10] sm:$0xff]
    %v1939 = vld [vmem:[%s1935 + $0x18] sm:$0xff]
    %v1940 = vld [vmem:[#allocation7] sm:$0xff]
    %v1941 = vld [vmem:[#allocation7 + $0x8] sm:$0xff]
    %v1942 = vld [vmem:[#allocation7 + $0x10] sm:$0xff]
    %v1943 = vld [vmem:[#allocation7 + $0x18] sm:$0xff]
    %v1944 = vld [vmem:[#allocation7 + $0x20] sm:$0xff]
    %v1945 = vld [vmem:[#allocation7 + $0x28] sm:$0xff]
    %v1946 = vld [vmem:[#allocation7 + $0x30] sm:$0xff]
    %v1947 = vld [vmem:[#allocation7 + $0x38] sm:$0xff]
    %v1948 = vld [vmem:[#allocation7 + $0x40] sm:$0xff]
    %v1949 = vld [vmem:[#allocation7 + $0x48] sm:$0xff]
    %v1950 = vld [vmem:[#allocation7 + $0x50] sm:$0xff]
    %v1951 = vld [vmem:[#allocation7 + $0x58] sm:$0xff]
    %v1952 = vld [vmem:[#allocation7 + $0x60] sm:$0xff]
    %v1953 = vld [vmem:[#allocation7 + $0x68] sm:$0xff]
    %v1954 = vld [vmem:[#allocation7 + $0x70] sm:$0xff]
    %v1955 = vld [vmem:[#allocation7 + $0x78] sm:$0xff]
    %v1956 = vld [vmem:[#allocation7 + $0x80] sm:$0xff]
    %v1957 = vld [vmem:[#allocation7 + $0x88] sm:$0xff]
    %v1958 = vld [vmem:[#allocation7 + $0x90] sm:$0xff]
    %v1959 = vld [vmem:[#allocation7 + $0x98] sm:$0xff]
    %v1960 = vld [vmem:[#allocation7 + $0xa0] sm:$0xff]
    %v1961 = vld [vmem:[#allocation7 + $0xa8] sm:$0xff]
    %v1962 = vld [vmem:[#allocation7 + $0xb0] sm:$0xff]
    %v1963 = vld [vmem:[#allocation7 + $0xb8] sm:$0xff]
    %v1964 = vld [vmem:[#allocation7 + $0xc0] sm:$0xff]
    %v1965 = vld [vmem:[#allocation7 + $0xc8] sm:$0xff]
    %v1966 = vld [vmem:[#allocation7 + $0xd0] sm:$0xff]
    %v1967 = vld [vmem:[#allocation7 + $0xd8] sm:$0xff]
    %v1968 = vld [vmem:[#allocation7 + $0xe0] sm:$0xff]
    %v1969 = vld [vmem:[#allocation7 + $0xe8] sm:$0xff]
    %v1970 = vld [vmem:[#allocation7 + $0xf0] sm:$0xff]
    %v1971 = vld [vmem:[#allocation7 + $0xf8] sm:$0xff]
    %v1972 = vld [vmem:[#allocation7 + $0x100] sm:$0xff]
    %v1973 = vld [vmem:[#allocation7 + $0x108] sm:$0xff]
    %v1974 = vld [vmem:[#allocation7 + $0x110] sm:$0xff]
    %v1975 = vld [vmem:[#allocation7 + $0x118] sm:$0xff]
    %v1976 = vld [vmem:[#allocation7 + $0x120] sm:$0xff]
    %v1977 = vld [vmem:[#allocation7 + $0x128] sm:$0xff]
    %v1978 = vld [vmem:[#allocation7 + $0x130] sm:$0xff]
    %v1979 = vld [vmem:[#allocation7 + $0x138] sm:$0xff]
    %v1980 = vld [vmem:[#allocation7 + $0x140] sm:$0xff]
    %v1981 = vld [vmem:[#allocation7 + $0x148] sm:$0xff]
    %v1982 = vld [vmem:[#allocation7 + $0x150] sm:$0xff]
    %v1983 = vld [vmem:[#allocation7 + $0x158] sm:$0xff]
    %v1984 = vld [vmem:[#allocation7 + $0x160] sm:$0xff]
    %v1985 = vld [vmem:[#allocation7 + $0x168] sm:$0xff]
    %v1986 = vld [vmem:[#allocation7 + $0x170] sm:$0xff]
    %v1987 = vld [vmem:[#allocation7 + $0x178] sm:$0xff]
    %v1988 = vld [vmem:[#allocation7 + $0x180] sm:$0xff]
    %v1989 = vld [vmem:[#allocation7 + $0x188] sm:$0xff]
    %v1990 = vld [vmem:[#allocation7 + $0x190] sm:$0xff]
    %v1991 = vld [vmem:[#allocation7 + $0x198] sm:$0xff]
    %v1992 = vld [vmem:[#allocation7 + $0x1a0] sm:$0xff]
    %v1993 = vld [vmem:[#allocation7 + $0x1a8] sm:$0xff]
    %v1994 = vld [vmem:[#allocation7 + $0x1b0] sm:$0xff]
    %v1995 = vld [vmem:[#allocation7 + $0x1b8] sm:$0xff]
    %v1996 = vld [vmem:[#allocation7 + $0x1c0] sm:$0xff]
    %v1997 = vld [vmem:[#allocation7 + $0x1c8] sm:$0xff]
    %v1998 = vld [vmem:[#allocation7 + $0x1d0] sm:$0xff]
    %v1999 = vld [vmem:[#allocation7 + $0x1d8] sm:$0xff]
    %v2000 = vld [vmem:[#allocation7 + $0x1e0] sm:$0xff]
    %v2001 = vld [vmem:[#allocation7 + $0x1e8] sm:$0xff]
    %v2002 = vld [vmem:[#allocation7 + $0x1f0] sm:$0xff]
    %v2003 = vld [vmem:[#allocation7 + $0x1f8] sm:$0xff]
    %2004 = vmatprep.subr.mxu0 %v1941
    %2005 = vmatpush1.msra.mxu0 %v1940
    %2006 = vmatprep.subr.mxu0 %v1945
    %2007 = vmatpush1.msra.mxu0 %v1944
    %2008 = vmatprep.subr.mxu0 %v1949
    %2009 = vmatpush1.msra.mxu0 %v1948
    %2010 = vmatprep.subr.mxu0 %v1953
    %2011 = vmatpush1.msra.mxu0 %v1952
    %2012 = vmatprep.subr.mxu0 %v1957
    %2013 = vmatpush1.msra.mxu0 %v1956
    %2014 = vmatprep.subr.mxu0 %v1961
    %2015 = vmatpush1.msra.mxu0 %v1960
    %2016 = vmatprep.subr.mxu0 %v1965
    %2017 = vmatpush1.msra.mxu0 %v1964
    %2018 = vmatprep.subr.mxu0 %v1969
    %2019 = vmatpush1.msra.mxu0 %v1968
    %2020 = vmatprep.subr.mxu0 %v1973
    %2021 = vmatpush1.msra.mxu0 %v1972
    %2022 = vmatprep.subr.mxu0 %v1977
    %2023 = vmatpush1.msra.mxu0 %v1976
    %2024 = vmatprep.subr.mxu0 %v1981
    %2025 = vmatpush1.msra.mxu0 %v1980
    %2026 = vmatprep.subr.mxu0 %v1985
    %2027 = vmatpush1.msra.mxu0 %v1984
    %2028 = vmatprep.subr.mxu0 %v1989
    %2029 = vmatpush1.msra.mxu0 %v1988
    %2030 = vmatprep.subr.mxu0 %v1993
    %2031 = vmatpush1.msra.mxu0 %v1992
    %2032 = vmatprep.subr.mxu0 %v1997
    %2033 = vmatpush1.msra.mxu0 %v1996
    %2034 = vmatprep.subr.mxu0 %v2001
    %2035 = vmatpush1.msra.mxu0 %v2000
    %2036 = vmatprep.subr.mxu0 0.0
    %2037 = vmatpush1.msra.mxu0 0.0
    %2038 = vmatprep.subr.mxu0 0.0
    %2039 = vmatpush1.msra.mxu0 0.0
    %2040 = vmatprep.subr.mxu0 0.0
    %2041 = vmatpush1.msra.mxu0 0.0
    %2042 = vmatprep.subr.mxu0 0.0
    %2043 = vmatpush1.msra.mxu0 0.0
    %2044 = vmatprep.subr.mxu0 0.0
    %2045 = vmatpush1.msra.mxu0 0.0
    %2046 = vmatprep.subr.mxu0 0.0
    %2047 = vmatpush1.msra.mxu0 0.0
    %2048 = vmatprep.subr.mxu0 0.0
    %2049 = vmatpush1.msra.mxu0 0.0
    %2050 = vmatprep.subr.mxu0 0.0
    %2051 = vmatpush1.msra.mxu0 0.0
    %2052 = vmatprep.subr.mxu0 0.0
    %2053 = vmatpush1.msra.mxu0 0.0
    %2054 = vmatprep.subr.mxu0 0.0
    %2055 = vmatpush1.msra.mxu0 0.0
    %2056 = vmatprep.subr.mxu0 0.0
    %2057 = vmatpush1.msra.mxu0 0.0
    %2058 = vmatprep.subr.mxu0 0.0
    %2059 = vmatpush1.msra.mxu0 0.0
    %2060 = vmatprep.subr.mxu0 0.0
    %2061 = vmatpush1.msra.mxu0 0.0
    %2062 = vmatprep.subr.mxu0 0.0
    %2063 = vmatpush1.msra.mxu0 0.0
    %2064 = vmatprep.subr.mxu0 0.0
    %2065 = vmatpush1.msra.mxu0 0.0
    %2066 = vmatprep.subr.mxu0 0.0
    %2067 = vmatpush1.msra.mxu0 0.0
    %2068 = vmatprep.mubr.f32.mxu0 0.0
    %2069 = vmatmul.mubr.f32.gmra.mrb[0].mxu0 %v1859
    %v2070 = vpop.f32.mrb[0].mxu0
    %v2071 = vadd.f32 0.0, %v2070
    %v2072 = vpop.f32.mrb[0].mxu0
    %v2073 = vadd.f32 0.0, %v2072
    %2074 = vdwg.mxu0
    %2075 = vmatprep.subr.mxu0 %v1943
    %2076 = vmatpush1.msra.mxu0 %v1942
    %2077 = vmatprep.subr.mxu0 %v1947
    %2078 = vmatpush1.msra.mxu0 %v1946
    %2079 = vmatprep.subr.mxu0 %v1951
    %2080 = vmatpush1.msra.mxu0 %v1950
    %2081 = vmatprep.subr.mxu0 %v1955
    %2082 = vmatpush1.msra.mxu0 %v1954
    %2083 = vmatprep.subr.mxu0 %v1959
    %2084 = vmatpush1.msra.mxu0 %v1958
    %2085 = vmatprep.subr.mxu0 %v1963
    %2086 = vmatpush1.msra.mxu0 %v1962
    %2087 = vmatprep.subr.mxu0 %v1967
    %2088 = vmatpush1.msra.mxu0 %v1966
    %2089 = vmatprep.subr.mxu0 %v1971
    %2090 = vmatpush1.msra.mxu0 %v1970
    %2091 = vmatprep.subr.mxu0 %v1975
    %2092 = vmatpush1.msra.mxu0 %v1974
    %2093 = vmatprep.subr.mxu0 %v1979
    %2094 = vmatpush1.msra.mxu0 %v1978
    %2095 = vmatprep.subr.mxu0 %v1983
    %2096 = vmatpush1.msra.mxu0 %v1982
    %2097 = vmatprep.subr.mxu0 %v1987
    %2098 = vmatpush1.msra.mxu0 %v1986
    %2099 = vmatprep.subr.mxu0 %v1991
    %2100 = vmatpush1.msra.mxu0 %v1990
    %2101 = vmatprep.subr.mxu0 %v1995
    %2102 = vmatpush1.msra.mxu0 %v1994
    %2103 = vmatprep.subr.mxu0 %v1999
    %2104 = vmatpush1.msra.mxu0 %v1998
    %2105 = vmatprep.subr.mxu0 %v2003
    %2106 = vmatpush1.msra.mxu0 %v2002
    %2107 = vmatprep.subr.mxu0 0.0
    %2108 = vmatpush1.msra.mxu0 0.0
    %2109 = vmatprep.subr.mxu0 0.0
    %2110 = vmatpush1.msra.mxu0 0.0
    %2111 = vmatprep.subr.mxu0 0.0
    %2112 = vmatpush1.msra.mxu0 0.0
    %2113 = vmatprep.subr.mxu0 0.0
    %2114 = vmatpush1.msra.mxu0 0.0
    %2115 = vmatprep.subr.mxu0 0.0
    %2116 = vmatpush1.msra.mxu0 0.0
    %2117 = vmatprep.subr.mxu0 0.0
    %2118 = vmatpush1.msra.mxu0 0.0
    %2119 = vmatprep.subr.mxu0 0.0
    %2120 = vmatpush1.msra.mxu0 0.0
    %2121 = vmatprep.subr.mxu0 0.0
    %2122 = vmatpush1.msra.mxu0 0.0
    %2123 = vmatprep.subr.mxu0 0.0
    %2124 = vmatpush1.msra.mxu0 0.0
    %2125 = vmatprep.subr.mxu0 0.0
    %2126 = vmatpush1.msra.mxu0 0.0
    %2127 = vmatprep.subr.mxu0 0.0
    %2128 = vmatpush1.msra.mxu0 0.0
    %2129 = vmatprep.subr.mxu0 0.0
    %2130 = vmatpush1.msra.mxu0 0.0
    %2131 = vmatprep.subr.mxu0 0.0
    %2132 = vmatpush1.msra.mxu0 0.0
    %2133 = vmatprep.subr.mxu0 0.0
    %2134 = vmatpush1.msra.mxu0 0.0
    %2135 = vmatprep.subr.mxu0 0.0
    %2136 = vmatpush1.msra.mxu0 0.0
    %2137 = vmatprep.subr.mxu0 0.0
    %2138 = vmatpush1.msra.mxu0 0.0
    %2139 = vmatprep.mubr.f32.mxu0 0.0
    %2140 = vmatmul.mubr.f32.gmra.mrb[0].mxu0 %v1859
    %v2141 = vpop.f32.mrb[0].mxu0
    %v2142 = vadd.f32 0.0, %v2141
    %v2143 = vpop.f32.mrb[0].mxu0
    %v2144 = vadd.f32 0.0, %v2143
    %2145 = vdwg.mxu0
    %v2146 = vadd.f32 %v1936, %v2071
    %v2147 = vadd.f32 %v1937, %v2073
    %v2148 = vadd.f32 %v1938, %v2142
    %v2149 = vadd.f32 %v1939, %v2144
    %v2150 = vxor.u32 %v2146, 2147483648
    %v2151 = vmul.f32 %v2150, 1.442695
    %v2152 = vpow.pop %v2151
    %v2153 = vadd.f32 %v2152, 1.0
    %v2154 = vrcp.pop %v2153
    %v2155 = vmul.f32 1.0, %v2154
    %v2156 = vxor.u32 %v2147, 2147483648
    %v2157 = vmul.f32 %v2156, 1.442695
    %v2158 = vpow.pop %v2157
    %v2159 = vadd.f32 %v2158, 1.0
    %v2160 = vrcp.pop %v2159
    %v2161 = vmul.f32 1.0, %v2160
    %v2162 = vtanh.pop %v2148
    %v2163 = vxor.u32 %v2149, 2147483648
    %v2164 = vmul.f32 %v2163, 1.442695
    %v2165 = vpow.pop %v2164
    %v2166 = vadd.f32 %v2165, 1.0
    %v2167 = vrcp.pop %v2166
    %v2168 = vmul.f32 1.0, %v2167
    %v2169 = vmul.f32 %v2161, %v1857
    %v2170 = vmul.f32 %v2155, %v2162
    %v2171 = vadd.f32 %v2169, %v2170
    %v2172 = vtanh.pop %v2171
    %v2173 = vmul.f32 %v2168, %v2172
    %s2174 = sadd.s32 %s50, 6
    %v2175 = vstv %s2174
    %vm2176 = vcmp.lt.s32.totalorder %v2175, %v49
    %v2177 = vsel %vm2176, 1, 0
    %2178 = vset.pattern.permute.xlu0 0
    %2179 = vperm.xlu0 %2178, %v2177
    %v2180 = vpop.permute.xlu0 %2179
    %vm2181 = vcmp.eq.s32.totalorder %v2180, 1
    %v2182 = vsel %vm2181, %v2173, 0.0
    %v2184 = vcombine.high %v2182, %v2182
    %v2186 = vunpack.c.l.s4 1966171168
    %v2187 = vunpack.c.0.s8 %v2186
    %v2188 = vlaneseq
    %v2189 = vshrl.u32 %v2188, 7
    %v2190 = vsub.s32 %v2187, %v2189
    %v2191 = vrot.slane %v2182, %v2190
    %v2193 = vunpack.c.l.s4 1966171168
    %v2194 = vunpack.c.0.s8 %v2193
    %v2195 = vlaneseq
    %v2196 = vshrl.u32 %v2195, 7
    %v2197 = vsub.s32 %v2194, %v2196
    %v2198 = vrot.slane %v2184, %v2197
    %v2199 = vcombine.high %v2191, %v2191
    %v2200 = vcombine.high %v2198, %v2198
    %v2202 = vunpack.c.l.s4 1966171168
    %v2203 = vunpack.c.0.s8 %v2202
    %v2204 = vlaneseq
    %v2205 = vshrl.u32 %v2204, 7
    %v2206 = vsub.s32 %v2203, %v2205
    %v2207 = vrot.slane %v2191, %v2206
    %v2209 = vunpack.c.l.s4 1966171168
    %v2210 = vunpack.c.0.s8 %v2209
    %v2211 = vlaneseq
    %v2212 = vshrl.u32 %v2211, 7
    %v2213 = vsub.s32 %v2210, %v2212
    %v2214 = vrot.slane %v2198, %v2213
    %v2216 = vunpack.c.l.s4 1966171168
    %v2217 = vunpack.c.0.s8 %v2216
    %v2218 = vlaneseq
    %v2219 = vshrl.u32 %v2218, 7
    %v2220 = vsub.s32 %v2217, %v2219
    %v2221 = vrot.slane %v2199, %v2220
    %v2223 = vunpack.c.l.s4 1966171168
    %v2224 = vunpack.c.0.s8 %v2223
    %v2225 = vlaneseq
    %v2226 = vshrl.u32 %v2225, 7
    %v2227 = vsub.s32 %v2224, %v2226
    %v2228 = vrot.slane %v2200, %v2227
    %v2229 = vcombine.high %v2207, %v2207
    %v2230 = vcombine.high %v2214, %v2214
    %v2231 = vcombine.high %v2221, %v2221
    %v2232 = vcombine.high %v2228, %v2228
    %2241 = vst [vmem:[#allocation9 + $0x6] sm:$0x1] %v2207
    %2242 = vst [vmem:[#allocation9 + $0xe] sm:$0x1] %v2221
    %2243 = vst [vmem:[#allocation9 + $0x16] sm:$0x1] %v2229
    %2244 = vst [vmem:[#allocation9 + $0x1e] sm:$0x1] %v2231
    %2245 = vst [vmem:[#allocation9 + $0x26] sm:$0x1] %v2214
    %2246 = vst [vmem:[#allocation9 + $0x2e] sm:$0x1] %v2228
    %2247 = vst [vmem:[#allocation9 + $0x36] sm:$0x1] %v2230
    %2248 = vst [vmem:[#allocation9 + $0x3e] sm:$0x1] %v2232
    %s2249 = scalar_lea.vmem [#allocation4], 224
    %v2250 = vld [vmem:[%s2249] sm:$0xff]
    %v2251 = vld [vmem:[%s2249 + $0x8] sm:$0xff]
    %v2252 = vld [vmem:[%s2249 + $0x10] sm:$0xff]
    %v2253 = vld [vmem:[%s2249 + $0x18] sm:$0xff]
    %v2254 = vld [vmem:[#allocation7] sm:$0xff]
    %v2255 = vld [vmem:[#allocation7 + $0x8] sm:$0xff]
    %v2256 = vld [vmem:[#allocation7 + $0x10] sm:$0xff]
    %v2257 = vld [vmem:[#allocation7 + $0x18] sm:$0xff]
    %v2258 = vld [vmem:[#allocation7 + $0x20] sm:$0xff]
    %v2259 = vld [vmem:[#allocation7 + $0x28] sm:$0xff]
    %v2260 = vld [vmem:[#allocation7 + $0x30] sm:$0xff]
    %v2261 = vld [vmem:[#allocation7 + $0x38] sm:$0xff]
    %v2262 = vld [vmem:[#allocation7 + $0x40] sm:$0xff]
    %v2263 = vld [vmem:[#allocation7 + $0x48] sm:$0xff]
    %v2264 = vld [vmem:[#allocation7 + $0x50] sm:$0xff]
    %v2265 = vld [vmem:[#allocation7 + $0x58] sm:$0xff]
    %v2266 = vld [vmem:[#allocation7 + $0x60] sm:$0xff]
    %v2267 = vld [vmem:[#allocation7 + $0x68] sm:$0xff]
    %v2268 = vld [vmem:[#allocation7 + $0x70] sm:$0xff]
    %v2269 = vld [vmem:[#allocation7 + $0x78] sm:$0xff]
    %v2270 = vld [vmem:[#allocation7 + $0x80] sm:$0xff]
    %v2271 = vld [vmem:[#allocation7 + $0x88] sm:$0xff]
    %v2272 = vld [vmem:[#allocation7 + $0x90] sm:$0xff]
    %v2273 = vld [vmem:[#allocation7 + $0x98] sm:$0xff]
    %v2274 = vld [vmem:[#allocation7 + $0xa0] sm:$0xff]
    %v2275 = vld [vmem:[#allocation7 + $0xa8] sm:$0xff]
    %v2276 = vld [vmem:[#allocation7 + $0xb0] sm:$0xff]
    %v2277 = vld [vmem:[#allocation7 + $0xb8] sm:$0xff]
    %v2278 = vld [vmem:[#allocation7 + $0xc0] sm:$0xff]
    %v2279 = vld [vmem:[#allocation7 + $0xc8] sm:$0xff]
    %v2280 = vld [vmem:[#allocation7 + $0xd0] sm:$0xff]
    %v2281 = vld [vmem:[#allocation7 + $0xd8] sm:$0xff]
    %v2282 = vld [vmem:[#allocation7 + $0xe0] sm:$0xff]
    %v2283 = vld [vmem:[#allocation7 + $0xe8] sm:$0xff]
    %v2284 = vld [vmem:[#allocation7 + $0xf0] sm:$0xff]
    %v2285 = vld [vmem:[#allocation7 + $0xf8] sm:$0xff]
    %v2286 = vld [vmem:[#allocation7 + $0x100] sm:$0xff]
    %v2287 = vld [vmem:[#allocation7 + $0x108] sm:$0xff]
    %v2288 = vld [vmem:[#allocation7 + $0x110] sm:$0xff]
    %v2289 = vld [vmem:[#allocation7 + $0x118] sm:$0xff]
    %v2290 = vld [vmem:[#allocation7 + $0x120] sm:$0xff]
    %v2291 = vld [vmem:[#allocation7 + $0x128] sm:$0xff]
    %v2292 = vld [vmem:[#allocation7 + $0x130] sm:$0xff]
    %v2293 = vld [vmem:[#allocation7 + $0x138] sm:$0xff]
    %v2294 = vld [vmem:[#allocation7 + $0x140] sm:$0xff]
    %v2295 = vld [vmem:[#allocation7 + $0x148] sm:$0xff]
    %v2296 = vld [vmem:[#allocation7 + $0x150] sm:$0xff]
    %v2297 = vld [vmem:[#allocation7 + $0x158] sm:$0xff]
    %v2298 = vld [vmem:[#allocation7 + $0x160] sm:$0xff]
    %v2299 = vld [vmem:[#allocation7 + $0x168] sm:$0xff]
    %v2300 = vld [vmem:[#allocation7 + $0x170] sm:$0xff]
    %v2301 = vld [vmem:[#allocation7 + $0x178] sm:$0xff]
    %v2302 = vld [vmem:[#allocation7 + $0x180] sm:$0xff]
    %v2303 = vld [vmem:[#allocation7 + $0x188] sm:$0xff]
    %v2304 = vld [vmem:[#allocation7 + $0x190] sm:$0xff]
    %v2305 = vld [vmem:[#allocation7 + $0x198] sm:$0xff]
    %v2306 = vld [vmem:[#allocation7 + $0x1a0] sm:$0xff]
    %v2307 = vld [vmem:[#allocation7 + $0x1a8] sm:$0xff]
    %v2308 = vld [vmem:[#allocation7 + $0x1b0] sm:$0xff]
    %v2309 = vld [vmem:[#allocation7 + $0x1b8] sm:$0xff]
    %v2310 = vld [vmem:[#allocation7 + $0x1c0] sm:$0xff]
    %v2311 = vld [vmem:[#allocation7 + $0x1c8] sm:$0xff]
    %v2312 = vld [vmem:[#allocation7 + $0x1d0] sm:$0xff]
    %v2313 = vld [vmem:[#allocation7 + $0x1d8] sm:$0xff]
    %v2314 = vld [vmem:[#allocation7 + $0x1e0] sm:$0xff]
    %v2315 = vld [vmem:[#allocation7 + $0x1e8] sm:$0xff]
    %v2316 = vld [vmem:[#allocation7 + $0x1f0] sm:$0xff]
    %v2317 = vld [vmem:[#allocation7 + $0x1f8] sm:$0xff]
    %2318 = vmatprep.subr.mxu0 %v2255
    %2319 = vmatpush1.msra.mxu0 %v2254
    %2320 = vmatprep.subr.mxu0 %v2259
    %2321 = vmatpush1.msra.mxu0 %v2258
    %2322 = vmatprep.subr.mxu0 %v2263
    %2323 = vmatpush1.msra.mxu0 %v2262
    %2324 = vmatprep.subr.mxu0 %v2267
    %2325 = vmatpush1.msra.mxu0 %v2266
    %2326 = vmatprep.subr.mxu0 %v2271
    %2327 = vmatpush1.msra.mxu0 %v2270
    %2328 = vmatprep.subr.mxu0 %v2275
    %2329 = vmatpush1.msra.mxu0 %v2274
    %2330 = vmatprep.subr.mxu0 %v2279
    %2331 = vmatpush1.msra.mxu0 %v2278
    %2332 = vmatprep.subr.mxu0 %v2283
    %2333 = vmatpush1.msra.mxu0 %v2282
    %2334 = vmatprep.subr.mxu0 %v2287
    %2335 = vmatpush1.msra.mxu0 %v2286
    %2336 = vmatprep.subr.mxu0 %v2291
    %2337 = vmatpush1.msra.mxu0 %v2290
    %2338 = vmatprep.subr.mxu0 %v2295
    %2339 = vmatpush1.msra.mxu0 %v2294
    %2340 = vmatprep.subr.mxu0 %v2299
    %2341 = vmatpush1.msra.mxu0 %v2298
    %2342 = vmatprep.subr.mxu0 %v2303
    %2343 = vmatpush1.msra.mxu0 %v2302
    %2344 = vmatprep.subr.mxu0 %v2307
    %2345 = vmatpush1.msra.mxu0 %v2306
    %2346 = vmatprep.subr.mxu0 %v2311
    %2347 = vmatpush1.msra.mxu0 %v2310
    %2348 = vmatprep.subr.mxu0 %v2315
    %2349 = vmatpush1.msra.mxu0 %v2314
    %2350 = vmatprep.subr.mxu0 0.0
    %2351 = vmatpush1.msra.mxu0 0.0
    %2352 = vmatprep.subr.mxu0 0.0
    %2353 = vmatpush1.msra.mxu0 0.0
    %2354 = vmatprep.subr.mxu0 0.0
    %2355 = vmatpush1.msra.mxu0 0.0
    %2356 = vmatprep.subr.mxu0 0.0
    %2357 = vmatpush1.msra.mxu0 0.0
    %2358 = vmatprep.subr.mxu0 0.0
    %2359 = vmatpush1.msra.mxu0 0.0
    %2360 = vmatprep.subr.mxu0 0.0
    %2361 = vmatpush1.msra.mxu0 0.0
    %2362 = vmatprep.subr.mxu0 0.0
    %2363 = vmatpush1.msra.mxu0 0.0
    %2364 = vmatprep.subr.mxu0 0.0
    %2365 = vmatpush1.msra.mxu0 0.0
    %2366 = vmatprep.subr.mxu0 0.0
    %2367 = vmatpush1.msra.mxu0 0.0
    %2368 = vmatprep.subr.mxu0 0.0
    %2369 = vmatpush1.msra.mxu0 0.0
    %2370 = vmatprep.subr.mxu0 0.0
    %2371 = vmatpush1.msra.mxu0 0.0
    %2372 = vmatprep.subr.mxu0 0.0
    %2373 = vmatpush1.msra.mxu0 0.0
    %2374 = vmatprep.subr.mxu0 0.0
    %2375 = vmatpush1.msra.mxu0 0.0
    %2376 = vmatprep.subr.mxu0 0.0
    %2377 = vmatpush1.msra.mxu0 0.0
    %2378 = vmatprep.subr.mxu0 0.0
    %2379 = vmatpush1.msra.mxu0 0.0
    %2380 = vmatprep.subr.mxu0 0.0
    %2381 = vmatpush1.msra.mxu0 0.0
    %2382 = vmatprep.mubr.f32.mxu0 0.0
    %2383 = vmatmul.mubr.f32.gmra.mrb[0].mxu0 %v2173
    %v2384 = vpop.f32.mrb[0].mxu0
    %v2385 = vadd.f32 0.0, %v2384
    %v2386 = vpop.f32.mrb[0].mxu0
    %v2387 = vadd.f32 0.0, %v2386
    %2388 = vdwg.mxu0
    %2389 = vmatprep.subr.mxu0 %v2257
    %2390 = vmatpush1.msra.mxu0 %v2256
    %2391 = vmatprep.subr.mxu0 %v2261
    %2392 = vmatpush1.msra.mxu0 %v2260
    %2393 = vmatprep.subr.mxu0 %v2265
    %2394 = vmatpush1.msra.mxu0 %v2264
    %2395 = vmatprep.subr.mxu0 %v2269
    %2396 = vmatpush1.msra.mxu0 %v2268
    %2397 = vmatprep.subr.mxu0 %v2273
    %2398 = vmatpush1.msra.mxu0 %v2272
    %2399 = vmatprep.subr.mxu0 %v2277
    %2400 = vmatpush1.msra.mxu0 %v2276
    %2401 = vmatprep.subr.mxu0 %v2281
    %2402 = vmatpush1.msra.mxu0 %v2280
    %2403 = vmatprep.subr.mxu0 %v2285
    %2404 = vmatpush1.msra.mxu0 %v2284
    %2405 = vmatprep.subr.mxu0 %v2289
    %2406 = vmatpush1.msra.mxu0 %v2288
    %2407 = vmatprep.subr.mxu0 %v2293
    %2408 = vmatpush1.msra.mxu0 %v2292
    %2409 = vmatprep.subr.mxu0 %v2297
    %2410 = vmatpush1.msra.mxu0 %v2296
    %2411 = vmatprep.subr.mxu0 %v2301
    %2412 = vmatpush1.msra.mxu0 %v2300
    %2413 = vmatprep.subr.mxu0 %v2305
    %2414 = vmatpush1.msra.mxu0 %v2304
    %2415 = vmatprep.subr.mxu0 %v2309
    %2416 = vmatpush1.msra.mxu0 %v2308
    %2417 = vmatprep.subr.mxu0 %v2313
    %2418 = vmatpush1.msra.mxu0 %v2312
    %2419 = vmatprep.subr.mxu0 %v2317
    %2420 = vmatpush1.msra.mxu0 %v2316
    %2421 = vmatprep.subr.mxu0 0.0
    %2422 = vmatpush1.msra.mxu0 0.0
    %2423 = vmatprep.subr.mxu0 0.0
    %2424 = vmatpush1.msra.mxu0 0.0
    %2425 = vmatprep.subr.mxu0 0.0
    %2426 = vmatpush1.msra.mxu0 0.0
    %2427 = vmatprep.subr.mxu0 0.0
    %2428 = vmatpush1.msra.mxu0 0.0
    %2429 = vmatprep.subr.mxu0 0.0
    %2430 = vmatpush1.msra.mxu0 0.0
    %2431 = vmatprep.subr.mxu0 0.0
    %2432 = vmatpush1.msra.mxu0 0.0
    %2433 = vmatprep.subr.mxu0 0.0
    %2434 = vmatpush1.msra.mxu0 0.0
    %2435 = vmatprep.subr.mxu0 0.0
    %2436 = vmatpush1.msra.mxu0 0.0
    %2437 = vmatprep.subr.mxu0 0.0
    %2438 = vmatpush1.msra.mxu0 0.0
    %2439 = vmatprep.subr.mxu0 0.0
    %2440 = vmatpush1.msra.mxu0 0.0
    %2441 = vmatprep.subr.mxu0 0.0
    %2442 = vmatpush1.msra.mxu0 0.0
    %2443 = vmatprep.subr.mxu0 0.0
    %2444 = vmatpush1.msra.mxu0 0.0
    %2445 = vmatprep.subr.mxu0 0.0
    %2446 = vmatpush1.msra.mxu0 0.0
    %2447 = vmatprep.subr.mxu0 0.0
    %2448 = vmatpush1.msra.mxu0 0.0
    %2449 = vmatprep.subr.mxu0 0.0
    %2450 = vmatpush1.msra.mxu0 0.0
    %2451 = vmatprep.subr.mxu0 0.0
    %2452 = vmatpush1.msra.mxu0 0.0
    %2453 = vmatprep.mubr.f32.mxu0 0.0
    %2454 = vmatmul.mubr.f32.gmra.mrb[0].mxu0 %v2173
    %v2455 = vpop.f32.mrb[0].mxu0
    %v2456 = vadd.f32 0.0, %v2455
    %v2457 = vpop.f32.mrb[0].mxu0
    %v2458 = vadd.f32 0.0, %v2457
    %2459 = vdwg.mxu0
    %v2460 = vadd.f32 %v2250, %v2385
    %v2461 = vadd.f32 %v2251, %v2387
    %v2462 = vadd.f32 %v2252, %v2456
    %v2463 = vadd.f32 %v2253, %v2458
    %v2464 = vxor.u32 %v2460, 2147483648
    %v2465 = vmul.f32 %v2464, 1.442695
    %v2466 = vpow.pop %v2465
    %v2467 = vadd.f32 %v2466, 1.0
    %v2468 = vrcp.pop %v2467
    %v2469 = vmul.f32 1.0, %v2468
    %v2470 = vxor.u32 %v2461, 2147483648
    %v2471 = vmul.f32 %v2470, 1.442695
    %v2472 = vpow.pop %v2471
    %v2473 = vadd.f32 %v2472, 1.0
    %v2474 = vrcp.pop %v2473
    %v2475 = vmul.f32 1.0, %v2474
    %v2476 = vtanh.pop %v2462
    %v2477 = vxor.u32 %v2463, 2147483648
    %v2478 = vmul.f32 %v2477, 1.442695
    %v2479 = vpow.pop %v2478
    %v2480 = vadd.f32 %v2479, 1.0
    %v2481 = vrcp.pop %v2480
    %v2482 = vmul.f32 1.0, %v2481
    %v2483 = vmul.f32 %v2475, %v2171
    %v2484 = vmul.f32 %v2469, %v2476
    %v2485 = vadd.f32 %v2483, %v2484
    %v2486 = vtanh.pop %v2485
    %v2487 = vmul.f32 %v2482, %v2486
    %s2488 = sadd.s32 %s50, 7
    %v2489 = vstv %s2488
    %vm2490 = vcmp.lt.s32.totalorder %v2489, %v49
    %v2491 = vsel %vm2490, 1, 0
    %2492 = vset.pattern.permute.xlu0 0
    %2493 = vperm.xlu0 %2492, %v2491
    %v2494 = vpop.permute.xlu0 %2493
    %vm2495 = vcmp.eq.s32.totalorder %v2494, 1
    %v2496 = vsel %vm2495, %v2487, 0.0
    %v2498 = vcombine.high %v2496, %v2496
    %v2500 = vunpack.c.l.s4 1966171168
    %v2501 = vunpack.c.0.s8 %v2500
    %v2502 = vlaneseq
    %v2503 = vshrl.u32 %v2502, 7
    %v2504 = vsub.s32 %v2501, %v2503
    %v2505 = vrot.slane %v2496, %v2504
    %v2507 = vunpack.c.l.s4 1966171168
    %v2508 = vunpack.c.0.s8 %v2507
    %v2509 = vlaneseq
    %v2510 = vshrl.u32 %v2509, 7
    %v2511 = vsub.s32 %v2508, %v2510
    %v2512 = vrot.slane %v2498, %v2511
    %v2513 = vcombine.high %v2505, %v2505
    %v2514 = vcombine.high %v2512, %v2512
    %v2516 = vunpack.c.l.s4 1966171168
    %v2517 = vunpack.c.0.s8 %v2516
    %v2518 = vlaneseq
    %v2519 = vshrl.u32 %v2518, 7
    %v2520 = vsub.s32 %v2517, %v2519
    %v2521 = vrot.slane %v2505, %v2520
    %v2523 = vunpack.c.l.s4 1966171168
    %v2524 = vunpack.c.0.s8 %v2523
    %v2525 = vlaneseq
    %v2526 = vshrl.u32 %v2525, 7
    %v2527 = vsub.s32 %v2524, %v2526
    %v2528 = vrot.slane %v2512, %v2527
    %v2530 = vunpack.c.l.s4 1966171168
    %v2531 = vunpack.c.0.s8 %v2530
    %v2532 = vlaneseq
    %v2533 = vshrl.u32 %v2532, 7
    %v2534 = vsub.s32 %v2531, %v2533
    %v2535 = vrot.slane %v2513, %v2534
    %v2537 = vunpack.c.l.s4 1966171168
    %v2538 = vunpack.c.0.s8 %v2537
    %v2539 = vlaneseq
    %v2540 = vshrl.u32 %v2539, 7
    %v2541 = vsub.s32 %v2538, %v2540
    %v2542 = vrot.slane %v2514, %v2541
    %v2543 = vcombine.high %v2521, %v2521
    %v2544 = vcombine.high %v2528, %v2528
    %v2545 = vcombine.high %v2535, %v2535
    %v2546 = vcombine.high %v2542, %v2542
    %2555 = vst [vmem:[#allocation9 + $0x7] sm:$0x1] %v2521
    %2556 = vst [vmem:[#allocation9 + $0xf] sm:$0x1] %v2535
    %2557 = vst [vmem:[#allocation9 + $0x17] sm:$0x1] %v2543
    %2558 = vst [vmem:[#allocation9 + $0x1f] sm:$0x1] %v2545
    %2559 = vst [vmem:[#allocation9 + $0x27] sm:$0x1] %v2528
    %2560 = vst [vmem:[#allocation9 + $0x2f] sm:$0x1] %v2542
    %2561 = vst [vmem:[#allocation9 + $0x37] sm:$0x1] %v2544
    %2562 = vst [vmem:[#allocation9 + $0x3f] sm:$0x1] %v2546
    %2563 = vst [vmem:[#allocation2] sm:$0xff] %v2487
    %2564 = vst [vmem:[#allocation3] sm:$0xff] %v2485
    // Predicated region
    $region26: #{tpu_custom_call.1} parent=1 // pred_check
      _
    $region27: #{tpu_custom_call.1} parent=1 // pred_check_branch
      %2566 = sbr.rel (0) target = $region29
    $region28: #{tpu_custom_call.1} parent=1 // pred_region
      %s2568 = ssub.s32 1024, 1024
      %2569 = vsyncadd [#allocation6], %s2568
      %s2570 = sshll.u32 [#allocation9], 4
      %s2571 = int_to_ptr.vmem [resolvable:$true] %s2570
      %2576 = dma.vmem_to_hbm [thread:$0]  %s2571, 1024, %s3, [#allocation6], 128, 128, 8
    $region29: #{tpu_custom_call.1} parent=1 // pred_fallthru
      _
    // Predicated region
    $region30: #{tpu_custom_call.1} parent=1 // pred_check
      _
    $region31: #{tpu_custom_call.1} parent=1 // pred_check_branch
      %2578 = sbr.rel (0) target = $region33
    $region32: #{tpu_custom_call.1} parent=1 // pred_region
      %2579 = dma.done [#allocation6], 1024
    $region33: #{tpu_custom_call.1} parent=1 // pred_fallthru
      _
    %2580 = vsyncpa [#allocation5], 1
    %2581 = vsyncpa [#allocation8], 1
    %2582 = vsyncpa [#allocation6], 1

</llo_original>
